<compile_context>
chip_gen: v7x
topology: tpu7x:2x2x1
jax: 0.10.0
libtpu: 0.0.40
codegen_flags: <defaults>
</compile_context>

<pallas_src>
import functools
import numpy as np
import jax
import jax.numpy as jnp
from jax.experimental import pallas as pl
from jax.experimental.pallas import tpu as pltpu


# -----------------------------------------------------------------------------
# Pallas kernel: one padded graph per grid step (weights shared across steps)
# -----------------------------------------------------------------------------
def graph_encoder_kernel(
    x_node_ref, x_edge_ref, s_ref, a_ref,
    wn_ref, we_ref, en1_w_ref, en2_w_ref,
    rep_ref, grp_ref, gru_w_ref, bias_ref,
    out_ref, *, n_node_hidden, n_edge_hidden, n_layers, dot_dtype):
  H = n_node_hidden
  He = n_edge_hidden
  f32 = jnp.float32

  def mm(a, b):
    # MXU matmul; operands optionally bf16, accumulation always f32.
    return jnp.dot(a.astype(dot_dtype), b.astype(dot_dtype),
                   preferred_element_type=f32)

  # ---- Unpack fused bias slab (static lane offsets) -------------------------
  bias = bias_ref[...]
  o = 0
  bn = bias[:, o:o + H]; o += H
  be = bias[:, o:o + He]; o += He
  en1b = bias[:, o:o + He]; o += He
  en2b = bias[:, o:o + H * H]; o += H * H
  gru_b = bias[:, o:o + 4 * H]

  x_node = x_node_ref[0]                                   # (N, Fa)
  x_edge = x_edge_ref[0]                                   # (E, Fb)
  S = s_ref[0]                                             # (E, N) one-hot src
  A = a_ref[0]                                             # (N, E) mean aggr
  R = rep_ref[...]                                         # (H, H*H) repeat
  G = grp_ref[...]                                         # (H*H, H) group-sum
  Wg_m = gru_w_ref[0:H, :]                                 # (H, 4H)
  Wg_h = gru_w_ref[H:2 * H, :]                             # (H, 4H)

  n_nodes, n_edges = x_node.shape[0], x_edge.shape[0]

  # ---- Embedding (eval-mode BatchNorm folded into the weights) --------------
  h_node = mm(x_node, wn_ref[...]) + bn                    # (N, H)
  h_edge = mm(x_edge, we_ref[...]) + be                    # (E, He)

  # ---- NNConv edge network (depends only on h_edge -> computed once) --------
  t = mm(h_edge, en1_w_ref[...]) + en1b
  t = jnp.where(t >= 0, t, 0.8 * t)                        # LeakyReLU(0.8)
  w_flat = mm(t, en2_w_ref[...]) + en2b                    # (E, H*H)

  # Pick the cheaper matmul association for the repeat stage (static).
  macs_scatter_first = n_edges * n_nodes * H + n_edges * H * H * H
  macs_repeat_first = n_nodes * H * H * H + n_edges * n_nodes * H * H
  reassociate = macs_repeat_first < macs_scatter_first

  h = h_node
  for _ in range(n_layers):
    # Message: m_dst = mean_{e: dst(e)=dst} h_src(e) @ W_e, all on the MXU.
    if reassociate:
      h_rep = mm(S, mm(h, R))                              # (E, H*H)
    else:
      h_rep = mm(mm(S, h), R)                              # (E, H*H)
    msgs_flat = h_rep * w_flat                             # (E, H*H), f32 VPU
    # Mean aggregation + group-sum kept in f32 (A carries 1/in_deg values).
    m_flat = jnp.dot(A, msgs_flat, preferred_element_type=f32)   # (N, H*H)
    m = jnp.dot(m_flat, G, preferred_element_type=f32)           # (N, H)

    # GRU cell: two accumulating matmuls (no lane-axis concat), gate order r,z,n.
    g = mm(m, Wg_m) + mm(h, Wg_h) + gru_b                  # (N, 4H)
    r = jax.nn.sigmoid(g[:, 0:H])
    z = jax.nn.sigmoid(g[:, H:2 * H])
    n = jnp.tanh(g[:, 2 * H:3 * H] + r * g[:, 3 * H:4 * H])
    h = (1.0 - z) * n + z * h

  out_ref[0] = h


def _cost_estimate(args, *, n_graphs, n_nodes, n_edges, n_atom_feat,
                   n_bond_feat, n_edge_hidden, n_node_hidden, n_layers):
  H, He, N, E = n_node_hidden, n_edge_hidden, n_nodes, n_edges
  mm2 = lambda m, k, n: 2 * m * k * n
  emb = mm2(N, n_atom_feat, H) + mm2(E, n_bond_feat, He)
  edge_net = mm2(E, He, He) + mm2(E, He, H * H)
  assoc_a = mm2(E, N, H) + mm2(E, H, H * H)
  assoc_b = mm2(N, H, H * H) + mm2(E, N, H * H)
  msg = min(assoc_a, assoc_b) + E * H * H + mm2(N, E, H * H) + mm2(N, H * H, H)
  gru = 2 * mm2(N, H, 4 * H) + 12 * N * H
  flops = n_graphs * (emb + edge_net + n_layers * (msg + gru))
  transcendentals = n_graphs * 3 * N * H * n_layers
  bytes_accessed = (sum(int(np.prod(a.shape)) * a.dtype.itemsize for a in args)
                    + n_graphs * N * H * 4)
  return pl.CostEstimate(flops=int(flops),
                         transcendentals=int(transcendentals),
                         bytes_accessed=int(bytes_accessed))


def graph_encoder_forward(args, *, n_graphs, n_nodes, n_edges, n_atom_feat,
                          n_bond_feat, n_edge_hidden, n_node_hidden, n_layers,
                          matmul_dtype=jnp.float32):
  kernel = functools.partial(
      graph_encoder_kernel, n_node_hidden=n_node_hidden,
      n_edge_hidden=n_edge_hidden, n_layers=n_layers, dot_dtype=matmul_dtype)

  def per_graph(feat_shape):
    return pl.BlockSpec((1,) + tuple(feat_shape), lambda b: (b, 0, 0))

  def shared(arr):
    nd = arr.ndim
    return pl.BlockSpec(arr.shape, lambda b: (0,) * nd)

  x_node, x_edge, S, A = args[:4]
  in_specs = [per_graph(x_node.shape[1:]), per_graph(x_edge.shape[1:]),
              per_graph(S.shape[1:]), per_graph(A.shape[1:])]
  in_specs += [shared(a) for a in args[4:]]

  cost = _cost_estimate(
      args, n_graphs=n_graphs, n_nodes=n_nodes, n_edges=n_edges,
      n_atom_feat=n_atom_feat, n_bond_feat=n_bond_feat,
      n_edge_hidden=n_edge_hidden, n_node_hidden=n_node_hidden,
      n_layers=n_layers)

  return pl.pallas_call(
      kernel,
      out_shape=jax.ShapeDtypeStruct((n_graphs, n_nodes, n_node_hidden),
                                     jnp.float32),
      grid=(n_graphs,),
      in_specs=in_specs,
      out_specs=pl.BlockSpec((1, n_nodes, n_node_hidden), lambda b: (b, 0, 0)),
      compiler_params=pltpu.CompilerParams(
          # Graph axis is embarrassingly parallel -> megacore split on v7x.
          dimension_semantics=("parallel",),
          # Per-step footprint is tiny here; re-derive for v7x (64 MiB) when
          # scaling the dense S/A/w_flat formulation to real graph sizes.
          vmem_limit_bytes=32 * 1024 * 1024),
      cost_estimate=cost,
  )(*args)


# -----------------------------------------------------------------------------
# Wrapper-side packing: fold eval-mode BatchNorms into Linears, fuse GRU mats,
# concat all biases into one slab, build the repeat / group-sum matrices.
# -----------------------------------------------------------------------------
def pack_params(params, *, n_node_hidden):
  H = n_node_hidden
  (bnn_s, bnn_b, wn, bnode,
   bne_s, bne_b, we, bedge,
   en1_w, en1_b, enbn1_s, enbn1_b,
   en2_w, en2_b, enbn2_s, enbn2_b,
   wir, wiz, win, whr, whz, whn,
   bir, biz, bin_, bhr, bhz, bhn) = params

  # BatchNorm (eval) BEFORE Linear: (x*s + b) @ W + c == x @ (s^T*W) + (b@W + c)
  wn_f = bnn_s.reshape(-1, 1) * wn
  bn_f = bnn_b @ wn + bnode
  we_f = bne_s.reshape(-1, 1) * we
  be_f = bne_b @ we + bedge

  # BatchNorm (eval) AFTER Linear: (x@W + b)*s + sh == x @ (W*s) + (b*s + sh)
  en1_wf = en1_w * enbn1_s
  en1_bf = en1_b * enbn1_s + enbn1_b
  en2_wf = en2_w * enbn2_s
  en2_bf = en2_b * enbn2_s + enbn2_b

  # Fused GRU weight (2H, 4H): rows [m ; h], column blocks [r|z|n_in|n_hid].
  zeros = jnp.zeros((H, H), jnp.float32)
  gru_w = jnp.concatenate([
      jnp.concatenate([wir, wiz, win, zeros], axis=1),
      jnp.concatenate([whr, whz, zeros, whn], axis=1)], axis=0)
  gru_b = jnp.concatenate([bir + bhr, biz + bhz, bin_, bhn], axis=1)

  # Bias slab: [bn | be | en1_b | en2_b | gru_b]  -> one DMA instead of five.
  biases = jnp.concatenate([bn_f, be_f, en1_bf, en2_bf, gru_b], axis=1)

  # Constant matrices for the MXU per-edge contraction (exact in bf16 too).
  eye = jnp.eye(H, dtype=jnp.float32)
  R = jnp.repeat(eye, H, axis=1)        # (H, H*H):  R[k, k*H + o] = delta_k
  G = jnp.tile(eye, (H, 1))             # (H*H, H):  G[k*H + o, o] = 1

  return (wn_f, we_f, en1_wf, en2_wf, R, G, gru_w, biases)


# -----------------------------------------------------------------------------
# Pure-JAX reference: ORIGINAL (unfolded) math for a single (padded) graph.
# -----------------------------------------------------------------------------
def reference_forward(x_node, x_edge, S, A, params, *, n_node_hidden, n_layers):
  (bnn_s, bnn_b, wn, bnode,
   bne_s, bne_b, we, bedge,
   en1_w, en1_b, enbn1_s, enbn1_b,
   en2_w, en2_b, enbn2_s, enbn2_b,
   wir, wiz, win, whr, whz, whn,
   bir, biz, bin_, bhr, bhz, bhn) = params
  H = n_node_hidden
  h_node = (x_node * bnn_s + bnn_b) @ wn + bnode
  h_edge = (x_edge * bne_s + bne_b) @ we + bedge
  t = h_edge @ en1_w + en1_b
  t = t * enbn1_s + enbn1_b
  t = jnp.where(t >= 0, t, 0.8 * t)
  w_flat = t @ en2_w + en2_b
  w_flat = w_flat * enbn2_s + enbn2_b
  W = w_flat.reshape(w_flat.shape[0], H, H)
  h = h_node
  for _ in range(n_layers):
    h_src = S @ h
    msgs = jnp.einsum('eh,eho->eo', h_src, W)
    m = A @ msgs
    r = jax.nn.sigmoid(m @ wir + bir + h @ whr + bhr)
    z = jax.nn.sigmoid(m @ wiz + biz + h @ whz + bhz)
    n = jnp.tanh(m @ win + bin_ + r * (h @ whn + bhn))
    h = (1.0 - z) * n + z * h
  return h


# -----------------------------------------------------------------------------
# Deterministic parameter / input construction (synthetic, no checkpoints)
# -----------------------------------------------------------------------------
def make_linear(key, fin, fout):
  k1, k2 = jax.random.split(key)
  bound = 1.0 / np.sqrt(fin)
  w = jax.random.uniform(k1, (fin, fout), jnp.float32, -bound, bound)
  b = jax.random.uniform(k2, (1, fout), jnp.float32, -bound, bound)
  return w, b


def make_bn(key, f, eps=1e-5):
  k1, k2, k3, k4 = jax.random.split(key, 4)
  gamma = 1.0 + 0.1 * jax.random.normal(k1, (f,), jnp.float32)
  beta = 0.1 * jax.random.normal(k2, (f,), jnp.float32)
  mean = 0.1 * jax.random.normal(k3, (f,), jnp.float32)
  var = 1.0 + 0.1 * jax.random.uniform(k4, (f,), jnp.float32)
  scale = gamma / jnp.sqrt(var + eps)
  shift = beta - mean * scale
  return scale.reshape(1, f), shift.reshape(1, f)


def build_graph_mats(n_nodes, n_max, e_max):
  """Ring + skip-2 graph on n_nodes nodes, padded to (e_max, n_max)."""
  n = n_nodes
  src = np.concatenate([np.arange(n), np.arange(n)]).astype(np.int64)
  dst = np.concatenate([(np.arange(n) + 1) % n, (np.arange(n) + 2) % n])
  e = 2 * n
  S = np.zeros((e_max, n_max), np.float32)
  S[np.arange(e), src] = 1.0
  in_deg = np.zeros((n_max,), np.float32)
  np.add.at(in_deg, dst, 1.0)
  A = np.zeros((n_max, e_max), np.float32)
  A[dst, np.arange(e)] = 1.0
  A = A / np.maximum(in_deg, 1.0)[:, None]
  return S, A


if __name__ == "__main__":
  # Hyper-parameters (small, consistent with the module's __init__).
  n_atom_feat, n_node_hidden = 16, 32
  n_bond_feat, n_edge_hidden = 8, 16
  n_layers = 3
  N_MAX, E_MAX = 8, 16
  node_counts = [8, 6, 8, 5]          # batch of 4 graphs, padded to N_MAX/E_MAX
  B = len(node_counts)

  key = jax.random.PRNGKey(0)
  keys = jax.random.split(key, 18)

  # Per-graph padded scatter / mean-aggregation matrices.
  S_list, A_list = [], []
  for n in node_counts:
    S_i, A_i = build_graph_mats(n, N_MAX, E_MAX)
    S_list.append(S_i)
    A_list.append(A_i)
  S_b = jnp.asarray(np.stack(S_list))                       # (B, E_MAX, N_MAX)
  A_b = jnp.asarray(np.stack(A_list))                       # (B, N_MAX, E_MAX)

  # Features (padded rows never reach real nodes: S rows / A columns are zero).
  x_node_b = jax.random.normal(keys[0], (B, N_MAX, n_atom_feat), jnp.float32)
  x_edge_b = jax.random.normal(keys[1], (B, E_MAX, n_bond_feat), jnp.float32)

  # Embedding params.
  bnn_s, bnn_b = make_bn(keys[2], n_atom_feat)
  wn, bnode = make_linear(keys[3], n_atom_feat, n_node_hidden)
  bne_s, bne_b = make_bn(keys[4], n_bond_feat)
  we, bedge = make_linear(keys[5], n_bond_feat, n_edge_hidden)

  # NNConv edge-network params.
  en1_w, en1_b = make_linear(keys[6], n_edge_hidden, n_edge_hidden)
  enbn1_s, enbn1_b = make_bn(keys[7], n_edge_hidden)
  en2_w, en2_b = make_linear(keys[8], n_edge_hidden,
                             n_node_hidden * n_node_hidden)
  enbn2_s, enbn2_b = make_bn(keys[9], n_node_hidden * n_node_hidden)

  # GRU params (pre-split per gate, stored as (H_in, H_out) for x @ W).
  wir, bir = make_linear(keys[10], n_node_hidden, n_node_hidden)
  wiz, biz = make_linear(keys[11], n_node_hidden, n_node_hidden)
  win, bin_ = make_linear(keys[12], n_node_hidden, n_node_hidden)
  whr, bhr = make_linear(keys[13], n_node_hidden, n_node_hidden)
  whz, bhz = make_linear(keys[14], n_node_hidden, n_node_hidden)
  whn, bhn = make_linear(keys[15], n_node_hidden, n_node_hidden)

  params = (bnn_s, bnn_b, wn, bnode,
            bne_s, bne_b, we, bedge,
            en1_w, en1_b, enbn1_s, enbn1_b,
            en2_w, en2_b, enbn2_s, enbn2_b,
            wir, wiz, win, whr, whz, whn,
            bir, biz, bin_, bhr, bhz, bhn)

  packed = pack_params(params, n_node_hidden=n_node_hidden)
  args = (x_node_b, x_edge_b, S_b, A_b) + packed

  run = functools.partial(
      graph_encoder_forward, n_graphs=B, n_nodes=N_MAX, n_edges=E_MAX,
      n_atom_feat=n_atom_feat, n_bond_feat=n_bond_feat,
      n_edge_hidden=n_edge_hidden, n_node_hidden=n_node_hidden,
      n_layers=n_layers)

  # f32 kernel vs. pure-JAX reference (original unfolded math), strict check.
  h_f32 = jax.block_until_ready(run(args, matmul_dtype=jnp.float32))

  ref_fn = functools.partial(reference_forward, n_node_hidden=n_node_hidden,
                             n_layers=n_layers)
  h_ref = jax.block_until_ready(
      jax.vmap(ref_fn, in_axes=(0, 0, 0, 0, None))(
          x_node_b, x_edge_b, S_b, A_b, params))

  assert h_f32.shape == (B, N_MAX, n_node_hidden)
  np.testing.assert_allclose(np.asarray(h_f32), np.asarray(h_ref),
                             rtol=1e-4, atol=1e-4)

  # bf16-MXU variant (f32 accumulation / elementwise), loose sanity check.
  h_bf16 = jax.block_until_ready(run(args, matmul_dtype=jnp.bfloat16))
  np.testing.assert_allclose(np.asarray(h_bf16), np.asarray(h_ref),
                             rtol=1e-1, atol=1e-1)

  print("KERNEL_OK")
</pallas_src>

<mosaic_0001>
module attributes {stable_mosaic.version = 11 : i64} {
  func.func @graph_encoder_kernel(%arg0: i32, %arg1: memref<1x8x16xf32, #tpu.memory_space<vmem>>, %arg2: memref<1x16x8xf32, #tpu.memory_space<vmem>>, %arg3: memref<1x16x8xf32, #tpu.memory_space<vmem>>, %arg4: memref<1x8x16xf32, #tpu.memory_space<vmem>>, %arg5: memref<16x32xf32, #tpu.memory_space<vmem>>, %arg6: memref<8x16xf32, #tpu.memory_space<vmem>>, %arg7: memref<16x16xf32, #tpu.memory_space<vmem>>, %arg8: memref<16x1024xf32, #tpu.memory_space<vmem>>, %arg9: memref<32x1024xf32, #tpu.memory_space<vmem>>, %arg10: memref<1024x32xf32, #tpu.memory_space<vmem>>, %arg11: memref<64x128xf32, #tpu.memory_space<vmem>>, %arg12: memref<1x1216xf32, #tpu.memory_space<vmem>>, %arg13: memref<1x8x32xf32, #tpu.memory_space<vmem>>) attributes {dimension_semantics = [#tpu.dimension_semantics<parallel>], iteration_bounds = array<i64: 4>, scalar_prefetch = 0 : i64, scratch_operands = 0 : i64, tpu.core_type = #tpu.core_type<tc>, window_params = [{transform_indices = @transform_0, window_bounds = array<i64: 1, 8, 16>}, {transform_indices = @transform_1, window_bounds = array<i64: 1, 16, 8>}, {transform_indices = @transform_2, window_bounds = array<i64: 1, 16, 8>}, {transform_indices = @transform_3, window_bounds = array<i64: 1, 8, 16>}, {pipeline_mode = #tpu.pipeline_mode<synchronous>, transform_indices = @transform_4, window_bounds = array<i64: 16, 32>}, {pipeline_mode = #tpu.pipeline_mode<synchronous>, transform_indices = @transform_5, window_bounds = array<i64: 8, 16>}, {pipeline_mode = #tpu.pipeline_mode<synchronous>, transform_indices = @transform_6, window_bounds = array<i64: 16, 16>}, {pipeline_mode = #tpu.pipeline_mode<synchronous>, transform_indices = @transform_7, window_bounds = array<i64: 16, 1024>}, {pipeline_mode = #tpu.pipeline_mode<synchronous>, transform_indices = @transform_8, window_bounds = array<i64: 32, 1024>}, {pipeline_mode = #tpu.pipeline_mode<synchronous>, transform_indices = @transform_9, window_bounds = array<i64: 1024, 32>}, {pipeline_mode = #tpu.pipeline_mode<synchronous>, transform_indices = @transform_10, window_bounds = array<i64: 64, 128>}, {pipeline_mode = #tpu.pipeline_mode<synchronous>, transform_indices = @transform_11, window_bounds = array<i64: 1, 1216>}, {transform_indices = @transform_12, window_bounds = array<i64: 1, 8, 32>}]} {
    %c0 = arith.constant 0 : index
    %c0_0 = arith.constant 0 : index
    %0 = vector.load %arg12[%c0, %c0_0] : memref<1x1216xf32, #tpu.memory_space<vmem>>, vector<1x1216xf32>
    %1 = vector.extract_strided_slice %0 {offsets = [0, 0], sizes = [1, 32], strides = [1, 1]} : vector<1x1216xf32> to vector<1x32xf32>
    %2 = vector.extract_strided_slice %0 {offsets = [0, 32], sizes = [1, 16], strides = [1, 1]} : vector<1x1216xf32> to vector<1x16xf32>
    %3 = vector.extract_strided_slice %0 {offsets = [0, 48], sizes = [1, 16], strides = [1, 1]} : vector<1x1216xf32> to vector<1x16xf32>
    %4 = vector.extract_strided_slice %0 {offsets = [0, 64], sizes = [1, 1024], strides = [1, 1]} : vector<1x1216xf32> to vector<1x1024xf32>
    %5 = vector.extract_strided_slice %0 {offsets = [0, 1088], sizes = [1, 128], strides = [1, 1]} : vector<1x1216xf32> to vector<1x128xf32>
    %c0_1 = arith.constant 0 : index
    %c0_2 = arith.constant 0 : index
    %c0_3 = arith.constant 0 : index
    %6 = vector.load %arg1[%c0_1, %c0_2, %c0_3] : memref<1x8x16xf32, #tpu.memory_space<vmem>>, vector<1x8x16xf32>
    %7 = vector.shape_cast %6 : vector<1x8x16xf32> to vector<8x16xf32>
    %c0_4 = arith.constant 0 : index
    %c0_5 = arith.constant 0 : index
    %c0_6 = arith.constant 0 : index
    %8 = vector.load %arg2[%c0_4, %c0_5, %c0_6] : memref<1x16x8xf32, #tpu.memory_space<vmem>>, vector<1x16x8xf32>
    %9 = vector.shape_cast %8 : vector<1x16x8xf32> to vector<16x8xf32>
    %c0_7 = arith.constant 0 : index
    %c0_8 = arith.constant 0 : index
    %c0_9 = arith.constant 0 : index
    %10 = vector.load %arg3[%c0_7, %c0_8, %c0_9] : memref<1x16x8xf32, #tpu.memory_space<vmem>>, vector<1x16x8xf32>
    %11 = vector.shape_cast %10 : vector<1x16x8xf32> to vector<16x8xf32>
    %c0_10 = arith.constant 0 : index
    %c0_11 = arith.constant 0 : index
    %c0_12 = arith.constant 0 : index
    %12 = vector.load %arg4[%c0_10, %c0_11, %c0_12] : memref<1x8x16xf32, #tpu.memory_space<vmem>>, vector<1x8x16xf32>
    %13 = vector.shape_cast %12 : vector<1x8x16xf32> to vector<8x16xf32>
    %c0_13 = arith.constant 0 : index
    %c0_14 = arith.constant 0 : index
    %14 = vector.load %arg9[%c0_13, %c0_14] : memref<32x1024xf32, #tpu.memory_space<vmem>>, vector<32x1024xf32>
    %c0_15 = arith.constant 0 : index
    %c0_16 = arith.constant 0 : index
    %15 = vector.load %arg10[%c0_15, %c0_16] : memref<1024x32xf32, #tpu.memory_space<vmem>>, vector<1024x32xf32>
    %c0_17 = arith.constant 0 : index
    %c0_18 = arith.constant 0 : index
    %16 = vector.load %arg11[%c0_17, %c0_18] : memref<64x128xf32, #tpu.memory_space<vmem>>, vector<32x128xf32>
    %c32 = arith.constant 32 : index
    %c0_19 = arith.constant 0 : index
    %17 = vector.load %arg11[%c32, %c0_19] : memref<64x128xf32, #tpu.memory_space<vmem>>, vector<32x128xf32>
    %c0_20 = arith.constant 0 : index
    %c0_21 = arith.constant 0 : index
    %18 = vector.load %arg5[%c0_20, %c0_21] : memref<16x32xf32, #tpu.memory_space<vmem>>, vector<16x32xf32>
    %cst = arith.constant dense<0.000000e+00> : vector<8x32xf32>
    %19 = tpu.matmul %7, %18, %cst {dimension_numbers = #tpu.dot_dimension_numbers<[1], [0], [0], [1], [0, 0, 1, 1], [], []>} : vector<8x16xf32>, vector<16x32xf32>, vector<8x32xf32> -> vector<8x32xf32>
    %20 = vector.broadcast %1 : vector<1x32xf32> to vector<8x32xf32>
    %21 = arith.addf %19, %20 : vector<8x32xf32>
    %c0_22 = arith.constant 0 : index
    %c0_23 = arith.constant 0 : index
    %22 = vector.load %arg6[%c0_22, %c0_23] : memref<8x16xf32, #tpu.memory_space<vmem>>, vector<8x16xf32>
    %cst_24 = arith.constant dense<0.000000e+00> : vector<16x16xf32>
    %23 = tpu.matmul %9, %22, %cst_24 {dimension_numbers = #tpu.dot_dimension_numbers<[1], [0], [0], [1], [0, 0, 1, 1], [], []>} : vector<16x8xf32>, vector<8x16xf32>, vector<16x16xf32> -> vector<16x16xf32>
    %24 = vector.broadcast %2 : vector<1x16xf32> to vector<16x16xf32>
    %25 = arith.addf %23, %24 : vector<16x16xf32>
    %c0_25 = arith.constant 0 : index
    %c0_26 = arith.constant 0 : index
    %26 = vector.load %arg7[%c0_25, %c0_26] : memref<16x16xf32, #tpu.memory_space<vmem>>, vector<16x16xf32>
    %cst_27 = arith.constant dense<0.000000e+00> : vector<16x16xf32>
    %27 = tpu.matmul %25, %26, %cst_27 {dimension_numbers = #tpu.dot_dimension_numbers<[1], [0], [0], [1], [0, 0, 1, 1], [], []>} : vector<16x16xf32>, vector<16x16xf32>, vector<16x16xf32> -> vector<16x16xf32>
    %28 = vector.broadcast %3 : vector<1x16xf32> to vector<16x16xf32>
    %29 = arith.addf %27, %28 : vector<16x16xf32>
    %cst_28 = arith.constant 0.000000e+00 : f32
    %30 = vector.broadcast %cst_28 : f32 to vector<16x16xf32>
    %31 = arith.cmpf oge, %29, %30 : vector<16x16xf32>
    %cst_29 = arith.constant 8.000000e-01 : f32
    %32 = vector.broadcast %cst_29 : f32 to vector<16x16xf32>
    %33 = arith.mulf %32, %29 : vector<16x16xf32>
    %34 = arith.select %31, %29, %33 : vector<16x16xi1>, vector<16x16xf32>
    %c0_30 = arith.constant 0 : index
    %c0_31 = arith.constant 0 : index
    %35 = vector.load %arg8[%c0_30, %c0_31] : memref<16x1024xf32, #tpu.memory_space<vmem>>, vector<16x1024xf32>
    %cst_32 = arith.constant dense<0.000000e+00> : vector<16x1024xf32>
    %36 = tpu.matmul %34, %35, %cst_32 {dimension_numbers = #tpu.dot_dimension_numbers<[1], [0], [0], [1], [0, 0, 1, 1], [], []>} : vector<16x16xf32>, vector<16x1024xf32>, vector<16x1024xf32> -> vector<16x1024xf32>
    %37 = vector.broadcast %4 : vector<1x1024xf32> to vector<16x1024xf32>
    %38 = arith.addf %36, %37 : vector<16x1024xf32>
    %cst_33 = arith.constant dense<0.000000e+00> : vector<8x1024xf32>
    %39 = tpu.matmul %21, %14, %cst_33 {dimension_numbers = #tpu.dot_dimension_numbers<[1], [0], [0], [1], [0, 0, 1, 1], [], []>} : vector<8x32xf32>, vector<32x1024xf32>, vector<8x1024xf32> -> vector<8x1024xf32>
    %cst_34 = arith.constant dense<0.000000e+00> : vector<16x1024xf32>
    %40 = tpu.matmul %11, %39, %cst_34 {dimension_numbers = #tpu.dot_dimension_numbers<[1], [0], [0], [1], [0, 0, 1, 1], [], []>} : vector<16x8xf32>, vector<8x1024xf32>, vector<16x1024xf32> -> vector<16x1024xf32>
    %41 = arith.mulf %40, %38 : vector<16x1024xf32>
    %cst_35 = arith.constant dense<0.000000e+00> : vector<8x1024xf32>
    %42 = tpu.matmul %13, %41, %cst_35 {dimension_numbers = #tpu.dot_dimension_numbers<[1], [0], [0], [1], [0, 0, 1, 1], [], []>} : vector<8x16xf32>, vector<16x1024xf32>, vector<8x1024xf32> -> vector<8x1024xf32>
    %cst_36 = arith.constant dense<0.000000e+00> : vector<8x32xf32>
    %43 = tpu.matmul %42, %15, %cst_36 {dimension_numbers = #tpu.dot_dimension_numbers<[1], [0], [0], [1], [0, 0, 1, 1], [], []>} : vector<8x1024xf32>, vector<1024x32xf32>, vector<8x32xf32> -> vector<8x32xf32>
    %cst_37 = arith.constant dense<0.000000e+00> : vector<8x128xf32>
    %44 = tpu.matmul %43, %16, %cst_37 {dimension_numbers = #tpu.dot_dimension_numbers<[1], [0], [0], [1], [0, 0, 1, 1], [], []>} : vector<8x32xf32>, vector<32x128xf32>, vector<8x128xf32> -> vector<8x128xf32>
    %cst_38 = arith.constant dense<0.000000e+00> : vector<8x128xf32>
    %45 = tpu.matmul %21, %17, %cst_38 {dimension_numbers = #tpu.dot_dimension_numbers<[1], [0], [0], [1], [0, 0, 1, 1], [], []>} : vector<8x32xf32>, vector<32x128xf32>, vector<8x128xf32> -> vector<8x128xf32>
    %46 = arith.addf %44, %45 : vector<8x128xf32>
    %47 = vector.broadcast %5 : vector<1x128xf32> to vector<8x128xf32>
    %48 = arith.addf %46, %47 : vector<8x128xf32>
    %49 = vector.extract_strided_slice %48 {offsets = [0, 0], sizes = [8, 32], strides = [1, 1]} : vector<8x128xf32> to vector<8x32xf32>
    %50 = arith.negf %49 : vector<8x32xf32>
    %51 = math.exp %50 : vector<8x32xf32>
    %cst_39 = arith.constant 1.000000e+00 : f32
    %52 = vector.broadcast %cst_39 : f32 to vector<8x32xf32>
    %53 = arith.addf %52, %51 : vector<8x32xf32>
    %54 = arith.divf %52, %53 : vector<8x32xf32>
    %55 = vector.extract_strided_slice %48 {offsets = [0, 32], sizes = [8, 32], strides = [1, 1]} : vector<8x128xf32> to vector<8x32xf32>
    %56 = arith.negf %55 : vector<8x32xf32>
    %57 = math.exp %56 : vector<8x32xf32>
    %cst_40 = arith.constant 1.000000e+00 : f32
    %58 = vector.broadcast %cst_40 : f32 to vector<8x32xf32>
    %59 = arith.addf %58, %57 : vector<8x32xf32>
    %60 = arith.divf %58, %59 : vector<8x32xf32>
    %61 = vector.extract_strided_slice %48 {offsets = [0, 64], sizes = [8, 32], strides = [1, 1]} : vector<8x128xf32> to vector<8x32xf32>
    %62 = vector.extract_strided_slice %48 {offsets = [0, 96], sizes = [8, 32], strides = [1, 1]} : vector<8x128xf32> to vector<8x32xf32>
    %63 = arith.mulf %54, %62 : vector<8x32xf32>
    %64 = arith.addf %61, %63 : vector<8x32xf32>
    %65 = math.tanh %64 : vector<8x32xf32>
    %cst_41 = arith.constant 1.000000e+00 : f32
    %66 = vector.broadcast %cst_41 : f32 to vector<8x32xf32>
    %67 = arith.subf %66, %60 : vector<8x32xf32>
    %68 = arith.mulf %67, %65 : vector<8x32xf32>
    %69 = arith.mulf %60, %21 : vector<8x32xf32>
    %70 = arith.addf %68, %69 : vector<8x32xf32>
    %cst_42 = arith.constant dense<0.000000e+00> : vector<8x1024xf32>
    %71 = tpu.matmul %70, %14, %cst_42 {dimension_numbers = #tpu.dot_dimension_numbers<[1], [0], [0], [1], [0, 0, 1, 1], [], []>} : vector<8x32xf32>, vector<32x1024xf32>, vector<8x1024xf32> -> vector<8x1024xf32>
    %cst_43 = arith.constant dense<0.000000e+00> : vector<16x1024xf32>
    %72 = tpu.matmul %11, %71, %cst_43 {dimension_numbers = #tpu.dot_dimension_numbers<[1], [0], [0], [1], [0, 0, 1, 1], [], []>} : vector<16x8xf32>, vector<8x1024xf32>, vector<16x1024xf32> -> vector<16x1024xf32>
    %73 = arith.mulf %72, %38 : vector<16x1024xf32>
    %cst_44 = arith.constant dense<0.000000e+00> : vector<8x1024xf32>
    %74 = tpu.matmul %13, %73, %cst_44 {dimension_numbers = #tpu.dot_dimension_numbers<[1], [0], [0], [1], [0, 0, 1, 1], [], []>} : vector<8x16xf32>, vector<16x1024xf32>, vector<8x1024xf32> -> vector<8x1024xf32>
    %cst_45 = arith.constant dense<0.000000e+00> : vector<8x32xf32>
    %75 = tpu.matmul %74, %15, %cst_45 {dimension_numbers = #tpu.dot_dimension_numbers<[1], [0], [0], [1], [0, 0, 1, 1], [], []>} : vector<8x1024xf32>, vector<1024x32xf32>, vector<8x32xf32> -> vector<8x32xf32>
    %cst_46 = arith.constant dense<0.000000e+00> : vector<8x128xf32>
    %76 = tpu.matmul %75, %16, %cst_46 {dimension_numbers = #tpu.dot_dimension_numbers<[1], [0], [0], [1], [0, 0, 1, 1], [], []>} : vector<8x32xf32>, vector<32x128xf32>, vector<8x128xf32> -> vector<8x128xf32>
    %cst_47 = arith.constant dense<0.000000e+00> : vector<8x128xf32>
    %77 = tpu.matmul %70, %17, %cst_47 {dimension_numbers = #tpu.dot_dimension_numbers<[1], [0], [0], [1], [0, 0, 1, 1], [], []>} : vector<8x32xf32>, vector<32x128xf32>, vector<8x128xf32> -> vector<8x128xf32>
    %78 = arith.addf %76, %77 : vector<8x128xf32>
    %79 = vector.broadcast %5 : vector<1x128xf32> to vector<8x128xf32>
    %80 = arith.addf %78, %79 : vector<8x128xf32>
    %81 = vector.extract_strided_slice %80 {offsets = [0, 0], sizes = [8, 32], strides = [1, 1]} : vector<8x128xf32> to vector<8x32xf32>
    %82 = arith.negf %81 : vector<8x32xf32>
    %83 = math.exp %82 : vector<8x32xf32>
    %cst_48 = arith.constant 1.000000e+00 : f32
    %84 = vector.broadcast %cst_48 : f32 to vector<8x32xf32>
    %85 = arith.addf %84, %83 : vector<8x32xf32>
    %86 = arith.divf %84, %85 : vector<8x32xf32>
    %87 = vector.extract_strided_slice %80 {offsets = [0, 32], sizes = [8, 32], strides = [1, 1]} : vector<8x128xf32> to vector<8x32xf32>
    %88 = arith.negf %87 : vector<8x32xf32>
    %89 = math.exp %88 : vector<8x32xf32>
    %cst_49 = arith.constant 1.000000e+00 : f32
    %90 = vector.broadcast %cst_49 : f32 to vector<8x32xf32>
    %91 = arith.addf %90, %89 : vector<8x32xf32>
    %92 = arith.divf %90, %91 : vector<8x32xf32>
    %93 = vector.extract_strided_slice %80 {offsets = [0, 64], sizes = [8, 32], strides = [1, 1]} : vector<8x128xf32> to vector<8x32xf32>
    %94 = vector.extract_strided_slice %80 {offsets = [0, 96], sizes = [8, 32], strides = [1, 1]} : vector<8x128xf32> to vector<8x32xf32>
    %95 = arith.mulf %86, %94 : vector<8x32xf32>
    %96 = arith.addf %93, %95 : vector<8x32xf32>
    %97 = math.tanh %96 : vector<8x32xf32>
    %cst_50 = arith.constant 1.000000e+00 : f32
    %98 = vector.broadcast %cst_50 : f32 to vector<8x32xf32>
    %99 = arith.subf %98, %92 : vector<8x32xf32>
    %100 = arith.mulf %99, %97 : vector<8x32xf32>
    %101 = arith.mulf %92, %70 : vector<8x32xf32>
    %102 = arith.addf %100, %101 : vector<8x32xf32>
    %cst_51 = arith.constant dense<0.000000e+00> : vector<8x1024xf32>
    %103 = tpu.matmul %102, %14, %cst_51 {dimension_numbers = #tpu.dot_dimension_numbers<[1], [0], [0], [1], [0, 0, 1, 1], [], []>} : vector<8x32xf32>, vector<32x1024xf32>, vector<8x1024xf32> -> vector<8x1024xf32>
    %cst_52 = arith.constant dense<0.000000e+00> : vector<16x1024xf32>
    %104 = tpu.matmul %11, %103, %cst_52 {dimension_numbers = #tpu.dot_dimension_numbers<[1], [0], [0], [1], [0, 0, 1, 1], [], []>} : vector<16x8xf32>, vector<8x1024xf32>, vector<16x1024xf32> -> vector<16x1024xf32>
    %105 = arith.mulf %104, %38 : vector<16x1024xf32>
    %cst_53 = arith.constant dense<0.000000e+00> : vector<8x1024xf32>
    %106 = tpu.matmul %13, %105, %cst_53 {dimension_numbers = #tpu.dot_dimension_numbers<[1], [0], [0], [1], [0, 0, 1, 1], [], []>} : vector<8x16xf32>, vector<16x1024xf32>, vector<8x1024xf32> -> vector<8x1024xf32>
    %cst_54 = arith.constant dense<0.000000e+00> : vector<8x32xf32>
    %107 = tpu.matmul %106, %15, %cst_54 {dimension_numbers = #tpu.dot_dimension_numbers<[1], [0], [0], [1], [0, 0, 1, 1], [], []>} : vector<8x1024xf32>, vector<1024x32xf32>, vector<8x32xf32> -> vector<8x32xf32>
    %cst_55 = arith.constant dense<0.000000e+00> : vector<8x128xf32>
    %108 = tpu.matmul %107, %16, %cst_55 {dimension_numbers = #tpu.dot_dimension_numbers<[1], [0], [0], [1], [0, 0, 1, 1], [], []>} : vector<8x32xf32>, vector<32x128xf32>, vector<8x128xf32> -> vector<8x128xf32>
    %cst_56 = arith.constant dense<0.000000e+00> : vector<8x128xf32>
    %109 = tpu.matmul %102, %17, %cst_56 {dimension_numbers = #tpu.dot_dimension_numbers<[1], [0], [0], [1], [0, 0, 1, 1], [], []>} : vector<8x32xf32>, vector<32x128xf32>, vector<8x128xf32> -> vector<8x128xf32>
    %110 = arith.addf %108, %109 : vector<8x128xf32>
    %111 = vector.broadcast %5 : vector<1x128xf32> to vector<8x128xf32>
    %112 = arith.addf %110, %111 : vector<8x128xf32>
    %113 = vector.extract_strided_slice %112 {offsets = [0, 0], sizes = [8, 32], strides = [1, 1]} : vector<8x128xf32> to vector<8x32xf32>
    %114 = arith.negf %113 : vector<8x32xf32>
    %115 = math.exp %114 : vector<8x32xf32>
    %cst_57 = arith.constant 1.000000e+00 : f32
    %116 = vector.broadcast %cst_57 : f32 to vector<8x32xf32>
    %117 = arith.addf %116, %115 : vector<8x32xf32>
    %118 = arith.divf %116, %117 : vector<8x32xf32>
    %119 = vector.extract_strided_slice %112 {offsets = [0, 32], sizes = [8, 32], strides = [1, 1]} : vector<8x128xf32> to vector<8x32xf32>
    %120 = arith.negf %119 : vector<8x32xf32>
    %121 = math.exp %120 : vector<8x32xf32>
    %cst_58 = arith.constant 1.000000e+00 : f32
    %122 = vector.broadcast %cst_58 : f32 to vector<8x32xf32>
    %123 = arith.addf %122, %121 : vector<8x32xf32>
    %124 = arith.divf %122, %123 : vector<8x32xf32>
    %125 = vector.extract_strided_slice %112 {offsets = [0, 64], sizes = [8, 32], strides = [1, 1]} : vector<8x128xf32> to vector<8x32xf32>
    %126 = vector.extract_strided_slice %112 {offsets = [0, 96], sizes = [8, 32], strides = [1, 1]} : vector<8x128xf32> to vector<8x32xf32>
    %127 = arith.mulf %118, %126 : vector<8x32xf32>
    %128 = arith.addf %125, %127 : vector<8x32xf32>
    %129 = math.tanh %128 : vector<8x32xf32>
    %cst_59 = arith.constant 1.000000e+00 : f32
    %130 = vector.broadcast %cst_59 : f32 to vector<8x32xf32>
    %131 = arith.subf %130, %124 : vector<8x32xf32>
    %132 = arith.mulf %131, %129 : vector<8x32xf32>
    %133 = arith.mulf %124, %102 : vector<8x32xf32>
    %134 = arith.addf %132, %133 : vector<8x32xf32>
    %c0_60 = arith.constant 0 : index
    %c0_61 = arith.constant 0 : index
    %c0_62 = arith.constant 0 : index
    %135 = vector.load %arg13[%c0_60, %c0_61, %c0_62] : memref<1x8x32xf32, #tpu.memory_space<vmem>>, vector<1x8x32xf32>
    %136 = vector.shape_cast %135 : vector<1x8x32xf32> to vector<8x32xf32>
    %137 = vector.shape_cast %134 : vector<8x32xf32> to vector<1x8x32xf32>
    tpu.vector_store %arg13[%c0_60, %c0_61, %c0_62], %137 {strides = array<i32>} : memref<1x8x32xf32, #tpu.memory_space<vmem>>, vector<1x8x32xf32>,
    return
  }
  func.func @transform_0(%arg0: i32) -> (i32, i32, i32) {
    %c0_i32 = arith.constant 0 : i32
    %c0_i32_0 = arith.constant 0 : i32
    %c0_i32_1 = arith.constant 0 : i32
    return %arg0, %c0_i32, %c0_i32_0 : i32, i32, i32
  }
  func.func @transform_1(%arg0: i32) -> (i32, i32, i32) {
    %c0_i32 = arith.constant 0 : i32
    %c0_i32_0 = arith.constant 0 : i32
    %c0_i32_1 = arith.constant 0 : i32
    return %arg0, %c0_i32, %c0_i32_0 : i32, i32, i32
  }
  func.func @transform_2(%arg0: i32) -> (i32, i32, i32) {
    %c0_i32 = arith.constant 0 : i32
    %c0_i32_0 = arith.constant 0 : i32
    %c0_i32_1 = arith.constant 0 : i32
    return %arg0, %c0_i32, %c0_i32_0 : i32, i32, i32
  }
  func.func @transform_3(%arg0: i32) -> (i32, i32, i32) {
    %c0_i32 = arith.constant 0 : i32
    %c0_i32_0 = arith.constant 0 : i32
    %c0_i32_1 = arith.constant 0 : i32
    return %arg0, %c0_i32, %c0_i32_0 : i32, i32, i32
  }
  func.func @transform_4(%arg0: i32) -> (i32, i32) {
    %c0_i32 = arith.constant 0 : i32
    %c0_i32_0 = arith.constant 0 : i32
    %c0_i32_1 = arith.constant 0 : i32
    return %c0_i32, %c0_i32_0 : i32, i32
  }
  func.func @transform_5(%arg0: i32) -> (i32, i32) {
    %c0_i32 = arith.constant 0 : i32
    %c0_i32_0 = arith.constant 0 : i32
    %c0_i32_1 = arith.constant 0 : i32
    return %c0_i32, %c0_i32_0 : i32, i32
  }
  func.func @transform_6(%arg0: i32) -> (i32, i32) {
    %c0_i32 = arith.constant 0 : i32
    %c0_i32_0 = arith.constant 0 : i32
    %c0_i32_1 = arith.constant 0 : i32
    return %c0_i32, %c0_i32_0 : i32, i32
  }
  func.func @transform_7(%arg0: i32) -> (i32, i32) {
    %c0_i32 = arith.constant 0 : i32
    %c0_i32_0 = arith.constant 0 : i32
    %c0_i32_1 = arith.constant 0 : i32
    return %c0_i32, %c0_i32_0 : i32, i32
  }
  func.func @transform_8(%arg0: i32) -> (i32, i32) {
    %c0_i32 = arith.constant 0 : i32
    %c0_i32_0 = arith.constant 0 : i32
    %c0_i32_1 = arith.constant 0 : i32
    return %c0_i32, %c0_i32_0 : i32, i32
  }
  func.func @transform_9(%arg0: i32) -> (i32, i32) {
    %c0_i32 = arith.constant 0 : i32
    %c0_i32_0 = arith.constant 0 : i32
    %c0_i32_1 = arith.constant 0 : i32
    return %c0_i32, %c0_i32_0 : i32, i32
  }
  func.func @transform_10(%arg0: i32) -> (i32, i32) {
    %c0_i32 = arith.constant 0 : i32
    %c0_i32_0 = arith.constant 0 : i32
    %c0_i32_1 = arith.constant 0 : i32
    return %c0_i32, %c0_i32_0 : i32, i32
  }
  func.func @transform_11(%arg0: i32) -> (i32, i32) {
    %c0_i32 = arith.constant 0 : i32
    %c0_i32_0 = arith.constant 0 : i32
    %c0_i32_1 = arith.constant 0 : i32
    return %c0_i32, %c0_i32_0 : i32, i32
  }
  func.func @transform_12(%arg0: i32) -> (i32, i32, i32) {
    %c0_i32 = arith.constant 0 : i32
    %c0_i32_0 = arith.constant 0 : i32
    %c0_i32_1 = arith.constant 0 : i32
    return %arg0, %c0_i32, %c0_i32_0 : i32, i32, i32
  }
}

</mosaic_0001>

<llo_original>
// kernel: tpu_custom_call.1
$region0: #{tpu_custom_call.1}
  #allocation0 [shape = 'u32[]', space=smem, size = 0x4, offset = 0x4, fixed_abs, tag = 'smem constant byte address 0x4 - core index']
  #allocation1 [shape = 'u32[144,128]{1,0:T(1,128)}', space=vmem, size = 0x12000, scoped, tag = 'internal scratch']
  %s0 = inlined_call_operand.vmem [shape: f32[4,8,16], index: 0, kind: input, shape index: {}]
  %s1 = inlined_call_operand.vmem [shape: f32[4,16,8], index: 1, kind: input, shape index: {}]
  %s2 = inlined_call_operand.vmem [shape: f32[4,16,8], index: 2, kind: input, shape index: {}]
  %s3 = inlined_call_operand.vmem [shape: f32[4,8,16], index: 3, kind: input, shape index: {}]
  %s4 = inlined_call_operand.vmem [shape: f32[16,32], index: 4, kind: input, shape index: {}]
  %s5 = inlined_call_operand.vmem [shape: f32[8,16], index: 5, kind: input, shape index: {}]
  %s6 = inlined_call_operand.vmem [shape: f32[16,16], index: 6, kind: input, shape index: {}]
  %s7 = inlined_call_operand.vmem [shape: f32[16,1024], index: 7, kind: input, shape index: {}]
  %s8 = inlined_call_operand.vmem [shape: f32[32,1024], index: 8, kind: input, shape index: {}]
  %s9 = inlined_call_operand.vmem [shape: f32[1024,32], index: 9, kind: input, shape index: {}]
  %s10 = inlined_call_operand.vmem [shape: f32[64,128], index: 10, kind: input, shape index: {}]
  %s11 = inlined_call_operand.vmem [shape: f32[1,1216], index: 11, kind: input, shape index: {}]
  %s12 = inlined_call_operand.hbm [shape: f32[4,8,32], index: 12, kind: output, shape index: {}]
  %s13 = sld [smem:[#allocation0]]
  $region81: #{tpu_custom_call.1} parent=0
    _
  %s15 = ssub.s32 1, %s13
  %s16 = scalar_select 0, %s15, %s13
  $region1: #{tpu_custom_call.1} parent=0
    #allocation2 [shape = 'u8[8192]{0}', space=vmem, size = 0x2000, scoped, tag = 'output window, operand 0']
    #allocation3 [shape = 's32[2]{0}', space=sflag, size = 0x8, scoped, tag = 'scoped memory for tpu_custom_call.1']
    %17 = vsyncpa [#allocation3], 0
    %s18 = scalar_lea.sflag [#allocation3], 1
    %19 = vsyncpa %s18, 0
    loop: start=0, step=1, limit=6
    $region2: #{tpu_custom_call.1} parent=1 // loop_pre_header
      _
    $region3: #{tpu_custom_call.1} parent=1 // loop_header
      %s21 = sphi 0, %s25
      %p22 = scmp.ge.s32.totalorder %s21, 6
      %s31 = sphi 0, %s33
      %s34 = sphi 0, %s31
      %s35 = sphi 0, %s34
      %s51 = sphi 0, %s35
      %s57 = sphi 0, %s59
      %s60 = sphi 0, %s57
      %s61 = sphi 0, %s60
      %s77 = sphi 0, %s61
      %s83 = sphi 0, %s85
      %s86 = sphi 0, %s83
      %s87 = sphi 0, %s86
      %s103 = sphi 0, %s87
      %s109 = sphi 0, %s111
      %s112 = sphi 0, %s109
      %s113 = sphi 0, %s112
      %s129 = sphi 0, %s113
      %s133 = sphi 0, %s133
      %s135 = sphi 0, %s133
      %s136 = sphi 0, %s135
      %s150 = sphi 0, %s136
      %s154 = sphi 0, %s154
      %s156 = sphi 0, %s154
      %s157 = sphi 0, %s156
      %s171 = sphi 0, %s157
      %s175 = sphi 0, %s175
      %s177 = sphi 0, %s175
      %s178 = sphi 0, %s177
      %s192 = sphi 0, %s178
      %s196 = sphi 0, %s196
      %s198 = sphi 0, %s196
      %s199 = sphi 0, %s198
      %s213 = sphi 0, %s199
      %s217 = sphi 0, %s217
      %s219 = sphi 0, %s217
      %s220 = sphi 0, %s219
      %s234 = sphi 0, %s220
      %s238 = sphi 0, %s238
      %s240 = sphi 0, %s238
      %s241 = sphi 0, %s240
      %s255 = sphi 0, %s241
      %s259 = sphi 0, %s259
      %s261 = sphi 0, %s259
      %s262 = sphi 0, %s261
      %s276 = sphi 0, %s262
      %s280 = sphi 0, %s280
      %s282 = sphi 0, %s280
      %s283 = sphi 0, %s282
      %s297 = sphi 0, %s283
      %s303 = sphi 0, %s305
      %s306 = sphi 0, %s303
      %s307 = sphi 0, %s306
      %s323 = sphi 0, %s307
    $region4: #{tpu_custom_call.1} parent=1 // loop_header_branch
      %24 = sbr.rel (%p22) target = $region8
    $region5: #{tpu_custom_call.1} parent=1 // loop_body
      %s26 = ssub.s32 %s21, 1
      %s27 = ssub.s32 %s21, 2
      %s28 = sadd.s32 %s21, 1
      %s29 = ssub.s32 %s21, %s28
      %p30 = scmp.eq.s32.totalorder %s29, 0
      %s32 = sadd.s32 %s31, 1
      %s33 = scalar_select %p30, %s31, %s32
      %p36 = pneg %p30
      %p37 = scmp.eq.s32.totalorder %s21, 3
      %p38 = por %p36, %p37
      %p39 = scmp.ne.s32.totalorder %s31, %s34
      %p40 = scmp.eq.s32.totalorder %s21, 0
      %p41 = por %p39, %p40
      %p42 = scmp.ne.s32.totalorder %s31, %s34
      %p43 = scmp.eq.s32.totalorder %s26, 3
      %p44 = por %p42, %p43
      %p45 = scmp.ne.s32.totalorder %s34, %s35
      %p46 = scmp.eq.s32.totalorder %s26, 0
      %p47 = por %p45, %p46
      %p48 = scmp.ne.s32.totalorder %s34, %s35
      %p49 = scmp.eq.s32.totalorder %s27, 3
      %p50 = por %p48, %p49
      %p52 = scmp.ne.s32.totalorder %s35, %s51
      %p53 = scmp.eq.s32.totalorder %s27, 0
      %p54 = por %p52, %p53
      %s55 = ssub.s32 %s21, %s28
      %p56 = scmp.eq.s32.totalorder %s55, 0
      %s58 = sadd.s32 %s57, 1
      %s59 = scalar_select %p56, %s57, %s58
      %p62 = pneg %p56
      %p63 = scmp.eq.s32.totalorder %s21, 3
      %p64 = por %p62, %p63
      %p65 = scmp.ne.s32.totalorder %s57, %s60
      %p66 = scmp.eq.s32.totalorder %s21, 0
      %p67 = por %p65, %p66
      %p68 = scmp.ne.s32.totalorder %s57, %s60
      %p69 = scmp.eq.s32.totalorder %s26, 3
      %p70 = por %p68, %p69
      %p71 = scmp.ne.s32.totalorder %s60, %s61
      %p72 = scmp.eq.s32.totalorder %s26, 0
      %p73 = por %p71, %p72
      %p74 = scmp.ne.s32.totalorder %s60, %s61
      %p75 = scmp.eq.s32.totalorder %s27, 3
      %p76 = por %p74, %p75
      %p78 = scmp.ne.s32.totalorder %s61, %s77
      %p79 = scmp.eq.s32.totalorder %s27, 0
      %p80 = por %p78, %p79
      %s81 = ssub.s32 %s21, %s28
      %p82 = scmp.eq.s32.totalorder %s81, 0
      %s84 = sadd.s32 %s83, 1
      %s85 = scalar_select %p82, %s83, %s84
      %p88 = pneg %p82
      %p89 = scmp.eq.s32.totalorder %s21, 3
      %p90 = por %p88, %p89
      %p91 = scmp.ne.s32.totalorder %s83, %s86
      %p92 = scmp.eq.s32.totalorder %s21, 0
      %p93 = por %p91, %p92
      %p94 = scmp.ne.s32.totalorder %s83, %s86
      %p95 = scmp.eq.s32.totalorder %s26, 3
      %p96 = por %p94, %p95
      %p97 = scmp.ne.s32.totalorder %s86, %s87
      %p98 = scmp.eq.s32.totalorder %s26, 0
      %p99 = por %p97, %p98
      %p100 = scmp.ne.s32.totalorder %s86, %s87
      %p101 = scmp.eq.s32.totalorder %s27, 3
      %p102 = por %p100, %p101
      %p104 = scmp.ne.s32.totalorder %s87, %s103
      %p105 = scmp.eq.s32.totalorder %s27, 0
      %p106 = por %p104, %p105
      %s107 = ssub.s32 %s21, %s28
      %p108 = scmp.eq.s32.totalorder %s107, 0
      %s110 = sadd.s32 %s109, 1
      %s111 = scalar_select %p108, %s109, %s110
      %p114 = pneg %p108
      %p115 = scmp.eq.s32.totalorder %s21, 3
      %p116 = por %p114, %p115
      %p117 = scmp.ne.s32.totalorder %s109, %s112
      %p118 = scmp.eq.s32.totalorder %s21, 0
      %p119 = por %p117, %p118
      %p120 = scmp.ne.s32.totalorder %s109, %s112
      %p121 = scmp.eq.s32.totalorder %s26, 3
      %p122 = por %p120, %p121
      %p123 = scmp.ne.s32.totalorder %s112, %s113
      %p124 = scmp.eq.s32.totalorder %s26, 0
      %p125 = por %p123, %p124
      %p126 = scmp.ne.s32.totalorder %s112, %s113
      %p127 = scmp.eq.s32.totalorder %s27, 3
      %p128 = por %p126, %p127
      %p130 = scmp.ne.s32.totalorder %s113, %s129
      %p131 = scmp.eq.s32.totalorder %s27, 0
      %p132 = por %p130, %p131
      %s134 = sadd.s32 %s133, 1
      %p137 = scmp.eq.s32.totalorder %s21, 3
      %p138 = scmp.ne.s32.totalorder %s133, %s135
      %p139 = scmp.eq.s32.totalorder %s21, 0
      %p140 = por %p138, %p139
      %p141 = scmp.ne.s32.totalorder %s133, %s135
      %p142 = scmp.eq.s32.totalorder %s26, 3
      %p143 = por %p141, %p142
      %p144 = scmp.ne.s32.totalorder %s135, %s136
      %p145 = scmp.eq.s32.totalorder %s26, 0
      %p146 = por %p144, %p145
      %p147 = scmp.ne.s32.totalorder %s135, %s136
      %p148 = scmp.eq.s32.totalorder %s27, 3
      %p149 = por %p147, %p148
      %p151 = scmp.ne.s32.totalorder %s136, %s150
      %p152 = scmp.eq.s32.totalorder %s27, 0
      %p153 = por %p151, %p152
      %s155 = sadd.s32 %s154, 1
      %p158 = scmp.eq.s32.totalorder %s21, 3
      %p159 = scmp.ne.s32.totalorder %s154, %s156
      %p160 = scmp.eq.s32.totalorder %s21, 0
      %p161 = por %p159, %p160
      %p162 = scmp.ne.s32.totalorder %s154, %s156
      %p163 = scmp.eq.s32.totalorder %s26, 3
      %p164 = por %p162, %p163
      %p165 = scmp.ne.s32.totalorder %s156, %s157
      %p166 = scmp.eq.s32.totalorder %s26, 0
      %p167 = por %p165, %p166
      %p168 = scmp.ne.s32.totalorder %s156, %s157
      %p169 = scmp.eq.s32.totalorder %s27, 3
      %p170 = por %p168, %p169
      %p172 = scmp.ne.s32.totalorder %s157, %s171
      %p173 = scmp.eq.s32.totalorder %s27, 0
      %p174 = por %p172, %p173
      %s176 = sadd.s32 %s175, 1
      %p179 = scmp.eq.s32.totalorder %s21, 3
      %p180 = scmp.ne.s32.totalorder %s175, %s177
      %p181 = scmp.eq.s32.totalorder %s21, 0
      %p182 = por %p180, %p181
      %p183 = scmp.ne.s32.totalorder %s175, %s177
      %p184 = scmp.eq.s32.totalorder %s26, 3
      %p185 = por %p183, %p184
      %p186 = scmp.ne.s32.totalorder %s177, %s178
      %p187 = scmp.eq.s32.totalorder %s26, 0
      %p188 = por %p186, %p187
      %p189 = scmp.ne.s32.totalorder %s177, %s178
      %p190 = scmp.eq.s32.totalorder %s27, 3
      %p191 = por %p189, %p190
      %p193 = scmp.ne.s32.totalorder %s178, %s192
      %p194 = scmp.eq.s32.totalorder %s27, 0
      %p195 = por %p193, %p194
      %s197 = sadd.s32 %s196, 1
      %p200 = scmp.eq.s32.totalorder %s21, 3
      %p201 = scmp.ne.s32.totalorder %s196, %s198
      %p202 = scmp.eq.s32.totalorder %s21, 0
      %p203 = por %p201, %p202
      %p204 = scmp.ne.s32.totalorder %s196, %s198
      %p205 = scmp.eq.s32.totalorder %s26, 3
      %p206 = por %p204, %p205
      %p207 = scmp.ne.s32.totalorder %s198, %s199
      %p208 = scmp.eq.s32.totalorder %s26, 0
      %p209 = por %p207, %p208
      %p210 = scmp.ne.s32.totalorder %s198, %s199
      %p211 = scmp.eq.s32.totalorder %s27, 3
      %p212 = por %p210, %p211
      %p214 = scmp.ne.s32.totalorder %s199, %s213
      %p215 = scmp.eq.s32.totalorder %s27, 0
      %p216 = por %p214, %p215
      %s218 = sadd.s32 %s217, 1
      %p221 = scmp.eq.s32.totalorder %s21, 3
      %p222 = scmp.ne.s32.totalorder %s217, %s219
      %p223 = scmp.eq.s32.totalorder %s21, 0
      %p224 = por %p222, %p223
      %p225 = scmp.ne.s32.totalorder %s217, %s219
      %p226 = scmp.eq.s32.totalorder %s26, 3
      %p227 = por %p225, %p226
      %p228 = scmp.ne.s32.totalorder %s219, %s220
      %p229 = scmp.eq.s32.totalorder %s26, 0
      %p230 = por %p228, %p229
      %p231 = scmp.ne.s32.totalorder %s219, %s220
      %p232 = scmp.eq.s32.totalorder %s27, 3
      %p233 = por %p231, %p232
      %p235 = scmp.ne.s32.totalorder %s220, %s234
      %p236 = scmp.eq.s32.totalorder %s27, 0
      %p237 = por %p235, %p236
      %s239 = sadd.s32 %s238, 1
      %p242 = scmp.eq.s32.totalorder %s21, 3
      %p243 = scmp.ne.s32.totalorder %s238, %s240
      %p244 = scmp.eq.s32.totalorder %s21, 0
      %p245 = por %p243, %p244
      %p246 = scmp.ne.s32.totalorder %s238, %s240
      %p247 = scmp.eq.s32.totalorder %s26, 3
      %p248 = por %p246, %p247
      %p249 = scmp.ne.s32.totalorder %s240, %s241
      %p250 = scmp.eq.s32.totalorder %s26, 0
      %p251 = por %p249, %p250
      %p252 = scmp.ne.s32.totalorder %s240, %s241
      %p253 = scmp.eq.s32.totalorder %s27, 3
      %p254 = por %p252, %p253
      %p256 = scmp.ne.s32.totalorder %s241, %s255
      %p257 = scmp.eq.s32.totalorder %s27, 0
      %p258 = por %p256, %p257
      %s260 = sadd.s32 %s259, 1
      %p263 = scmp.eq.s32.totalorder %s21, 3
      %p264 = scmp.ne.s32.totalorder %s259, %s261
      %p265 = scmp.eq.s32.totalorder %s21, 0
      %p266 = por %p264, %p265
      %p267 = scmp.ne.s32.totalorder %s259, %s261
      %p268 = scmp.eq.s32.totalorder %s26, 3
      %p269 = por %p267, %p268
      %p270 = scmp.ne.s32.totalorder %s261, %s262
      %p271 = scmp.eq.s32.totalorder %s26, 0
      %p272 = por %p270, %p271
      %p273 = scmp.ne.s32.totalorder %s261, %s262
      %p274 = scmp.eq.s32.totalorder %s27, 3
      %p275 = por %p273, %p274
      %p277 = scmp.ne.s32.totalorder %s262, %s276
      %p278 = scmp.eq.s32.totalorder %s27, 0
      %p279 = por %p277, %p278
      %s281 = sadd.s32 %s280, 1
      %p284 = scmp.eq.s32.totalorder %s21, 3
      %p285 = scmp.ne.s32.totalorder %s280, %s282
      %p286 = scmp.eq.s32.totalorder %s21, 0
      %p287 = por %p285, %p286
      %p288 = scmp.ne.s32.totalorder %s280, %s282
      %p289 = scmp.eq.s32.totalorder %s26, 3
      %p290 = por %p288, %p289
      %p291 = scmp.ne.s32.totalorder %s282, %s283
      %p292 = scmp.eq.s32.totalorder %s26, 0
      %p293 = por %p291, %p292
      %p294 = scmp.ne.s32.totalorder %s282, %s283
      %p295 = scmp.eq.s32.totalorder %s27, 3
      %p296 = por %p294, %p295
      %p298 = scmp.ne.s32.totalorder %s283, %s297
      %p299 = scmp.eq.s32.totalorder %s27, 0
      %p300 = por %p298, %p299
      %s301 = ssub.s32 %s21, %s28
      %p302 = scmp.eq.s32.totalorder %s301, 0
      %s304 = sadd.s32 %s303, 1
      %s305 = scalar_select %p302, %s303, %s304
      %p308 = pneg %p302
      %p309 = scmp.eq.s32.totalorder %s21, 3
      %p310 = por %p308, %p309
      %p311 = scmp.ne.s32.totalorder %s303, %s306
      %p312 = scmp.eq.s32.totalorder %s21, 0
      %p313 = por %p311, %p312
      %p314 = scmp.ne.s32.totalorder %s303, %s306
      %p315 = scmp.eq.s32.totalorder %s26, 3
      %p316 = por %p314, %p315
      %p317 = scmp.ne.s32.totalorder %s306, %s307
      %p318 = scmp.eq.s32.totalorder %s26, 0
      %p319 = por %p317, %p318
      %p320 = scmp.ne.s32.totalorder %s306, %s307
      %p321 = scmp.eq.s32.totalorder %s27, 3
      %p322 = por %p320, %p321
      %p324 = scmp.ne.s32.totalorder %s307, %s323
      %p325 = scmp.eq.s32.totalorder %s27, 0
      %p326 = por %p324, %p325
      %p327 = scmp.le.s32.totalorder 1, %s21
      %p328 = scmp.lt.s32.totalorder %s21, 5
      %p329 = pnand %p327, %p328
      %p330 = pneg %p329
      // Predicated region
      $region9: #{tpu_custom_call.1} parent=5 // pred_check
        _
      $region10: #{tpu_custom_call.1} parent=5 // pred_check_branch
        %332 = sbr.rel (%p329) target = $region12
      $region11: #{tpu_custom_call.1} parent=5 // pred_region
        %s333 = ssub.s32 %s21, 1
        // Predicated region
        $region13: #{tpu_custom_call.1} parent=11 // pred_check
          %p334 = pneg %p146
        $region14: #{tpu_custom_call.1} parent=11 // pred_check_branch
          %336 = sbr.rel (%p334) target = $region16
        $region15: #{tpu_custom_call.1} parent=11 // pred_region
          _
        $region16: #{tpu_custom_call.1} parent=11 // pred_fallthru
          _
        // Predicated region
        $region17: #{tpu_custom_call.1} parent=11 // pred_check
          %p337 = pneg %p167
        $region18: #{tpu_custom_call.1} parent=11 // pred_check_branch
          %339 = sbr.rel (%p337) target = $region20
        $region19: #{tpu_custom_call.1} parent=11 // pred_region
          _
        $region20: #{tpu_custom_call.1} parent=11 // pred_fallthru
          _
        // Predicated region
        $region21: #{tpu_custom_call.1} parent=11 // pred_check
          %p340 = pneg %p188
        $region22: #{tpu_custom_call.1} parent=11 // pred_check_branch
          %342 = sbr.rel (%p340) target = $region24
        $region23: #{tpu_custom_call.1} parent=11 // pred_region
          _
        $region24: #{tpu_custom_call.1} parent=11 // pred_fallthru
          _
        // Predicated region
        $region25: #{tpu_custom_call.1} parent=11 // pred_check
          %p343 = pneg %p209
        $region26: #{tpu_custom_call.1} parent=11 // pred_check_branch
          %345 = sbr.rel (%p343) target = $region28
        $region27: #{tpu_custom_call.1} parent=11 // pred_region
          _
        $region28: #{tpu_custom_call.1} parent=11 // pred_fallthru
          _
        // Predicated region
        $region29: #{tpu_custom_call.1} parent=11 // pred_check
          %p346 = pneg %p230
        $region30: #{tpu_custom_call.1} parent=11 // pred_check_branch
          %348 = sbr.rel (%p346) target = $region32
        $region31: #{tpu_custom_call.1} parent=11 // pred_region
          _
        $region32: #{tpu_custom_call.1} parent=11 // pred_fallthru
          _
        // Predicated region
        $region33: #{tpu_custom_call.1} parent=11 // pred_check
          %p349 = pneg %p251
        $region34: #{tpu_custom_call.1} parent=11 // pred_check_branch
          %351 = sbr.rel (%p349) target = $region36
        $region35: #{tpu_custom_call.1} parent=11 // pred_region
          _
        $region36: #{tpu_custom_call.1} parent=11 // pred_fallthru
          _
        // Predicated region
        $region37: #{tpu_custom_call.1} parent=11 // pred_check
          %p352 = pneg %p272
        $region38: #{tpu_custom_call.1} parent=11 // pred_check_branch
          %354 = sbr.rel (%p352) target = $region40
        $region39: #{tpu_custom_call.1} parent=11 // pred_region
          _
        $region40: #{tpu_custom_call.1} parent=11 // pred_fallthru
          _
        // Predicated region
        $region41: #{tpu_custom_call.1} parent=11 // pred_check
          %p355 = pneg %p293
        $region42: #{tpu_custom_call.1} parent=11 // pred_check_branch
          %357 = sbr.rel (%p355) target = $region44
        $region43: #{tpu_custom_call.1} parent=11 // pred_region
          _
        $region44: #{tpu_custom_call.1} parent=11 // pred_fallthru
          _
      $region12: #{tpu_custom_call.1} parent=5 // pred_fallthru
        _
      %p358 = scmp.lt.s32.totalorder %s21, 4
      // Predicated region
      $region45: #{tpu_custom_call.1} parent=5 // pred_check
        %p359 = pneg %p358
      $region46: #{tpu_custom_call.1} parent=5 // pred_check_branch
        %361 = sbr.rel (%p359) target = $region48
      $region47: #{tpu_custom_call.1} parent=5 // pred_region
        // Predicated region
        $region49: #{tpu_custom_call.1} parent=47 // pred_check
          %p362 = pneg %p41
        $region50: #{tpu_custom_call.1} parent=47 // pred_check_branch
          %364 = sbr.rel (%p362) target = $region52
        $region51: #{tpu_custom_call.1} parent=47 // pred_region
          %p365 = scmp.lt.s32.totalorder %s21, 3
          %s366 = scalar_select %p365, %s21, 3
          %s367 = smul.addr %s366, 8
          %s368 = scalar_lea.vmem %s0, %s367
        $region52: #{tpu_custom_call.1} parent=47 // pred_fallthru
          _
        // Predicated region
        $region53: #{tpu_custom_call.1} parent=47 // pred_check
          %p369 = pneg %p67
        $region54: #{tpu_custom_call.1} parent=47 // pred_check_branch
          %371 = sbr.rel (%p369) target = $region56
        $region55: #{tpu_custom_call.1} parent=47 // pred_region
          %p372 = scmp.lt.s32.totalorder %s21, 3
          %s373 = scalar_select %p372, %s21, 3
          %s374 = smul.addr %s373, 2
          %s375 = smul.addr %s374, 8
          %s376 = scalar_lea.vmem %s1, %s375
        $region56: #{tpu_custom_call.1} parent=47 // pred_fallthru
          _
        // Predicated region
        $region57: #{tpu_custom_call.1} parent=47 // pred_check
          %p377 = pneg %p93
        $region58: #{tpu_custom_call.1} parent=47 // pred_check_branch
          %379 = sbr.rel (%p377) target = $region60
        $region59: #{tpu_custom_call.1} parent=47 // pred_region
          %p380 = scmp.lt.s32.totalorder %s21, 3
          %s381 = scalar_select %p380, %s21, 3
          %s382 = smul.addr %s381, 2
          %s383 = smul.addr %s382, 8
          %s384 = scalar_lea.vmem %s2, %s383
        $region60: #{tpu_custom_call.1} parent=47 // pred_fallthru
          _
        // Predicated region
        $region61: #{tpu_custom_call.1} parent=47 // pred_check
          %p385 = pneg %p119
        $region62: #{tpu_custom_call.1} parent=47 // pred_check_branch
          %387 = sbr.rel (%p385) target = $region64
        $region63: #{tpu_custom_call.1} parent=47 // pred_region
          %p388 = scmp.lt.s32.totalorder %s21, 3
          %s389 = scalar_select %p388, %s21, 3
          %s390 = smul.addr %s389, 8
          %s391 = scalar_lea.vmem %s3, %s390
        $region64: #{tpu_custom_call.1} parent=47 // pred_fallthru
          _
      $region48: #{tpu_custom_call.1} parent=5 // pred_fallthru
        _
      %p392 = scmp.le.s32.totalorder 1, %s21
      %p393 = scmp.lt.s32.totalorder %s21, 5
      %p394 = pnand %p392, %p393
      %p395 = pneg %p394
      // Predicated region
      $region65: #{tpu_custom_call.1} parent=5 // pred_check
        _
      $region66: #{tpu_custom_call.1} parent=5 // pred_check_branch
        %397 = sbr.rel (%p394) target = $region68
      $region67: #{tpu_custom_call.1} parent=5 // pred_region
        %s398 = ssub.s32 %s21, 1
        %p399 = scmp.lt.s32.totalorder %s26, 3
        %s400 = scalar_select %p399, %s26, 3
        %s401 = smul.addr %s400, 8
        %s402 = scalar_lea.vmem %s0, %s401
        %p403 = pneg %p47
        %p404 = pneg %p44
        %p405 = scmp.lt.s32.totalorder %s26, 3
        %s406 = scalar_select %p405, %s26, 3
        %s407 = smul.addr %s406, 2
        %s408 = smul.addr %s407, 8
        %s409 = scalar_lea.vmem %s1, %s408
        %p410 = pneg %p73
        %p411 = pneg %p70
        %p412 = scmp.lt.s32.totalorder %s26, 3
        %s413 = scalar_select %p412, %s26, 3
        %s414 = smul.addr %s413, 2
        %s415 = smul.addr %s414, 8
        %s416 = scalar_lea.vmem %s2, %s415
        %p417 = pneg %p99
        %p418 = pneg %p96
        %p419 = scmp.lt.s32.totalorder %s26, 3
        %s420 = scalar_select %p419, %s26, 3
        %s421 = smul.addr %s420, 8
        %s422 = scalar_lea.vmem %s3, %s421
        %p423 = pneg %p125
        %p424 = pneg %p122
        %p425 = pneg %p146
        %p426 = pneg %p143
        %p427 = pneg %p167
        %p428 = pneg %p164
        %p429 = pneg %p188
        %p430 = pneg %p185
        %p431 = pneg %p209
        %p432 = pneg %p206
        %p433 = pneg %p230
        %p434 = pneg %p227
        %p435 = pneg %p251
        %p436 = pneg %p248
        %p437 = pneg %p272
        %p438 = pneg %p269
        %p439 = pneg %p293
        %p440 = pneg %p290
        %p441 = pneg %p319
        %p442 = pneg %p316
        %s443 = sand.u32 %s306, 1
        %s444 = scalar_lea.sflag [#allocation3], %s443
        %s445 = sand.u32 %s306, 1
        %s446 = smul.addr %s445, 8
        %s447 = scalar_lea.vmem [#allocation2], %s446
        %p448 = scmp.lt.s32.totalorder %s26, 3
        %s449 = scalar_select %p448, %s26, 3
        %s450 = smul.addr %s449, 8
        %s451 = scalar_lea.vmem %s0, %s450
        %p452 = scmp.lt.s32.totalorder %s26, 3
        %s453 = scalar_select %p452, %s26, 3
        %s454 = smul.addr %s453, 2
        %s455 = smul.addr %s454, 8
        %s456 = scalar_lea.vmem %s1, %s455
        %p457 = scmp.lt.s32.totalorder %s26, 3
        %s458 = scalar_select %p457, %s26, 3
        %s459 = smul.addr %s458, 2
        %s460 = smul.addr %s459, 8
        %s461 = scalar_lea.vmem %s2, %s460
        %p462 = scmp.lt.s32.totalorder %s26, 3
        %s463 = scalar_select %p462, %s26, 3
        %s464 = smul.addr %s463, 8
        %s465 = scalar_lea.vmem %s3, %s464
        %v466 = vld [vmem:[%s11] sm:$0xff]
        %v467 = vld [vmem:[%s11 + $0x8] sm:$0x3]
        %v468 = vld [vmem:[%s451] sm:$0xff]
        %v469 = vld [vmem:[%s456] sm:$0xff]
        %v470 = vld [vmem:[%s456 + $0x8] sm:$0xff]
        %v471 = vld [vmem:[%s461] sm:$0xff]
        %v472 = vld [vmem:[%s461 + $0x8] sm:$0xff]
        %v473 = vld [vmem:[%s465] sm:$0xff]
        %v474 = vld [vmem:[%s8] sm:$0xff]
        %v475 = vld [vmem:[%s8 + $0x8] sm:$0xff]
        %v476 = vld [vmem:[%s8 + $0x10] sm:$0xff]
        %v477 = vld [vmem:[%s8 + $0x18] sm:$0xff]
        %v478 = vld [vmem:[%s8 + $0x20] sm:$0xff]
        %v479 = vld [vmem:[%s8 + $0x28] sm:$0xff]
        %v480 = vld [vmem:[%s8 + $0x30] sm:$0xff]
        %v481 = vld [vmem:[%s8 + $0x38] sm:$0xff]
        %v482 = vld [vmem:[%s8 + $0x40] sm:$0xff]
        %v483 = vld [vmem:[%s8 + $0x48] sm:$0xff]
        %v484 = vld [vmem:[%s8 + $0x50] sm:$0xff]
        %v485 = vld [vmem:[%s8 + $0x58] sm:$0xff]
        %v486 = vld [vmem:[%s8 + $0x60] sm:$0xff]
        %v487 = vld [vmem:[%s8 + $0x68] sm:$0xff]
        %v488 = vld [vmem:[%s8 + $0x70] sm:$0xff]
        %v489 = vld [vmem:[%s8 + $0x78] sm:$0xff]
        %v490 = vld [vmem:[%s8 + $0x80] sm:$0xff]
        %v491 = vld [vmem:[%s8 + $0x88] sm:$0xff]
        %v492 = vld [vmem:[%s8 + $0x90] sm:$0xff]
        %v493 = vld [vmem:[%s8 + $0x98] sm:$0xff]
        %v494 = vld [vmem:[%s8 + $0xa0] sm:$0xff]
        %v495 = vld [vmem:[%s8 + $0xa8] sm:$0xff]
        %v496 = vld [vmem:[%s8 + $0xb0] sm:$0xff]
        %v497 = vld [vmem:[%s8 + $0xb8] sm:$0xff]
        %v498 = vld [vmem:[%s8 + $0xc0] sm:$0xff]
        %v499 = vld [vmem:[%s8 + $0xc8] sm:$0xff]
        %v500 = vld [vmem:[%s8 + $0xd0] sm:$0xff]
        %v501 = vld [vmem:[%s8 + $0xd8] sm:$0xff]
        %v502 = vld [vmem:[%s8 + $0xe0] sm:$0xff]
        %v503 = vld [vmem:[%s8 + $0xe8] sm:$0xff]
        %v504 = vld [vmem:[%s8 + $0xf0] sm:$0xff]
        %v505 = vld [vmem:[%s8 + $0xf8] sm:$0xff]
        %v506 = vld [vmem:[%s9] sm:$0xff]
        %v507 = vld [vmem:[%s9 + $0x8] sm:$0xff]
        %v508 = vld [vmem:[%s9 + $0x10] sm:$0xff]
        %v509 = vld [vmem:[%s9 + $0x18] sm:$0xff]
        %v510 = vld [vmem:[%s9 + $0x20] sm:$0xff]
        %v511 = vld [vmem:[%s9 + $0x28] sm:$0xff]
        %v512 = vld [vmem:[%s9 + $0x30] sm:$0xff]
        %v513 = vld [vmem:[%s9 + $0x38] sm:$0xff]
        %v514 = vld [vmem:[%s9 + $0x40] sm:$0xff]
        %v515 = vld [vmem:[%s9 + $0x48] sm:$0xff]
        %v516 = vld [vmem:[%s9 + $0x50] sm:$0xff]
        %v517 = vld [vmem:[%s9 + $0x58] sm:$0xff]
        %v518 = vld [vmem:[%s9 + $0x60] sm:$0xff]
        %v519 = vld [vmem:[%s9 + $0x68] sm:$0xff]
        %v520 = vld [vmem:[%s9 + $0x70] sm:$0xff]
        %v521 = vld [vmem:[%s9 + $0x78] sm:$0xff]
        %v522 = vld [vmem:[%s9 + $0x80] sm:$0xff]
        %v523 = vld [vmem:[%s9 + $0x88] sm:$0xff]
        %v524 = vld [vmem:[%s9 + $0x90] sm:$0xff]
        %v525 = vld [vmem:[%s9 + $0x98] sm:$0xff]
        %v526 = vld [vmem:[%s9 + $0xa0] sm:$0xff]
        %v527 = vld [vmem:[%s9 + $0xa8] sm:$0xff]
        %v528 = vld [vmem:[%s9 + $0xb0] sm:$0xff]
        %v529 = vld [vmem:[%s9 + $0xb8] sm:$0xff]
        %v530 = vld [vmem:[%s9 + $0xc0] sm:$0xff]
        %v531 = vld [vmem:[%s9 + $0xc8] sm:$0xff]
        %v532 = vld [vmem:[%s9 + $0xd0] sm:$0xff]
        %v533 = vld [vmem:[%s9 + $0xd8] sm:$0xff]
        %v534 = vld [vmem:[%s9 + $0xe0] sm:$0xff]
        %v535 = vld [vmem:[%s9 + $0xe8] sm:$0xff]
        %v536 = vld [vmem:[%s9 + $0xf0] sm:$0xff]
        %v537 = vld [vmem:[%s9 + $0xf8] sm:$0xff]
        %v538 = vld [vmem:[%s9 + $0x100] sm:$0xff]
        %v539 = vld [vmem:[%s9 + $0x108] sm:$0xff]
        %v540 = vld [vmem:[%s9 + $0x110] sm:$0xff]
        %v541 = vld [vmem:[%s9 + $0x118] sm:$0xff]
        %v542 = vld [vmem:[%s9 + $0x120] sm:$0xff]
        %v543 = vld [vmem:[%s9 + $0x128] sm:$0xff]
        %v544 = vld [vmem:[%s9 + $0x130] sm:$0xff]
        %v545 = vld [vmem:[%s9 + $0x138] sm:$0xff]
        %v546 = vld [vmem:[%s9 + $0x140] sm:$0xff]
        %v547 = vld [vmem:[%s9 + $0x148] sm:$0xff]
        %v548 = vld [vmem:[%s9 + $0x150] sm:$0xff]
        %v549 = vld [vmem:[%s9 + $0x158] sm:$0xff]
        %v550 = vld [vmem:[%s9 + $0x160] sm:$0xff]
        %v551 = vld [vmem:[%s9 + $0x168] sm:$0xff]
        %v552 = vld [vmem:[%s9 + $0x170] sm:$0xff]
        %v553 = vld [vmem:[%s9 + $0x178] sm:$0xff]
        %v554 = vld [vmem:[%s9 + $0x180] sm:$0xff]
        %v555 = vld [vmem:[%s9 + $0x188] sm:$0xff]
        %v556 = vld [vmem:[%s9 + $0x190] sm:$0xff]
        %v557 = vld [vmem:[%s9 + $0x198] sm:$0xff]
        %v558 = vld [vmem:[%s9 + $0x1a0] sm:$0xff]
        %v559 = vld [vmem:[%s9 + $0x1a8] sm:$0xff]
        %v560 = vld [vmem:[%s9 + $0x1b0] sm:$0xff]
        %v561 = vld [vmem:[%s9 + $0x1b8] sm:$0xff]
        %v562 = vld [vmem:[%s9 + $0x1c0] sm:$0xff]
        %v563 = vld [vmem:[%s9 + $0x1c8] sm:$0xff]
        %v564 = vld [vmem:[%s9 + $0x1d0] sm:$0xff]
        %v565 = vld [vmem:[%s9 + $0x1d8] sm:$0xff]
        %v566 = vld [vmem:[%s9 + $0x1e0] sm:$0xff]
        %v567 = vld [vmem:[%s9 + $0x1e8] sm:$0xff]
        %v568 = vld [vmem:[%s9 + $0x1f0] sm:$0xff]
        %v569 = vld [vmem:[%s9 + $0x1f8] sm:$0xff]
        %v570 = vld [vmem:[%s9 + $0x200] sm:$0xff]
        %v571 = vld [vmem:[%s9 + $0x208] sm:$0xff]
        %v572 = vld [vmem:[%s9 + $0x210] sm:$0xff]
        %v573 = vld [vmem:[%s9 + $0x218] sm:$0xff]
        %v574 = vld [vmem:[%s9 + $0x220] sm:$0xff]
        %v575 = vld [vmem:[%s9 + $0x228] sm:$0xff]
        %v576 = vld [vmem:[%s9 + $0x230] sm:$0xff]
        %v577 = vld [vmem:[%s9 + $0x238] sm:$0xff]
        %v578 = vld [vmem:[%s9 + $0x240] sm:$0xff]
        %v579 = vld [vmem:[%s9 + $0x248] sm:$0xff]
        %v580 = vld [vmem:[%s9 + $0x250] sm:$0xff]
        %v581 = vld [vmem:[%s9 + $0x258] sm:$0xff]
        %v582 = vld [vmem:[%s9 + $0x260] sm:$0xff]
        %v583 = vld [vmem:[%s9 + $0x268] sm:$0xff]
        %v584 = vld [vmem:[%s9 + $0x270] sm:$0xff]
        %v585 = vld [vmem:[%s9 + $0x278] sm:$0xff]
        %v586 = vld [vmem:[%s9 + $0x280] sm:$0xff]
        %v587 = vld [vmem:[%s9 + $0x288] sm:$0xff]
        %v588 = vld [vmem:[%s9 + $0x290] sm:$0xff]
        %v589 = vld [vmem:[%s9 + $0x298] sm:$0xff]
        %v590 = vld [vmem:[%s9 + $0x2a0] sm:$0xff]
        %v591 = vld [vmem:[%s9 + $0x2a8] sm:$0xff]
        %v592 = vld [vmem:[%s9 + $0x2b0] sm:$0xff]
        %v593 = vld [vmem:[%s9 + $0x2b8] sm:$0xff]
        %v594 = vld [vmem:[%s9 + $0x2c0] sm:$0xff]
        %v595 = vld [vmem:[%s9 + $0x2c8] sm:$0xff]
        %v596 = vld [vmem:[%s9 + $0x2d0] sm:$0xff]
        %v597 = vld [vmem:[%s9 + $0x2d8] sm:$0xff]
        %v598 = vld [vmem:[%s9 + $0x2e0] sm:$0xff]
        %v599 = vld [vmem:[%s9 + $0x2e8] sm:$0xff]
        %v600 = vld [vmem:[%s9 + $0x2f0] sm:$0xff]
        %v601 = vld [vmem:[%s9 + $0x2f8] sm:$0xff]
        %v602 = vld [vmem:[%s9 + $0x300] sm:$0xff]
        %v603 = vld [vmem:[%s9 + $0x308] sm:$0xff]
        %v604 = vld [vmem:[%s9 + $0x310] sm:$0xff]
        %v605 = vld [vmem:[%s9 + $0x318] sm:$0xff]
        %v606 = vld [vmem:[%s9 + $0x320] sm:$0xff]
        %v607 = vld [vmem:[%s9 + $0x328] sm:$0xff]
        %v608 = vld [vmem:[%s9 + $0x330] sm:$0xff]
        %v609 = vld [vmem:[%s9 + $0x338] sm:$0xff]
        %v610 = vld [vmem:[%s9 + $0x340] sm:$0xff]
        %v611 = vld [vmem:[%s9 + $0x348] sm:$0xff]
        %v612 = vld [vmem:[%s9 + $0x350] sm:$0xff]
        %v613 = vld [vmem:[%s9 + $0x358] sm:$0xff]
        %v614 = vld [vmem:[%s9 + $0x360] sm:$0xff]
        %v615 = vld [vmem:[%s9 + $0x368] sm:$0xff]
        %v616 = vld [vmem:[%s9 + $0x370] sm:$0xff]
        %v617 = vld [vmem:[%s9 + $0x378] sm:$0xff]
        %v618 = vld [vmem:[%s9 + $0x380] sm:$0xff]
        %v619 = vld [vmem:[%s9 + $0x388] sm:$0xff]
        %v620 = vld [vmem:[%s9 + $0x390] sm:$0xff]
        %v621 = vld [vmem:[%s9 + $0x398] sm:$0xff]
        %v622 = vld [vmem:[%s9 + $0x3a0] sm:$0xff]
        %v623 = vld [vmem:[%s9 + $0x3a8] sm:$0xff]
        %v624 = vld [vmem:[%s9 + $0x3b0] sm:$0xff]
        %v625 = vld [vmem:[%s9 + $0x3b8] sm:$0xff]
        %v626 = vld [vmem:[%s9 + $0x3c0] sm:$0xff]
        %v627 = vld [vmem:[%s9 + $0x3c8] sm:$0xff]
        %v628 = vld [vmem:[%s9 + $0x3d0] sm:$0xff]
        %v629 = vld [vmem:[%s9 + $0x3d8] sm:$0xff]
        %v630 = vld [vmem:[%s9 + $0x3e0] sm:$0xff]
        %v631 = vld [vmem:[%s9 + $0x3e8] sm:$0xff]
        %v632 = vld [vmem:[%s9 + $0x3f0] sm:$0xff]
        %v633 = vld [vmem:[%s9 + $0x3f8] sm:$0xff]
        %v634 = vld [vmem:[%s10] sm:$0xff]
        %v635 = vld [vmem:[%s10 + $0x8] sm:$0xff]
        %v636 = vld [vmem:[%s10 + $0x10] sm:$0xff]
        %v637 = vld [vmem:[%s10 + $0x18] sm:$0xff]
        %v638 = vld [vmem:[%s10 + $0x20] sm:$0xff]
        %v639 = vld [vmem:[%s10 + $0x28] sm:$0xff]
        %v640 = vld [vmem:[%s10 + $0x30] sm:$0xff]
        %v641 = vld [vmem:[%s10 + $0x38] sm:$0xff]
        %v642 = vld [vmem:[%s4] sm:$0xff]
        %v643 = vld [vmem:[%s4 + $0x8] sm:$0xff]
        %v645 = vlaneseq
        %v646 = vshrl.u32 %v645, 7
        %v647 = vsub.s32 0, %v646
        %v648 = vrot.slane %v466, %v647
        %vm650 = vcmask 130048
        %v652 = vsel %vm650, %v468, 0
        %654 = vmatprep.subr.mxu0 0.0
        %655 = vmatpush1.msra.mxu0 %v642
        %656 = vmatprep.subr.mxu0 0.0
        %657 = vmatpush1.msra.mxu0 %v643
        %658 = vmatprep.subr.mxu0 0.0
        %659 = vmatpush1.msra.mxu0 0.0
        %660 = vmatprep.subr.mxu0 0.0
        %661 = vmatpush1.msra.mxu0 0.0
        %662 = vmatprep.subr.mxu0 0.0
        %663 = vmatpush1.msra.mxu0 0.0
        %664 = vmatprep.subr.mxu0 0.0
        %665 = vmatpush1.msra.mxu0 0.0
        %666 = vmatprep.subr.mxu0 0.0
        %667 = vmatpush1.msra.mxu0 0.0
        %668 = vmatprep.subr.mxu0 0.0
        %669 = vmatpush1.msra.mxu0 0.0
        %670 = vmatprep.subr.mxu0 0.0
        %671 = vmatpush1.msra.mxu0 0.0
        %672 = vmatprep.subr.mxu0 0.0
        %673 = vmatpush1.msra.mxu0 0.0
        %674 = vmatprep.subr.mxu0 0.0
        %675 = vmatpush1.msra.mxu0 0.0
        %676 = vmatprep.subr.mxu0 0.0
        %677 = vmatpush1.msra.mxu0 0.0
        %678 = vmatprep.subr.mxu0 0.0
        %679 = vmatpush1.msra.mxu0 0.0
        %680 = vmatprep.subr.mxu0 0.0
        %681 = vmatpush1.msra.mxu0 0.0
        %682 = vmatprep.subr.mxu0 0.0
        %683 = vmatpush1.msra.mxu0 0.0
        %684 = vmatprep.subr.mxu0 0.0
        %685 = vmatpush1.msra.mxu0 0.0
        %686 = vmatprep.subr.mxu0 0.0
        %687 = vmatpush1.msra.mxu0 0.0
        %688 = vmatprep.subr.mxu0 0.0
        %689 = vmatpush1.msra.mxu0 0.0
        %690 = vmatprep.subr.mxu0 0.0
        %691 = vmatpush1.msra.mxu0 0.0
        %692 = vmatprep.subr.mxu0 0.0
        %693 = vmatpush1.msra.mxu0 0.0
        %694 = vmatprep.subr.mxu0 0.0
        %695 = vmatpush1.msra.mxu0 0.0
        %696 = vmatprep.subr.mxu0 0.0
        %697 = vmatpush1.msra.mxu0 0.0
        %698 = vmatprep.subr.mxu0 0.0
        %699 = vmatpush1.msra.mxu0 0.0
        %700 = vmatprep.subr.mxu0 0.0
        %701 = vmatpush1.msra.mxu0 0.0
        %702 = vmatprep.subr.mxu0 0.0
        %703 = vmatpush1.msra.mxu0 0.0
        %704 = vmatprep.subr.mxu0 0.0
        %705 = vmatpush1.msra.mxu0 0.0
        %706 = vmatprep.subr.mxu0 0.0
        %707 = vmatpush1.msra.mxu0 0.0
        %708 = vmatprep.subr.mxu0 0.0
        %709 = vmatpush1.msra.mxu0 0.0
        %710 = vmatprep.subr.mxu0 0.0
        %711 = vmatpush1.msra.mxu0 0.0
        %712 = vmatprep.subr.mxu0 0.0
        %713 = vmatpush1.msra.mxu0 0.0
        %714 = vmatprep.subr.mxu0 0.0
        %715 = vmatpush1.msra.mxu0 0.0
        %716 = vmatprep.subr.mxu0 0.0
        %717 = vmatpush1.msra.mxu0 0.0
        %718 = vmatprep.mubr.f32.mxu0 0.0
        %719 = vmatmul.mubr.f32.gmra.mrb[0].mxu0 %v652
        %v720 = vpop.f32.mrb[0].mxu0
        %v721 = vadd.f32 %v648, %v720
        %v722 = vpop.f32.mrb[0].mxu0
        %723 = vdwg.mxu0
        %v724 = vld [vmem:[%s5] sm:$0xff]
        %725 = vrot.lane.b32.xlu0 %v648, 96
        %v726 = vpop.permute.xlu0 %725
        %vm728 = vcmask 64512
        %v730 = vsel %vm728, %v469, 0
        %v733 = vsel %vm728, %v470, 0
        %735 = vmatprep.subr.mxu0 0.0
        %736 = vmatpush1.msra.mxu0 %v724
        %737 = vmatprep.subr.mxu0 0.0
        %738 = vmatpush1.msra.mxu0 0.0
        %739 = vmatprep.subr.mxu0 0.0
        %740 = vmatpush1.msra.mxu0 0.0
        %741 = vmatprep.subr.mxu0 0.0
        %742 = vmatpush1.msra.mxu0 0.0
        %743 = vmatprep.subr.mxu0 0.0
        %744 = vmatpush1.msra.mxu0 0.0
        %745 = vmatprep.subr.mxu0 0.0
        %746 = vmatpush1.msra.mxu0 0.0
        %747 = vmatprep.subr.mxu0 0.0
        %748 = vmatpush1.msra.mxu0 0.0
        %749 = vmatprep.subr.mxu0 0.0
        %750 = vmatpush1.msra.mxu0 0.0
        %751 = vmatprep.subr.mxu0 0.0
        %752 = vmatpush1.msra.mxu0 0.0
        %753 = vmatprep.subr.mxu0 0.0
        %754 = vmatpush1.msra.mxu0 0.0
        %755 = vmatprep.subr.mxu0 0.0
        %756 = vmatpush1.msra.mxu0 0.0
        %757 = vmatprep.subr.mxu0 0.0
        %758 = vmatpush1.msra.mxu0 0.0
        %759 = vmatprep.subr.mxu0 0.0
        %760 = vmatpush1.msra.mxu0 0.0
        %761 = vmatprep.subr.mxu0 0.0
        %762 = vmatpush1.msra.mxu0 0.0
        %763 = vmatprep.subr.mxu0 0.0
        %764 = vmatpush1.msra.mxu0 0.0
        %765 = vmatprep.subr.mxu0 0.0
        %766 = vmatpush1.msra.mxu0 0.0
        %767 = vmatprep.subr.mxu0 0.0
        %768 = vmatpush1.msra.mxu0 0.0
        %769 = vmatprep.subr.mxu0 0.0
        %770 = vmatpush1.msra.mxu0 0.0
        %771 = vmatprep.subr.mxu0 0.0
        %772 = vmatpush1.msra.mxu0 0.0
        %773 = vmatprep.subr.mxu0 0.0
        %774 = vmatpush1.msra.mxu0 0.0
        %775 = vmatprep.subr.mxu0 0.0
        %776 = vmatpush1.msra.mxu0 0.0
        %777 = vmatprep.subr.mxu0 0.0
        %778 = vmatpush1.msra.mxu0 0.0
        %779 = vmatprep.subr.mxu0 0.0
        %780 = vmatpush1.msra.mxu0 0.0
        %781 = vmatprep.subr.mxu0 0.0
        %782 = vmatpush1.msra.mxu0 0.0
        %783 = vmatprep.subr.mxu0 0.0
        %784 = vmatpush1.msra.mxu0 0.0
        %785 = vmatprep.subr.mxu0 0.0
        %786 = vmatpush1.msra.mxu0 0.0
        %787 = vmatprep.subr.mxu0 0.0
        %788 = vmatpush1.msra.mxu0 0.0
        %789 = vmatprep.subr.mxu0 0.0
        %790 = vmatpush1.msra.mxu0 0.0
        %791 = vmatprep.subr.mxu0 0.0
        %792 = vmatpush1.msra.mxu0 0.0
        %793 = vmatprep.subr.mxu0 0.0
        %794 = vmatpush1.msra.mxu0 0.0
        %795 = vmatprep.subr.mxu0 0.0
        %796 = vmatpush1.msra.mxu0 0.0
        %797 = vmatprep.subr.mxu0 0.0
        %798 = vmatpush1.msra.mxu0 0.0
        %799 = vmatprep.mubr.f32.mxu0 0.0
        %800 = vmatmul.mubr.f32.gmra.mrb[0].mxu0 %v730
        %v801 = vpop.f32.mrb[0].mxu0
        %v802 = vadd.f32 %v726, %v801
        %v803 = vpop.f32.mrb[0].mxu0
        %804 = vmatprep.mubr.f32.mxu0 0.0
        %805 = vmatmul.mubr.f32.gmra.mrb[0].mxu0 %v733
        %v806 = vpop.f32.mrb[0].mxu0
        %v807 = vadd.f32 %v726, %v806
        %v808 = vpop.f32.mrb[0].mxu0
        %809 = vdwg.mxu0
        %v810 = vld [vmem:[%s6] sm:$0xff]
        %v811 = vld [vmem:[%s6 + $0x8] sm:$0xff]
        %812 = vrot.lane.b32.xlu0 %v648, 80
        %v813 = vpop.permute.xlu0 %812
        %v816 = vsel %vm650, %v802, 0
        %v819 = vsel %vm650, %v807, 0
        %821 = vmatprep.subr.mxu0 0.0
        %822 = vmatpush1.msra.mxu0 %v810
        %823 = vmatprep.subr.mxu0 0.0
        %824 = vmatpush1.msra.mxu0 %v811
        %825 = vmatprep.subr.mxu0 0.0
        %826 = vmatpush1.msra.mxu0 0.0
        %827 = vmatprep.subr.mxu0 0.0
        %828 = vmatpush1.msra.mxu0 0.0
        %829 = vmatprep.subr.mxu0 0.0
        %830 = vmatpush1.msra.mxu0 0.0
        %831 = vmatprep.subr.mxu0 0.0
        %832 = vmatpush1.msra.mxu0 0.0
        %833 = vmatprep.subr.mxu0 0.0
        %834 = vmatpush1.msra.mxu0 0.0
        %835 = vmatprep.subr.mxu0 0.0
        %836 = vmatpush1.msra.mxu0 0.0
        %837 = vmatprep.subr.mxu0 0.0
        %838 = vmatpush1.msra.mxu0 0.0
        %839 = vmatprep.subr.mxu0 0.0
        %840 = vmatpush1.msra.mxu0 0.0
        %841 = vmatprep.subr.mxu0 0.0
        %842 = vmatpush1.msra.mxu0 0.0
        %843 = vmatprep.subr.mxu0 0.0
        %844 = vmatpush1.msra.mxu0 0.0
        %845 = vmatprep.subr.mxu0 0.0
        %846 = vmatpush1.msra.mxu0 0.0
        %847 = vmatprep.subr.mxu0 0.0
        %848 = vmatpush1.msra.mxu0 0.0
        %849 = vmatprep.subr.mxu0 0.0
        %850 = vmatpush1.msra.mxu0 0.0
        %851 = vmatprep.subr.mxu0 0.0
        %852 = vmatpush1.msra.mxu0 0.0
        %853 = vmatprep.subr.mxu0 0.0
        %854 = vmatpush1.msra.mxu0 0.0
        %855 = vmatprep.subr.mxu0 0.0
        %856 = vmatpush1.msra.mxu0 0.0
        %857 = vmatprep.subr.mxu0 0.0
        %858 = vmatpush1.msra.mxu0 0.0
        %859 = vmatprep.subr.mxu0 0.0
        %860 = vmatpush1.msra.mxu0 0.0
        %861 = vmatprep.subr.mxu0 0.0
        %862 = vmatpush1.msra.mxu0 0.0
        %863 = vmatprep.subr.mxu0 0.0
        %864 = vmatpush1.msra.mxu0 0.0
        %865 = vmatprep.subr.mxu0 0.0
        %866 = vmatpush1.msra.mxu0 0.0
        %867 = vmatprep.subr.mxu0 0.0
        %868 = vmatpush1.msra.mxu0 0.0
        %869 = vmatprep.subr.mxu0 0.0
        %870 = vmatpush1.msra.mxu0 0.0
        %871 = vmatprep.subr.mxu0 0.0
        %872 = vmatpush1.msra.mxu0 0.0
        %873 = vmatprep.subr.mxu0 0.0
        %874 = vmatpush1.msra.mxu0 0.0
        %875 = vmatprep.subr.mxu0 0.0
        %876 = vmatpush1.msra.mxu0 0.0
        %877 = vmatprep.subr.mxu0 0.0
        %878 = vmatpush1.msra.mxu0 0.0
        %879 = vmatprep.subr.mxu0 0.0
        %880 = vmatpush1.msra.mxu0 0.0
        %881 = vmatprep.subr.mxu0 0.0
        %882 = vmatpush1.msra.mxu0 0.0
        %883 = vmatprep.subr.mxu0 0.0
        %884 = vmatpush1.msra.mxu0 0.0
        %885 = vmatprep.mubr.f32.mxu0 0.0
        %886 = vmatmul.mubr.f32.gmra.mrb[0].mxu0 %v816
        %v887 = vpop.f32.mrb[0].mxu0
        %v888 = vadd.f32 %v813, %v887
        %v889 = vpop.f32.mrb[0].mxu0
        %890 = vmatprep.mubr.f32.mxu0 0.0
        %891 = vmatmul.mubr.f32.gmra.mrb[0].mxu0 %v819
        %v892 = vpop.f32.mrb[0].mxu0
        %v893 = vadd.f32 %v813, %v892
        %v894 = vpop.f32.mrb[0].mxu0
        %895 = vdwg.mxu0
        %vm896 = vcmp.ge.f32.partialorder %v888, 0.0
        %vm897 = vcmp.ge.f32.partialorder %v893, 0.0
        %v898 = vmul.f32 %v888, 0.8
        %v899 = vmul.f32 %v893, 0.8
        %v900 = vsel %vm896, %v888, %v898
        %v901 = vsel %vm897, %v893, %v899
        %v902 = vld [vmem:[%s7] sm:$0xff]
        %v903 = vld [vmem:[%s7 + $0x8] sm:$0xff]
        %v904 = vld [vmem:[%s7 + $0x10] sm:$0xff]
        %v905 = vld [vmem:[%s7 + $0x18] sm:$0xff]
        %v906 = vld [vmem:[%s7 + $0x20] sm:$0xff]
        %v907 = vld [vmem:[%s7 + $0x28] sm:$0xff]
        %v908 = vld [vmem:[%s7 + $0x30] sm:$0xff]
        %v909 = vld [vmem:[%s7 + $0x38] sm:$0xff]
        %v910 = vld [vmem:[%s7 + $0x40] sm:$0xff]
        %v911 = vld [vmem:[%s7 + $0x48] sm:$0xff]
        %v912 = vld [vmem:[%s7 + $0x50] sm:$0xff]
        %v913 = vld [vmem:[%s7 + $0x58] sm:$0xff]
        %v914 = vld [vmem:[%s7 + $0x60] sm:$0xff]
        %v915 = vld [vmem:[%s7 + $0x68] sm:$0xff]
        %v916 = vld [vmem:[%s7 + $0x70] sm:$0xff]
        %v917 = vld [vmem:[%s7 + $0x78] sm:$0xff]
        %v919 = vlaneseq
        %v920 = vshrl.u32 %v919, 7
        %v921 = vsub.s32 1, %v920
        %v922 = vrot.slane %v466, %v921
        %v923 = vlaneseq
        %v924 = vshrl.u32 %v923, 7
        %v925 = vsub.s32 2, %v924
        %v926 = vrot.slane %v466, %v925
        %v927 = vlaneseq
        %v928 = vshrl.u32 %v927, 7
        %v929 = vsub.s32 3, %v928
        %v930 = vrot.slane %v466, %v929
        %v931 = vlaneseq
        %v932 = vshrl.u32 %v931, 7
        %v933 = vsub.s32 4, %v932
        %v934 = vrot.slane %v466, %v933
        %v935 = vlaneseq
        %v936 = vshrl.u32 %v935, 7
        %v937 = vsub.s32 5, %v936
        %v938 = vrot.slane %v466, %v937
        %v939 = vlaneseq
        %v940 = vshrl.u32 %v939, 7
        %v941 = vsub.s32 6, %v940
        %v942 = vrot.slane %v466, %v941
        %v943 = vlaneseq
        %v944 = vshrl.u32 %v943, 7
        %v945 = vsub.s32 7, %v944
        %v946 = vrot.slane %v466, %v945
        %v947 = vlaneseq
        %v948 = vshrl.u32 %v947, 7
        %v949 = vsub.s32 0, %v948
        %v950 = vrot.slane %v467, %v949
        %951 = vrot.lane.b32.xlu0 %v648, 64
        %v952 = vpop.permute.xlu0 %951
        %953 = vrot.lane.b32.xlu0 %v922, 64
        %v954 = vpop.permute.xlu0 %953
        %955 = vrot.lane.b32.xlu0 %v926, 64
        %v956 = vpop.permute.xlu0 %955
        %957 = vrot.lane.b32.xlu0 %v930, 64
        %v958 = vpop.permute.xlu0 %957
        %959 = vrot.lane.b32.xlu0 %v934, 64
        %v960 = vpop.permute.xlu0 %959
        %961 = vrot.lane.b32.xlu0 %v938, 64
        %v962 = vpop.permute.xlu0 %961
        %963 = vrot.lane.b32.xlu0 %v942, 64
        %v964 = vpop.permute.xlu0 %963
        %965 = vrot.lane.b32.xlu0 %v946, 64
        %v966 = vpop.permute.xlu0 %965
        %967 = vrot.lane.b32.xlu0 %v950, 64
        %v968 = vpop.permute.xlu0 %967
        %vm969 = vcmask 523264
        %v970 = vsel %vm969, %v952, %v954
        %v971 = vsel %vm969, %v954, %v956
        %v972 = vsel %vm969, %v956, %v958
        %v973 = vsel %vm969, %v958, %v960
        %v974 = vsel %vm969, %v960, %v962
        %v975 = vsel %vm969, %v962, %v964
        %v976 = vsel %vm969, %v964, %v966
        %v977 = vsel %vm969, %v966, %v968
        %v987 = vsel %vm650, %v900, 0
        %v990 = vsel %vm650, %v901, 0
        %992 = vmatprep.subr.mxu0 %v903
        %993 = vmatpush1.msra.mxu0 %v902
        %994 = vmatprep.subr.mxu0 %v911
        %995 = vmatpush1.msra.mxu0 %v910
        %996 = vmatprep.subr.mxu0 0.0
        %997 = vmatpush1.msra.mxu0 0.0
        %998 = vmatprep.subr.mxu0 0.0
        %999 = vmatpush1.msra.mxu0 0.0
        %1000 = vmatprep.subr.mxu0 0.0
        %1001 = vmatpush1.msra.mxu0 0.0
        %1002 = vmatprep.subr.mxu0 0.0
        %1003 = vmatpush1.msra.mxu0 0.0
        %1004 = vmatprep.subr.mxu0 0.0
        %1005 = vmatpush1.msra.mxu0 0.0
        %1006 = vmatprep.subr.mxu0 0.0
        %1007 = vmatpush1.msra.mxu0 0.0
        %1008 = vmatprep.subr.mxu0 0.0
        %1009 = vmatpush1.msra.mxu0 0.0
        %1010 = vmatprep.subr.mxu0 0.0
        %1011 = vmatpush1.msra.mxu0 0.0
        %1012 = vmatprep.subr.mxu0 0.0
        %1013 = vmatpush1.msra.mxu0 0.0
        %1014 = vmatprep.subr.mxu0 0.0
        %1015 = vmatpush1.msra.mxu0 0.0
        %1016 = vmatprep.subr.mxu0 0.0
        %1017 = vmatpush1.msra.mxu0 0.0
        %1018 = vmatprep.subr.mxu0 0.0
        %1019 = vmatpush1.msra.mxu0 0.0
        %1020 = vmatprep.subr.mxu0 0.0
        %1021 = vmatpush1.msra.mxu0 0.0
        %1022 = vmatprep.subr.mxu0 0.0
        %1023 = vmatpush1.msra.mxu0 0.0
        %1024 = vmatprep.subr.mxu0 0.0
        %1025 = vmatpush1.msra.mxu0 0.0
        %1026 = vmatprep.subr.mxu0 0.0
        %1027 = vmatpush1.msra.mxu0 0.0
        %1028 = vmatprep.subr.mxu0 0.0
        %1029 = vmatpush1.msra.mxu0 0.0
        %1030 = vmatprep.subr.mxu0 0.0
        %1031 = vmatpush1.msra.mxu0 0.0
        %1032 = vmatprep.subr.mxu0 0.0
        %1033 = vmatpush1.msra.mxu0 0.0
        %1034 = vmatprep.subr.mxu0 0.0
        %1035 = vmatpush1.msra.mxu0 0.0
        %1036 = vmatprep.subr.mxu0 0.0
        %1037 = vmatpush1.msra.mxu0 0.0
        %1038 = vmatprep.subr.mxu0 0.0
        %1039 = vmatpush1.msra.mxu0 0.0
        %1040 = vmatprep.subr.mxu0 0.0
        %1041 = vmatpush1.msra.mxu0 0.0
        %1042 = vmatprep.subr.mxu0 0.0
        %1043 = vmatpush1.msra.mxu0 0.0
        %1044 = vmatprep.subr.mxu0 0.0
        %1045 = vmatpush1.msra.mxu0 0.0
        %1046 = vmatprep.subr.mxu0 0.0
        %1047 = vmatpush1.msra.mxu0 0.0
        %1048 = vmatprep.subr.mxu0 0.0
        %1049 = vmatpush1.msra.mxu0 0.0
        %1050 = vmatprep.subr.mxu0 0.0
        %1051 = vmatpush1.msra.mxu0 0.0
        %1052 = vmatprep.subr.mxu0 0.0
        %1053 = vmatpush1.msra.mxu0 0.0
        %1054 = vmatprep.subr.mxu0 0.0
        %1055 = vmatpush1.msra.mxu0 0.0
        %1056 = vmatprep.mubr.f32.mxu0 0.0
        %1057 = vmatmul.mubr.f32.gmra.mrb[0].mxu0 %v987
        %v1058 = vpop.f32.mrb[0].mxu0
        %v1059 = vadd.f32 %v970, %v1058
        %v1060 = vpop.f32.mrb[0].mxu0
        %v1061 = vadd.f32 %v971, %v1060
        %1062 = vmatprep.mubr.f32.mxu0 0.0
        %1063 = vmatmul.mubr.f32.gmra.mrb[0].mxu0 %v990
        %v1064 = vpop.f32.mrb[0].mxu0
        %v1065 = vadd.f32 %v970, %v1064
        %v1066 = vpop.f32.mrb[0].mxu0
        %v1067 = vadd.f32 %v971, %v1066
        %1068 = vdwg.mxu0
        %1069 = vmatprep.subr.mxu0 %v905
        %1070 = vmatpush1.msra.mxu0 %v904
        %1071 = vmatprep.subr.mxu0 %v913
        %1072 = vmatpush1.msra.mxu0 %v912
        %1073 = vmatprep.subr.mxu0 0.0
        %1074 = vmatpush1.msra.mxu0 0.0
        %1075 = vmatprep.subr.mxu0 0.0
        %1076 = vmatpush1.msra.mxu0 0.0
        %1077 = vmatprep.subr.mxu0 0.0
        %1078 = vmatpush1.msra.mxu0 0.0
        %1079 = vmatprep.subr.mxu0 0.0
        %1080 = vmatpush1.msra.mxu0 0.0
        %1081 = vmatprep.subr.mxu0 0.0
        %1082 = vmatpush1.msra.mxu0 0.0
        %1083 = vmatprep.subr.mxu0 0.0
        %1084 = vmatpush1.msra.mxu0 0.0
        %1085 = vmatprep.subr.mxu0 0.0
        %1086 = vmatpush1.msra.mxu0 0.0
        %1087 = vmatprep.subr.mxu0 0.0
        %1088 = vmatpush1.msra.mxu0 0.0
        %1089 = vmatprep.subr.mxu0 0.0
        %1090 = vmatpush1.msra.mxu0 0.0
        %1091 = vmatprep.subr.mxu0 0.0
        %1092 = vmatpush1.msra.mxu0 0.0
        %1093 = vmatprep.subr.mxu0 0.0
        %1094 = vmatpush1.msra.mxu0 0.0
        %1095 = vmatprep.subr.mxu0 0.0
        %1096 = vmatpush1.msra.mxu0 0.0
        %1097 = vmatprep.subr.mxu0 0.0
        %1098 = vmatpush1.msra.mxu0 0.0
        %1099 = vmatprep.subr.mxu0 0.0
        %1100 = vmatpush1.msra.mxu0 0.0
        %1101 = vmatprep.subr.mxu0 0.0
        %1102 = vmatpush1.msra.mxu0 0.0
        %1103 = vmatprep.subr.mxu0 0.0
        %1104 = vmatpush1.msra.mxu0 0.0
        %1105 = vmatprep.subr.mxu0 0.0
        %1106 = vmatpush1.msra.mxu0 0.0
        %1107 = vmatprep.subr.mxu0 0.0
        %1108 = vmatpush1.msra.mxu0 0.0
        %1109 = vmatprep.subr.mxu0 0.0
        %1110 = vmatpush1.msra.mxu0 0.0
        %1111 = vmatprep.subr.mxu0 0.0
        %1112 = vmatpush1.msra.mxu0 0.0
        %1113 = vmatprep.subr.mxu0 0.0
        %1114 = vmatpush1.msra.mxu0 0.0
        %1115 = vmatprep.subr.mxu0 0.0
        %1116 = vmatpush1.msra.mxu0 0.0
        %1117 = vmatprep.subr.mxu0 0.0
        %1118 = vmatpush1.msra.mxu0 0.0
        %1119 = vmatprep.subr.mxu0 0.0
        %1120 = vmatpush1.msra.mxu0 0.0
        %1121 = vmatprep.subr.mxu0 0.0
        %1122 = vmatpush1.msra.mxu0 0.0
        %1123 = vmatprep.subr.mxu0 0.0
        %1124 = vmatpush1.msra.mxu0 0.0
        %1125 = vmatprep.subr.mxu0 0.0
        %1126 = vmatpush1.msra.mxu0 0.0
        %1127 = vmatprep.subr.mxu0 0.0
        %1128 = vmatpush1.msra.mxu0 0.0
        %1129 = vmatprep.subr.mxu0 0.0
        %1130 = vmatpush1.msra.mxu0 0.0
        %1131 = vmatprep.subr.mxu0 0.0
        %1132 = vmatpush1.msra.mxu0 0.0
        %1133 = vmatprep.mubr.f32.mxu0 0.0
        %1134 = vmatmul.mubr.f32.gmra.mrb[0].mxu0 %v987
        %v1135 = vpop.f32.mrb[0].mxu0
        %v1136 = vadd.f32 %v972, %v1135
        %v1137 = vpop.f32.mrb[0].mxu0
        %v1138 = vadd.f32 %v973, %v1137
        %1139 = vmatprep.mubr.f32.mxu0 0.0
        %1140 = vmatmul.mubr.f32.gmra.mrb[0].mxu0 %v990
        %v1141 = vpop.f32.mrb[0].mxu0
        %v1142 = vadd.f32 %v972, %v1141
        %v1143 = vpop.f32.mrb[0].mxu0
        %v1144 = vadd.f32 %v973, %v1143
        %1145 = vdwg.mxu0
        %1146 = vmatprep.subr.mxu0 %v907
        %1147 = vmatpush1.msra.mxu0 %v906
        %1148 = vmatprep.subr.mxu0 %v915
        %1149 = vmatpush1.msra.mxu0 %v914
        %1150 = vmatprep.subr.mxu0 0.0
        %1151 = vmatpush1.msra.mxu0 0.0
        %1152 = vmatprep.subr.mxu0 0.0
        %1153 = vmatpush1.msra.mxu0 0.0
        %1154 = vmatprep.subr.mxu0 0.0
        %1155 = vmatpush1.msra.mxu0 0.0
        %1156 = vmatprep.subr.mxu0 0.0
        %1157 = vmatpush1.msra.mxu0 0.0
        %1158 = vmatprep.subr.mxu0 0.0
        %1159 = vmatpush1.msra.mxu0 0.0
        %1160 = vmatprep.subr.mxu0 0.0
        %1161 = vmatpush1.msra.mxu0 0.0
        %1162 = vmatprep.subr.mxu0 0.0
        %1163 = vmatpush1.msra.mxu0 0.0
        %1164 = vmatprep.subr.mxu0 0.0
        %1165 = vmatpush1.msra.mxu0 0.0
        %1166 = vmatprep.subr.mxu0 0.0
        %1167 = vmatpush1.msra.mxu0 0.0
        %1168 = vmatprep.subr.mxu0 0.0
        %1169 = vmatpush1.msra.mxu0 0.0
        %1170 = vmatprep.subr.mxu0 0.0
        %1171 = vmatpush1.msra.mxu0 0.0
        %1172 = vmatprep.subr.mxu0 0.0
        %1173 = vmatpush1.msra.mxu0 0.0
        %1174 = vmatprep.subr.mxu0 0.0
        %1175 = vmatpush1.msra.mxu0 0.0
        %1176 = vmatprep.subr.mxu0 0.0
        %1177 = vmatpush1.msra.mxu0 0.0
        %1178 = vmatprep.subr.mxu0 0.0
        %1179 = vmatpush1.msra.mxu0 0.0
        %1180 = vmatprep.subr.mxu0 0.0
        %1181 = vmatpush1.msra.mxu0 0.0
        %1182 = vmatprep.subr.mxu0 0.0
        %1183 = vmatpush1.msra.mxu0 0.0
        %1184 = vmatprep.subr.mxu0 0.0
        %1185 = vmatpush1.msra.mxu0 0.0
        %1186 = vmatprep.subr.mxu0 0.0
        %1187 = vmatpush1.msra.mxu0 0.0
        %1188 = vmatprep.subr.mxu0 0.0
        %1189 = vmatpush1.msra.mxu0 0.0
        %1190 = vmatprep.subr.mxu0 0.0
        %1191 = vmatpush1.msra.mxu0 0.0
        %1192 = vmatprep.subr.mxu0 0.0
        %1193 = vmatpush1.msra.mxu0 0.0
        %1194 = vmatprep.subr.mxu0 0.0
        %1195 = vmatpush1.msra.mxu0 0.0
        %1196 = vmatprep.subr.mxu0 0.0
        %1197 = vmatpush1.msra.mxu0 0.0
        %1198 = vmatprep.subr.mxu0 0.0
        %1199 = vmatpush1.msra.mxu0 0.0
        %1200 = vmatprep.subr.mxu0 0.0
        %1201 = vmatpush1.msra.mxu0 0.0
        %1202 = vmatprep.subr.mxu0 0.0
        %1203 = vmatpush1.msra.mxu0 0.0
        %1204 = vmatprep.subr.mxu0 0.0
        %1205 = vmatpush1.msra.mxu0 0.0
        %1206 = vmatprep.subr.mxu0 0.0
        %1207 = vmatpush1.msra.mxu0 0.0
        %1208 = vmatprep.subr.mxu0 0.0
        %1209 = vmatpush1.msra.mxu0 0.0
        %1210 = vmatprep.mubr.f32.mxu0 0.0
        %1211 = vmatmul.mubr.f32.gmra.mrb[0].mxu0 %v987
        %v1212 = vpop.f32.mrb[0].mxu0
        %v1213 = vadd.f32 %v974, %v1212
        %v1214 = vpop.f32.mrb[0].mxu0
        %v1215 = vadd.f32 %v975, %v1214
        %1216 = vmatprep.mubr.f32.mxu0 0.0
        %1217 = vmatmul.mubr.f32.gmra.mrb[0].mxu0 %v990
        %v1218 = vpop.f32.mrb[0].mxu0
        %v1219 = vadd.f32 %v974, %v1218
        %v1220 = vpop.f32.mrb[0].mxu0
        %v1221 = vadd.f32 %v975, %v1220
        %1222 = vdwg.mxu0
        %1223 = vmatprep.subr.mxu0 %v909
        %1224 = vmatpush1.msra.mxu0 %v908
        %1225 = vmatprep.subr.mxu0 %v917
        %1226 = vmatpush1.msra.mxu0 %v916
        %1227 = vmatprep.subr.mxu0 0.0
        %1228 = vmatpush1.msra.mxu0 0.0
        %1229 = vmatprep.subr.mxu0 0.0
        %1230 = vmatpush1.msra.mxu0 0.0
        %1231 = vmatprep.subr.mxu0 0.0
        %1232 = vmatpush1.msra.mxu0 0.0
        %1233 = vmatprep.subr.mxu0 0.0
        %1234 = vmatpush1.msra.mxu0 0.0
        %1235 = vmatprep.subr.mxu0 0.0
        %1236 = vmatpush1.msra.mxu0 0.0
        %1237 = vmatprep.subr.mxu0 0.0
        %1238 = vmatpush1.msra.mxu0 0.0
        %1239 = vmatprep.subr.mxu0 0.0
        %1240 = vmatpush1.msra.mxu0 0.0
        %1241 = vmatprep.subr.mxu0 0.0
        %1242 = vmatpush1.msra.mxu0 0.0
        %1243 = vmatprep.subr.mxu0 0.0
        %1244 = vmatpush1.msra.mxu0 0.0
        %1245 = vmatprep.subr.mxu0 0.0
        %1246 = vmatpush1.msra.mxu0 0.0
        %1247 = vmatprep.subr.mxu0 0.0
        %1248 = vmatpush1.msra.mxu0 0.0
        %1249 = vmatprep.subr.mxu0 0.0
        %1250 = vmatpush1.msra.mxu0 0.0
        %1251 = vmatprep.subr.mxu0 0.0
        %1252 = vmatpush1.msra.mxu0 0.0
        %1253 = vmatprep.subr.mxu0 0.0
        %1254 = vmatpush1.msra.mxu0 0.0
        %1255 = vmatprep.subr.mxu0 0.0
        %1256 = vmatpush1.msra.mxu0 0.0
        %1257 = vmatprep.subr.mxu0 0.0
        %1258 = vmatpush1.msra.mxu0 0.0
        %1259 = vmatprep.subr.mxu0 0.0
        %1260 = vmatpush1.msra.mxu0 0.0
        %1261 = vmatprep.subr.mxu0 0.0
        %1262 = vmatpush1.msra.mxu0 0.0
        %1263 = vmatprep.subr.mxu0 0.0
        %1264 = vmatpush1.msra.mxu0 0.0
        %1265 = vmatprep.subr.mxu0 0.0
        %1266 = vmatpush1.msra.mxu0 0.0
        %1267 = vmatprep.subr.mxu0 0.0
        %1268 = vmatpush1.msra.mxu0 0.0
        %1269 = vmatprep.subr.mxu0 0.0
        %1270 = vmatpush1.msra.mxu0 0.0
        %1271 = vmatprep.subr.mxu0 0.0
        %1272 = vmatpush1.msra.mxu0 0.0
        %1273 = vmatprep.subr.mxu0 0.0
        %1274 = vmatpush1.msra.mxu0 0.0
        %1275 = vmatprep.subr.mxu0 0.0
        %1276 = vmatpush1.msra.mxu0 0.0
        %1277 = vmatprep.subr.mxu0 0.0
        %1278 = vmatpush1.msra.mxu0 0.0
        %1279 = vmatprep.subr.mxu0 0.0
        %1280 = vmatpush1.msra.mxu0 0.0
        %1281 = vmatprep.subr.mxu0 0.0
        %1282 = vmatpush1.msra.mxu0 0.0
        %1283 = vmatprep.subr.mxu0 0.0
        %1284 = vmatpush1.msra.mxu0 0.0
        %1285 = vmatprep.subr.mxu0 0.0
        %1286 = vmatpush1.msra.mxu0 0.0
        %1287 = vmatprep.mubr.f32.mxu0 0.0
        %1288 = vmatmul.mubr.f32.gmra.mrb[0].mxu0 %v987
        %v1289 = vpop.f32.mrb[0].mxu0
        %v1290 = vadd.f32 %v976, %v1289
        %v1291 = vpop.f32.mrb[0].mxu0
        %v1292 = vadd.f32 %v977, %v1291
        %1293 = vmatprep.mubr.f32.mxu0 0.0
        %1294 = vmatmul.mubr.f32.gmra.mrb[0].mxu0 %v990
        %v1295 = vpop.f32.mrb[0].mxu0
        %v1296 = vadd.f32 %v976, %v1295
        %v1297 = vpop.f32.mrb[0].mxu0
        %v1298 = vadd.f32 %v977, %v1297
        %1299 = vdwg.mxu0
        %vm1300 = vcmask 261120
        %v1302 = vsel %vm1300, %v721, 0
        %1304 = vmatprep.subr.mxu0 %v475
        %1305 = vmatpush1.msra.mxu0 %v474
        %1306 = vmatprep.subr.mxu0 %v483
        %1307 = vmatpush1.msra.mxu0 %v482
        %1308 = vmatprep.subr.mxu0 %v491
        %1309 = vmatpush1.msra.mxu0 %v490
        %1310 = vmatprep.subr.mxu0 %v499
        %1311 = vmatpush1.msra.mxu0 %v498
        %1312 = vmatprep.subr.mxu0 0.0
        %1313 = vmatpush1.msra.mxu0 0.0
        %1314 = vmatprep.subr.mxu0 0.0
        %1315 = vmatpush1.msra.mxu0 0.0
        %1316 = vmatprep.subr.mxu0 0.0
        %1317 = vmatpush1.msra.mxu0 0.0
        %1318 = vmatprep.subr.mxu0 0.0
        %1319 = vmatpush1.msra.mxu0 0.0
        %1320 = vmatprep.subr.mxu0 0.0
        %1321 = vmatpush1.msra.mxu0 0.0
        %1322 = vmatprep.subr.mxu0 0.0
        %1323 = vmatpush1.msra.mxu0 0.0
        %1324 = vmatprep.subr.mxu0 0.0
        %1325 = vmatpush1.msra.mxu0 0.0
        %1326 = vmatprep.subr.mxu0 0.0
        %1327 = vmatpush1.msra.mxu0 0.0
        %1328 = vmatprep.subr.mxu0 0.0
        %1329 = vmatpush1.msra.mxu0 0.0
        %1330 = vmatprep.subr.mxu0 0.0
        %1331 = vmatpush1.msra.mxu0 0.0
        %1332 = vmatprep.subr.mxu0 0.0
        %1333 = vmatpush1.msra.mxu0 0.0
        %1334 = vmatprep.subr.mxu0 0.0
        %1335 = vmatpush1.msra.mxu0 0.0
        %1336 = vmatprep.subr.mxu0 0.0
        %1337 = vmatpush1.msra.mxu0 0.0
        %1338 = vmatprep.subr.mxu0 0.0
        %1339 = vmatpush1.msra.mxu0 0.0
        %1340 = vmatprep.subr.mxu0 0.0
        %1341 = vmatpush1.msra.mxu0 0.0
        %1342 = vmatprep.subr.mxu0 0.0
        %1343 = vmatpush1.msra.mxu0 0.0
        %1344 = vmatprep.subr.mxu0 0.0
        %1345 = vmatpush1.msra.mxu0 0.0
        %1346 = vmatprep.subr.mxu0 0.0
        %1347 = vmatpush1.msra.mxu0 0.0
        %1348 = vmatprep.subr.mxu0 0.0
        %1349 = vmatpush1.msra.mxu0 0.0
        %1350 = vmatprep.subr.mxu0 0.0
        %1351 = vmatpush1.msra.mxu0 0.0
        %1352 = vmatprep.subr.mxu0 0.0
        %1353 = vmatpush1.msra.mxu0 0.0
        %1354 = vmatprep.subr.mxu0 0.0
        %1355 = vmatpush1.msra.mxu0 0.0
        %1356 = vmatprep.subr.mxu0 0.0
        %1357 = vmatpush1.msra.mxu0 0.0
        %1358 = vmatprep.subr.mxu0 0.0
        %1359 = vmatpush1.msra.mxu0 0.0
        %1360 = vmatprep.subr.mxu0 0.0
        %1361 = vmatpush1.msra.mxu0 0.0
        %1362 = vmatprep.subr.mxu0 0.0
        %1363 = vmatpush1.msra.mxu0 0.0
        %1364 = vmatprep.subr.mxu0 0.0
        %1365 = vmatpush1.msra.mxu0 0.0
        %1366 = vmatprep.subr.mxu0 0.0
        %1367 = vmatpush1.msra.mxu0 0.0
        %1368 = vmatprep.mubr.f32.mxu0 0.0
        %1369 = vmatmul.mubr.f32.gmra.mrb[0].mxu0 %v1302
        %v1370 = vpop.f32.mrb[0].mxu0
        %v1371 = vadd.f32 0.0, %v1370
        %v1372 = vpop.f32.mrb[0].mxu0
        %v1373 = vadd.f32 0.0, %v1372
        %1374 = vdwg.mxu0
        %1375 = vmatprep.subr.mxu0 %v477
        %1376 = vmatpush1.msra.mxu0 %v476
        %1377 = vmatprep.subr.mxu0 %v485
        %1378 = vmatpush1.msra.mxu0 %v484
        %1379 = vmatprep.subr.mxu0 %v493
        %1380 = vmatpush1.msra.mxu0 %v492
        %1381 = vmatprep.subr.mxu0 %v501
        %1382 = vmatpush1.msra.mxu0 %v500
        %1383 = vmatprep.subr.mxu0 0.0
        %1384 = vmatpush1.msra.mxu0 0.0
        %1385 = vmatprep.subr.mxu0 0.0
        %1386 = vmatpush1.msra.mxu0 0.0
        %1387 = vmatprep.subr.mxu0 0.0
        %1388 = vmatpush1.msra.mxu0 0.0
        %1389 = vmatprep.subr.mxu0 0.0
        %1390 = vmatpush1.msra.mxu0 0.0
        %1391 = vmatprep.subr.mxu0 0.0
        %1392 = vmatpush1.msra.mxu0 0.0
        %1393 = vmatprep.subr.mxu0 0.0
        %1394 = vmatpush1.msra.mxu0 0.0
        %1395 = vmatprep.subr.mxu0 0.0
        %1396 = vmatpush1.msra.mxu0 0.0
        %1397 = vmatprep.subr.mxu0 0.0
        %1398 = vmatpush1.msra.mxu0 0.0
        %1399 = vmatprep.subr.mxu0 0.0
        %1400 = vmatpush1.msra.mxu0 0.0
        %1401 = vmatprep.subr.mxu0 0.0
        %1402 = vmatpush1.msra.mxu0 0.0
        %1403 = vmatprep.subr.mxu0 0.0
        %1404 = vmatpush1.msra.mxu0 0.0
        %1405 = vmatprep.subr.mxu0 0.0
        %1406 = vmatpush1.msra.mxu0 0.0
        %1407 = vmatprep.subr.mxu0 0.0
        %1408 = vmatpush1.msra.mxu0 0.0
        %1409 = vmatprep.subr.mxu0 0.0
        %1410 = vmatpush1.msra.mxu0 0.0
        %1411 = vmatprep.subr.mxu0 0.0
        %1412 = vmatpush1.msra.mxu0 0.0
        %1413 = vmatprep.subr.mxu0 0.0
        %1414 = vmatpush1.msra.mxu0 0.0
        %1415 = vmatprep.subr.mxu0 0.0
        %1416 = vmatpush1.msra.mxu0 0.0
        %1417 = vmatprep.subr.mxu0 0.0
        %1418 = vmatpush1.msra.mxu0 0.0
        %1419 = vmatprep.subr.mxu0 0.0
        %1420 = vmatpush1.msra.mxu0 0.0
        %1421 = vmatprep.subr.mxu0 0.0
        %1422 = vmatpush1.msra.mxu0 0.0
        %1423 = vmatprep.subr.mxu0 0.0
        %1424 = vmatpush1.msra.mxu0 0.0
        %1425 = vmatprep.subr.mxu0 0.0
        %1426 = vmatpush1.msra.mxu0 0.0
        %1427 = vmatprep.subr.mxu0 0.0
        %1428 = vmatpush1.msra.mxu0 0.0
        %1429 = vmatprep.subr.mxu0 0.0
        %1430 = vmatpush1.msra.mxu0 0.0
        %1431 = vmatprep.subr.mxu0 0.0
        %1432 = vmatpush1.msra.mxu0 0.0
        %1433 = vmatprep.subr.mxu0 0.0
        %1434 = vmatpush1.msra.mxu0 0.0
        %1435 = vmatprep.subr.mxu0 0.0
        %1436 = vmatpush1.msra.mxu0 0.0
        %1437 = vmatprep.subr.mxu0 0.0
        %1438 = vmatpush1.msra.mxu0 0.0
        %1439 = vmatprep.mubr.f32.mxu0 0.0
        %1440 = vmatmul.mubr.f32.gmra.mrb[0].mxu0 %v1302
        %v1441 = vpop.f32.mrb[0].mxu0
        %v1442 = vadd.f32 0.0, %v1441
        %v1443 = vpop.f32.mrb[0].mxu0
        %v1444 = vadd.f32 0.0, %v1443
        %1445 = vdwg.mxu0
        %1446 = vmatprep.subr.mxu0 %v479
        %1447 = vmatpush1.msra.mxu0 %v478
        %1448 = vmatprep.subr.mxu0 %v487
        %1449 = vmatpush1.msra.mxu0 %v486
        %1450 = vmatprep.subr.mxu0 %v495
        %1451 = vmatpush1.msra.mxu0 %v494
        %1452 = vmatprep.subr.mxu0 %v503
        %1453 = vmatpush1.msra.mxu0 %v502
        %1454 = vmatprep.subr.mxu0 0.0
        %1455 = vmatpush1.msra.mxu0 0.0
        %1456 = vmatprep.subr.mxu0 0.0
        %1457 = vmatpush1.msra.mxu0 0.0
        %1458 = vmatprep.subr.mxu0 0.0
        %1459 = vmatpush1.msra.mxu0 0.0
        %1460 = vmatprep.subr.mxu0 0.0
        %1461 = vmatpush1.msra.mxu0 0.0
        %1462 = vmatprep.subr.mxu0 0.0
        %1463 = vmatpush1.msra.mxu0 0.0
        %1464 = vmatprep.subr.mxu0 0.0
        %1465 = vmatpush1.msra.mxu0 0.0
        %1466 = vmatprep.subr.mxu0 0.0
        %1467 = vmatpush1.msra.mxu0 0.0
        %1468 = vmatprep.subr.mxu0 0.0
        %1469 = vmatpush1.msra.mxu0 0.0
        %1470 = vmatprep.subr.mxu0 0.0
        %1471 = vmatpush1.msra.mxu0 0.0
        %1472 = vmatprep.subr.mxu0 0.0
        %1473 = vmatpush1.msra.mxu0 0.0
        %1474 = vmatprep.subr.mxu0 0.0
        %1475 = vmatpush1.msra.mxu0 0.0
        %1476 = vmatprep.subr.mxu0 0.0
        %1477 = vmatpush1.msra.mxu0 0.0
        %1478 = vmatprep.subr.mxu0 0.0
        %1479 = vmatpush1.msra.mxu0 0.0
        %1480 = vmatprep.subr.mxu0 0.0
        %1481 = vmatpush1.msra.mxu0 0.0
        %1482 = vmatprep.subr.mxu0 0.0
        %1483 = vmatpush1.msra.mxu0 0.0
        %1484 = vmatprep.subr.mxu0 0.0
        %1485 = vmatpush1.msra.mxu0 0.0
        %1486 = vmatprep.subr.mxu0 0.0
        %1487 = vmatpush1.msra.mxu0 0.0
        %1488 = vmatprep.subr.mxu0 0.0
        %1489 = vmatpush1.msra.mxu0 0.0
        %1490 = vmatprep.subr.mxu0 0.0
        %1491 = vmatpush1.msra.mxu0 0.0
        %1492 = vmatprep.subr.mxu0 0.0
        %1493 = vmatpush1.msra.mxu0 0.0
        %1494 = vmatprep.subr.mxu0 0.0
        %1495 = vmatpush1.msra.mxu0 0.0
        %1496 = vmatprep.subr.mxu0 0.0
        %1497 = vmatpush1.msra.mxu0 0.0
        %1498 = vmatprep.subr.mxu0 0.0
        %1499 = vmatpush1.msra.mxu0 0.0
        %1500 = vmatprep.subr.mxu0 0.0
        %1501 = vmatpush1.msra.mxu0 0.0
        %1502 = vmatprep.subr.mxu0 0.0
        %1503 = vmatpush1.msra.mxu0 0.0
        %1504 = vmatprep.subr.mxu0 0.0
        %1505 = vmatpush1.msra.mxu0 0.0
        %1506 = vmatprep.subr.mxu0 0.0
        %1507 = vmatpush1.msra.mxu0 0.0
        %1508 = vmatprep.subr.mxu0 0.0
        %1509 = vmatpush1.msra.mxu0 0.0
        %1510 = vmatprep.mubr.f32.mxu0 0.0
        %1511 = vmatmul.mubr.f32.gmra.mrb[0].mxu0 %v1302
        %v1512 = vpop.f32.mrb[0].mxu0
        %v1513 = vadd.f32 0.0, %v1512
        %v1514 = vpop.f32.mrb[0].mxu0
        %v1515 = vadd.f32 0.0, %v1514
        %1516 = vdwg.mxu0
        %1517 = vmatprep.subr.mxu0 %v481
        %1518 = vmatpush1.msra.mxu0 %v480
        %1519 = vmatprep.subr.mxu0 %v489
        %1520 = vmatpush1.msra.mxu0 %v488
        %1521 = vmatprep.subr.mxu0 %v497
        %1522 = vmatpush1.msra.mxu0 %v496
        %1523 = vmatprep.subr.mxu0 %v505
        %1524 = vmatpush1.msra.mxu0 %v504
        %1525 = vmatprep.subr.mxu0 0.0
        %1526 = vmatpush1.msra.mxu0 0.0
        %1527 = vmatprep.subr.mxu0 0.0
        %1528 = vmatpush1.msra.mxu0 0.0
        %1529 = vmatprep.subr.mxu0 0.0
        %1530 = vmatpush1.msra.mxu0 0.0
        %1531 = vmatprep.subr.mxu0 0.0
        %1532 = vmatpush1.msra.mxu0 0.0
        %1533 = vmatprep.subr.mxu0 0.0
        %1534 = vmatpush1.msra.mxu0 0.0
        %1535 = vmatprep.subr.mxu0 0.0
        %1536 = vmatpush1.msra.mxu0 0.0
        %1537 = vmatprep.subr.mxu0 0.0
        %1538 = vmatpush1.msra.mxu0 0.0
        %1539 = vmatprep.subr.mxu0 0.0
        %1540 = vmatpush1.msra.mxu0 0.0
        %1541 = vmatprep.subr.mxu0 0.0
        %1542 = vmatpush1.msra.mxu0 0.0
        %1543 = vmatprep.subr.mxu0 0.0
        %1544 = vmatpush1.msra.mxu0 0.0
        %1545 = vmatprep.subr.mxu0 0.0
        %1546 = vmatpush1.msra.mxu0 0.0
        %1547 = vmatprep.subr.mxu0 0.0
        %1548 = vmatpush1.msra.mxu0 0.0
        %1549 = vmatprep.subr.mxu0 0.0
        %1550 = vmatpush1.msra.mxu0 0.0
        %1551 = vmatprep.subr.mxu0 0.0
        %1552 = vmatpush1.msra.mxu0 0.0
        %1553 = vmatprep.subr.mxu0 0.0
        %1554 = vmatpush1.msra.mxu0 0.0
        %1555 = vmatprep.subr.mxu0 0.0
        %1556 = vmatpush1.msra.mxu0 0.0
        %1557 = vmatprep.subr.mxu0 0.0
        %1558 = vmatpush1.msra.mxu0 0.0
        %1559 = vmatprep.subr.mxu0 0.0
        %1560 = vmatpush1.msra.mxu0 0.0
        %1561 = vmatprep.subr.mxu0 0.0
        %1562 = vmatpush1.msra.mxu0 0.0
        %1563 = vmatprep.subr.mxu0 0.0
        %1564 = vmatpush1.msra.mxu0 0.0
        %1565 = vmatprep.subr.mxu0 0.0
        %1566 = vmatpush1.msra.mxu0 0.0
        %1567 = vmatprep.subr.mxu0 0.0
        %1568 = vmatpush1.msra.mxu0 0.0
        %1569 = vmatprep.subr.mxu0 0.0
        %1570 = vmatpush1.msra.mxu0 0.0
        %1571 = vmatprep.subr.mxu0 0.0
        %1572 = vmatpush1.msra.mxu0 0.0
        %1573 = vmatprep.subr.mxu0 0.0
        %1574 = vmatpush1.msra.mxu0 0.0
        %1575 = vmatprep.subr.mxu0 0.0
        %1576 = vmatpush1.msra.mxu0 0.0
        %1577 = vmatprep.subr.mxu0 0.0
        %1578 = vmatpush1.msra.mxu0 0.0
        %1579 = vmatprep.subr.mxu0 0.0
        %1580 = vmatpush1.msra.mxu0 0.0
        %1581 = vmatprep.mubr.f32.mxu0 0.0
        %1582 = vmatmul.mubr.f32.gmra.mrb[0].mxu0 %v1302
        %v1583 = vpop.f32.mrb[0].mxu0
        %v1584 = vadd.f32 0.0, %v1583
        %v1585 = vpop.f32.mrb[0].mxu0
        %v1586 = vadd.f32 0.0, %v1585
        %1587 = vdwg.mxu0
        %v1589 = vsel %vm728, %v471, 0
        %v1592 = vsel %vm728, %v472, 0
        %1594 = vmatprep.subr.mxu0 %v1373
        %1595 = vmatpush1.msra.mxu0 %v1371
        %1596 = vmatprep.subr.mxu0 0.0
        %1597 = vmatpush1.msra.mxu0 0.0
        %1598 = vmatprep.subr.mxu0 0.0
        %1599 = vmatpush1.msra.mxu0 0.0
        %1600 = vmatprep.subr.mxu0 0.0
        %1601 = vmatpush1.msra.mxu0 0.0
        %1602 = vmatprep.subr.mxu0 0.0
        %1603 = vmatpush1.msra.mxu0 0.0
        %1604 = vmatprep.subr.mxu0 0.0
        %1605 = vmatpush1.msra.mxu0 0.0
        %1606 = vmatprep.subr.mxu0 0.0
        %1607 = vmatpush1.msra.mxu0 0.0
        %1608 = vmatprep.subr.mxu0 0.0
        %1609 = vmatpush1.msra.mxu0 0.0
        %1610 = vmatprep.subr.mxu0 0.0
        %1611 = vmatpush1.msra.mxu0 0.0
        %1612 = vmatprep.subr.mxu0 0.0
        %1613 = vmatpush1.msra.mxu0 0.0
        %1614 = vmatprep.subr.mxu0 0.0
        %1615 = vmatpush1.msra.mxu0 0.0
        %1616 = vmatprep.subr.mxu0 0.0
        %1617 = vmatpush1.msra.mxu0 0.0
        %1618 = vmatprep.subr.mxu0 0.0
        %1619 = vmatpush1.msra.mxu0 0.0
        %1620 = vmatprep.subr.mxu0 0.0
        %1621 = vmatpush1.msra.mxu0 0.0
        %1622 = vmatprep.subr.mxu0 0.0
        %1623 = vmatpush1.msra.mxu0 0.0
        %1624 = vmatprep.subr.mxu0 0.0
        %1625 = vmatpush1.msra.mxu0 0.0
        %1626 = vmatprep.subr.mxu0 0.0
        %1627 = vmatpush1.msra.mxu0 0.0
        %1628 = vmatprep.subr.mxu0 0.0
        %1629 = vmatpush1.msra.mxu0 0.0
        %1630 = vmatprep.subr.mxu0 0.0
        %1631 = vmatpush1.msra.mxu0 0.0
        %1632 = vmatprep.subr.mxu0 0.0
        %1633 = vmatpush1.msra.mxu0 0.0
        %1634 = vmatprep.subr.mxu0 0.0
        %1635 = vmatpush1.msra.mxu0 0.0
        %1636 = vmatprep.subr.mxu0 0.0
        %1637 = vmatpush1.msra.mxu0 0.0
        %1638 = vmatprep.subr.mxu0 0.0
        %1639 = vmatpush1.msra.mxu0 0.0
        %1640 = vmatprep.subr.mxu0 0.0
        %1641 = vmatpush1.msra.mxu0 0.0
        %1642 = vmatprep.subr.mxu0 0.0
        %1643 = vmatpush1.msra.mxu0 0.0
        %1644 = vmatprep.subr.mxu0 0.0
        %1645 = vmatpush1.msra.mxu0 0.0
        %1646 = vmatprep.subr.mxu0 0.0
        %1647 = vmatpush1.msra.mxu0 0.0
        %1648 = vmatprep.subr.mxu0 0.0
        %1649 = vmatpush1.msra.mxu0 0.0
        %1650 = vmatprep.subr.mxu0 0.0
        %1651 = vmatpush1.msra.mxu0 0.0
        %1652 = vmatprep.subr.mxu0 0.0
        %1653 = vmatpush1.msra.mxu0 0.0
        %1654 = vmatprep.subr.mxu0 0.0
        %1655 = vmatpush1.msra.mxu0 0.0
        %1656 = vmatprep.subr.mxu0 0.0
        %1657 = vmatpush1.msra.mxu0 0.0
        %1658 = vmatprep.mubr.f32.mxu0 0.0
        %1659 = vmatmul.mubr.f32.gmra.mrb[0].mxu0 %v1589
        %v1660 = vpop.f32.mrb[0].mxu0
        %v1661 = vadd.f32 0.0, %v1660
        %v1662 = vpop.f32.mrb[0].mxu0
        %v1663 = vadd.f32 0.0, %v1662
        %1664 = vmatprep.mubr.f32.mxu0 0.0
        %1665 = vmatmul.mubr.f32.gmra.mrb[0].mxu0 %v1592
        %v1666 = vpop.f32.mrb[0].mxu0
        %v1667 = vadd.f32 0.0, %v1666
        %v1668 = vpop.f32.mrb[0].mxu0
        %v1669 = vadd.f32 0.0, %v1668
        %1670 = vdwg.mxu0
        %1671 = vmatprep.subr.mxu0 %v1444
        %1672 = vmatpush1.msra.mxu0 %v1442
        %1673 = vmatprep.subr.mxu0 0.0
        %1674 = vmatpush1.msra.mxu0 0.0
        %1675 = vmatprep.subr.mxu0 0.0
        %1676 = vmatpush1.msra.mxu0 0.0
        %1677 = vmatprep.subr.mxu0 0.0
        %1678 = vmatpush1.msra.mxu0 0.0
        %1679 = vmatprep.subr.mxu0 0.0
        %1680 = vmatpush1.msra.mxu0 0.0
        %1681 = vmatprep.subr.mxu0 0.0
        %1682 = vmatpush1.msra.mxu0 0.0
        %1683 = vmatprep.subr.mxu0 0.0
        %1684 = vmatpush1.msra.mxu0 0.0
        %1685 = vmatprep.subr.mxu0 0.0
        %1686 = vmatpush1.msra.mxu0 0.0
        %1687 = vmatprep.subr.mxu0 0.0
        %1688 = vmatpush1.msra.mxu0 0.0
        %1689 = vmatprep.subr.mxu0 0.0
        %1690 = vmatpush1.msra.mxu0 0.0
        %1691 = vmatprep.subr.mxu0 0.0
        %1692 = vmatpush1.msra.mxu0 0.0
        %1693 = vmatprep.subr.mxu0 0.0
        %1694 = vmatpush1.msra.mxu0 0.0
        %1695 = vmatprep.subr.mxu0 0.0
        %1696 = vmatpush1.msra.mxu0 0.0
        %1697 = vmatprep.subr.mxu0 0.0
        %1698 = vmatpush1.msra.mxu0 0.0
        %1699 = vmatprep.subr.mxu0 0.0
        %1700 = vmatpush1.msra.mxu0 0.0
        %1701 = vmatprep.subr.mxu0 0.0
        %1702 = vmatpush1.msra.mxu0 0.0
        %1703 = vmatprep.subr.mxu0 0.0
        %1704 = vmatpush1.msra.mxu0 0.0
        %1705 = vmatprep.subr.mxu0 0.0
        %1706 = vmatpush1.msra.mxu0 0.0
        %1707 = vmatprep.subr.mxu0 0.0
        %1708 = vmatpush1.msra.mxu0 0.0
        %1709 = vmatprep.subr.mxu0 0.0
        %1710 = vmatpush1.msra.mxu0 0.0
        %1711 = vmatprep.subr.mxu0 0.0
        %1712 = vmatpush1.msra.mxu0 0.0
        %1713 = vmatprep.subr.mxu0 0.0
        %1714 = vmatpush1.msra.mxu0 0.0
        %1715 = vmatprep.subr.mxu0 0.0
        %1716 = vmatpush1.msra.mxu0 0.0
        %1717 = vmatprep.subr.mxu0 0.0
        %1718 = vmatpush1.msra.mxu0 0.0
        %1719 = vmatprep.subr.mxu0 0.0
        %1720 = vmatpush1.msra.mxu0 0.0
        %1721 = vmatprep.subr.mxu0 0.0
        %1722 = vmatpush1.msra.mxu0 0.0
        %1723 = vmatprep.subr.mxu0 0.0
        %1724 = vmatpush1.msra.mxu0 0.0
        %1725 = vmatprep.subr.mxu0 0.0
        %1726 = vmatpush1.msra.mxu0 0.0
        %1727 = vmatprep.subr.mxu0 0.0
        %1728 = vmatpush1.msra.mxu0 0.0
        %1729 = vmatprep.subr.mxu0 0.0
        %1730 = vmatpush1.msra.mxu0 0.0
        %1731 = vmatprep.subr.mxu0 0.0
        %1732 = vmatpush1.msra.mxu0 0.0
        %1733 = vmatprep.subr.mxu0 0.0
        %1734 = vmatpush1.msra.mxu0 0.0
        %1735 = vmatprep.mubr.f32.mxu0 0.0
        %1736 = vmatmul.mubr.f32.gmra.mrb[0].mxu0 %v1589
        %v1737 = vpop.f32.mrb[0].mxu0
        %v1738 = vadd.f32 0.0, %v1737
        %v1739 = vpop.f32.mrb[0].mxu0
        %v1740 = vadd.f32 0.0, %v1739
        %1741 = vmatprep.mubr.f32.mxu0 0.0
        %1742 = vmatmul.mubr.f32.gmra.mrb[0].mxu0 %v1592
        %v1743 = vpop.f32.mrb[0].mxu0
        %v1744 = vadd.f32 0.0, %v1743
        %v1745 = vpop.f32.mrb[0].mxu0
        %v1746 = vadd.f32 0.0, %v1745
        %1747 = vdwg.mxu0
        %1748 = vmatprep.subr.mxu0 %v1515
        %1749 = vmatpush1.msra.mxu0 %v1513
        %1750 = vmatprep.subr.mxu0 0.0
        %1751 = vmatpush1.msra.mxu0 0.0
        %1752 = vmatprep.subr.mxu0 0.0
        %1753 = vmatpush1.msra.mxu0 0.0
        %1754 = vmatprep.subr.mxu0 0.0
        %1755 = vmatpush1.msra.mxu0 0.0
        %1756 = vmatprep.subr.mxu0 0.0
        %1757 = vmatpush1.msra.mxu0 0.0
        %1758 = vmatprep.subr.mxu0 0.0
        %1759 = vmatpush1.msra.mxu0 0.0
        %1760 = vmatprep.subr.mxu0 0.0
        %1761 = vmatpush1.msra.mxu0 0.0
        %1762 = vmatprep.subr.mxu0 0.0
        %1763 = vmatpush1.msra.mxu0 0.0
        %1764 = vmatprep.subr.mxu0 0.0
        %1765 = vmatpush1.msra.mxu0 0.0
        %1766 = vmatprep.subr.mxu0 0.0
        %1767 = vmatpush1.msra.mxu0 0.0
        %1768 = vmatprep.subr.mxu0 0.0
        %1769 = vmatpush1.msra.mxu0 0.0
        %1770 = vmatprep.subr.mxu0 0.0
        %1771 = vmatpush1.msra.mxu0 0.0
        %1772 = vmatprep.subr.mxu0 0.0
        %1773 = vmatpush1.msra.mxu0 0.0
        %1774 = vmatprep.subr.mxu0 0.0
        %1775 = vmatpush1.msra.mxu0 0.0
        %1776 = vmatprep.subr.mxu0 0.0
        %1777 = vmatpush1.msra.mxu0 0.0
        %1778 = vmatprep.subr.mxu0 0.0
        %1779 = vmatpush1.msra.mxu0 0.0
        %1780 = vmatprep.subr.mxu0 0.0
        %1781 = vmatpush1.msra.mxu0 0.0
        %1782 = vmatprep.subr.mxu0 0.0
        %1783 = vmatpush1.msra.mxu0 0.0
        %1784 = vmatprep.subr.mxu0 0.0
        %1785 = vmatpush1.msra.mxu0 0.0
        %1786 = vmatprep.subr.mxu0 0.0
        %1787 = vmatpush1.msra.mxu0 0.0
        %1788 = vmatprep.subr.mxu0 0.0
        %1789 = vmatpush1.msra.mxu0 0.0
        %1790 = vmatprep.subr.mxu0 0.0
        %1791 = vmatpush1.msra.mxu0 0.0
        %1792 = vmatprep.subr.mxu0 0.0
        %1793 = vmatpush1.msra.mxu0 0.0
        %1794 = vmatprep.subr.mxu0 0.0
        %1795 = vmatpush1.msra.mxu0 0.0
        %1796 = vmatprep.subr.mxu0 0.0
        %1797 = vmatpush1.msra.mxu0 0.0
        %1798 = vmatprep.subr.mxu0 0.0
        %1799 = vmatpush1.msra.mxu0 0.0
        %1800 = vmatprep.subr.mxu0 0.0
        %1801 = vmatpush1.msra.mxu0 0.0
        %1802 = vmatprep.subr.mxu0 0.0
        %1803 = vmatpush1.msra.mxu0 0.0
        %1804 = vmatprep.subr.mxu0 0.0
        %1805 = vmatpush1.msra.mxu0 0.0
        %1806 = vmatprep.subr.mxu0 0.0
        %1807 = vmatpush1.msra.mxu0 0.0
        %1808 = vmatprep.subr.mxu0 0.0
        %1809 = vmatpush1.msra.mxu0 0.0
        %1810 = vmatprep.subr.mxu0 0.0
        %1811 = vmatpush1.msra.mxu0 0.0
        %1812 = vmatprep.mubr.f32.mxu0 0.0
        %1813 = vmatmul.mubr.f32.gmra.mrb[0].mxu0 %v1589
        %v1814 = vpop.f32.mrb[0].mxu0
        %v1815 = vadd.f32 0.0, %v1814
        %v1816 = vpop.f32.mrb[0].mxu0
        %v1817 = vadd.f32 0.0, %v1816
        %1818 = vmatprep.mubr.f32.mxu0 0.0
        %1819 = vmatmul.mubr.f32.gmra.mrb[0].mxu0 %v1592
        %v1820 = vpop.f32.mrb[0].mxu0
        %v1821 = vadd.f32 0.0, %v1820
        %v1822 = vpop.f32.mrb[0].mxu0
        %v1823 = vadd.f32 0.0, %v1822
        %1824 = vdwg.mxu0
        %1825 = vmatprep.subr.mxu0 %v1586
        %1826 = vmatpush1.msra.mxu0 %v1584
        %1827 = vmatprep.subr.mxu0 0.0
        %1828 = vmatpush1.msra.mxu0 0.0
        %1829 = vmatprep.subr.mxu0 0.0
        %1830 = vmatpush1.msra.mxu0 0.0
        %1831 = vmatprep.subr.mxu0 0.0
        %1832 = vmatpush1.msra.mxu0 0.0
        %1833 = vmatprep.subr.mxu0 0.0
        %1834 = vmatpush1.msra.mxu0 0.0
        %1835 = vmatprep.subr.mxu0 0.0
        %1836 = vmatpush1.msra.mxu0 0.0
        %1837 = vmatprep.subr.mxu0 0.0
        %1838 = vmatpush1.msra.mxu0 0.0
        %1839 = vmatprep.subr.mxu0 0.0
        %1840 = vmatpush1.msra.mxu0 0.0
        %1841 = vmatprep.subr.mxu0 0.0
        %1842 = vmatpush1.msra.mxu0 0.0
        %1843 = vmatprep.subr.mxu0 0.0
        %1844 = vmatpush1.msra.mxu0 0.0
        %1845 = vmatprep.subr.mxu0 0.0
        %1846 = vmatpush1.msra.mxu0 0.0
        %1847 = vmatprep.subr.mxu0 0.0
        %1848 = vmatpush1.msra.mxu0 0.0
        %1849 = vmatprep.subr.mxu0 0.0
        %1850 = vmatpush1.msra.mxu0 0.0
        %1851 = vmatprep.subr.mxu0 0.0
        %1852 = vmatpush1.msra.mxu0 0.0
        %1853 = vmatprep.subr.mxu0 0.0
        %1854 = vmatpush1.msra.mxu0 0.0
        %1855 = vmatprep.subr.mxu0 0.0
        %1856 = vmatpush1.msra.mxu0 0.0
        %1857 = vmatprep.subr.mxu0 0.0
        %1858 = vmatpush1.msra.mxu0 0.0
        %1859 = vmatprep.subr.mxu0 0.0
        %1860 = vmatpush1.msra.mxu0 0.0
        %1861 = vmatprep.subr.mxu0 0.0
        %1862 = vmatpush1.msra.mxu0 0.0
        %1863 = vmatprep.subr.mxu0 0.0
        %1864 = vmatpush1.msra.mxu0 0.0
        %1865 = vmatprep.subr.mxu0 0.0
        %1866 = vmatpush1.msra.mxu0 0.0
        %1867 = vmatprep.subr.mxu0 0.0
        %1868 = vmatpush1.msra.mxu0 0.0
        %1869 = vmatprep.subr.mxu0 0.0
        %1870 = vmatpush1.msra.mxu0 0.0
        %1871 = vmatprep.subr.mxu0 0.0
        %1872 = vmatpush1.msra.mxu0 0.0
        %1873 = vmatprep.subr.mxu0 0.0
        %1874 = vmatpush1.msra.mxu0 0.0
        %1875 = vmatprep.subr.mxu0 0.0
        %1876 = vmatpush1.msra.mxu0 0.0
        %1877 = vmatprep.subr.mxu0 0.0
        %1878 = vmatpush1.msra.mxu0 0.0
        %1879 = vmatprep.subr.mxu0 0.0
        %1880 = vmatpush1.msra.mxu0 0.0
        %1881 = vmatprep.subr.mxu0 0.0
        %1882 = vmatpush1.msra.mxu0 0.0
        %1883 = vmatprep.subr.mxu0 0.0
        %1884 = vmatpush1.msra.mxu0 0.0
        %1885 = vmatprep.subr.mxu0 0.0
        %1886 = vmatpush1.msra.mxu0 0.0
        %1887 = vmatprep.subr.mxu0 0.0
        %1888 = vmatpush1.msra.mxu0 0.0
        %1889 = vmatprep.mubr.f32.mxu0 0.0
        %1890 = vmatmul.mubr.f32.gmra.mrb[0].mxu0 %v1589
        %v1891 = vpop.f32.mrb[0].mxu0
        %v1892 = vadd.f32 0.0, %v1891
        %v1893 = vpop.f32.mrb[0].mxu0
        %v1894 = vadd.f32 0.0, %v1893
        %1895 = vmatprep.mubr.f32.mxu0 0.0
        %1896 = vmatmul.mubr.f32.gmra.mrb[0].mxu0 %v1592
        %v1897 = vpop.f32.mrb[0].mxu0
        %v1898 = vadd.f32 0.0, %v1897
        %v1899 = vpop.f32.mrb[0].mxu0
        %v1900 = vadd.f32 0.0, %v1899
        %1901 = vdwg.mxu0
        %v1902 = vmul.f32 %v1661, %v1059
        %v1903 = vmul.f32 %v1663, %v1061
        %v1904 = vmul.f32 %v1738, %v1136
        %v1905 = vmul.f32 %v1740, %v1138
        %v1906 = vmul.f32 %v1815, %v1213
        %v1907 = vmul.f32 %v1817, %v1215
        %v1908 = vmul.f32 %v1892, %v1290
        %v1909 = vmul.f32 %v1894, %v1292
        %v1910 = vmul.f32 %v1667, %v1065
        %v1911 = vmul.f32 %v1669, %v1067
        %v1912 = vmul.f32 %v1744, %v1142
        %v1913 = vmul.f32 %v1746, %v1144
        %v1914 = vmul.f32 %v1821, %v1219
        %v1915 = vmul.f32 %v1823, %v1221
        %v1916 = vmul.f32 %v1898, %v1296
        %v1917 = vmul.f32 %v1900, %v1298
        %v1919 = vsel %vm650, %v473, 0
        %1921 = vmatprep.subr.mxu0 %v1903
        %1922 = vmatpush1.msra.mxu0 %v1902
        %1923 = vmatprep.subr.mxu0 %v1911
        %1924 = vmatpush1.msra.mxu0 %v1910
        %1925 = vmatprep.subr.mxu0 0.0
        %1926 = vmatpush1.msra.mxu0 0.0
        %1927 = vmatprep.subr.mxu0 0.0
        %1928 = vmatpush1.msra.mxu0 0.0
        %1929 = vmatprep.subr.mxu0 0.0
        %1930 = vmatpush1.msra.mxu0 0.0
        %1931 = vmatprep.subr.mxu0 0.0
        %1932 = vmatpush1.msra.mxu0 0.0
        %1933 = vmatprep.subr.mxu0 0.0
        %1934 = vmatpush1.msra.mxu0 0.0
        %1935 = vmatprep.subr.mxu0 0.0
        %1936 = vmatpush1.msra.mxu0 0.0
        %1937 = vmatprep.subr.mxu0 0.0
        %1938 = vmatpush1.msra.mxu0 0.0
        %1939 = vmatprep.subr.mxu0 0.0
        %1940 = vmatpush1.msra.mxu0 0.0
        %1941 = vmatprep.subr.mxu0 0.0
        %1942 = vmatpush1.msra.mxu0 0.0
        %1943 = vmatprep.subr.mxu0 0.0
        %1944 = vmatpush1.msra.mxu0 0.0
        %1945 = vmatprep.subr.mxu0 0.0
        %1946 = vmatpush1.msra.mxu0 0.0
        %1947 = vmatprep.subr.mxu0 0.0
        %1948 = vmatpush1.msra.mxu0 0.0
        %1949 = vmatprep.subr.mxu0 0.0
        %1950 = vmatpush1.msra.mxu0 0.0
        %1951 = vmatprep.subr.mxu0 0.0
        %1952 = vmatpush1.msra.mxu0 0.0
        %1953 = vmatprep.subr.mxu0 0.0
        %1954 = vmatpush1.msra.mxu0 0.0
        %1955 = vmatprep.subr.mxu0 0.0
        %1956 = vmatpush1.msra.mxu0 0.0
        %1957 = vmatprep.subr.mxu0 0.0
        %1958 = vmatpush1.msra.mxu0 0.0
        %1959 = vmatprep.subr.mxu0 0.0
        %1960 = vmatpush1.msra.mxu0 0.0
        %1961 = vmatprep.subr.mxu0 0.0
        %1962 = vmatpush1.msra.mxu0 0.0
        %1963 = vmatprep.subr.mxu0 0.0
        %1964 = vmatpush1.msra.mxu0 0.0
        %1965 = vmatprep.subr.mxu0 0.0
        %1966 = vmatpush1.msra.mxu0 0.0
        %1967 = vmatprep.subr.mxu0 0.0
        %1968 = vmatpush1.msra.mxu0 0.0
        %1969 = vmatprep.subr.mxu0 0.0
        %1970 = vmatpush1.msra.mxu0 0.0
        %1971 = vmatprep.subr.mxu0 0.0
        %1972 = vmatpush1.msra.mxu0 0.0
        %1973 = vmatprep.subr.mxu0 0.0
        %1974 = vmatpush1.msra.mxu0 0.0
        %1975 = vmatprep.subr.mxu0 0.0
        %1976 = vmatpush1.msra.mxu0 0.0
        %1977 = vmatprep.subr.mxu0 0.0
        %1978 = vmatpush1.msra.mxu0 0.0
        %1979 = vmatprep.subr.mxu0 0.0
        %1980 = vmatpush1.msra.mxu0 0.0
        %1981 = vmatprep.subr.mxu0 0.0
        %1982 = vmatpush1.msra.mxu0 0.0
        %1983 = vmatprep.subr.mxu0 0.0
        %1984 = vmatpush1.msra.mxu0 0.0
        %1985 = vmatprep.mubr.f32.mxu0 0.0
        %1986 = vmatmul.mubr.f32.gmra.mrb[0].mxu0 %v1919
        %v1987 = vpop.f32.mrb[0].mxu0
        %v1988 = vadd.f32 0.0, %v1987
        %v1989 = vpop.f32.mrb[0].mxu0
        %v1990 = vadd.f32 0.0, %v1989
        %1991 = vdwg.mxu0
        %1992 = vmatprep.subr.mxu0 %v1905
        %1993 = vmatpush1.msra.mxu0 %v1904
        %1994 = vmatprep.subr.mxu0 %v1913
        %1995 = vmatpush1.msra.mxu0 %v1912
        %1996 = vmatprep.subr.mxu0 0.0
        %1997 = vmatpush1.msra.mxu0 0.0
        %1998 = vmatprep.subr.mxu0 0.0
        %1999 = vmatpush1.msra.mxu0 0.0
        %2000 = vmatprep.subr.mxu0 0.0
        %2001 = vmatpush1.msra.mxu0 0.0
        %2002 = vmatprep.subr.mxu0 0.0
        %2003 = vmatpush1.msra.mxu0 0.0
        %2004 = vmatprep.subr.mxu0 0.0
        %2005 = vmatpush1.msra.mxu0 0.0
        %2006 = vmatprep.subr.mxu0 0.0
        %2007 = vmatpush1.msra.mxu0 0.0
        %2008 = vmatprep.subr.mxu0 0.0
        %2009 = vmatpush1.msra.mxu0 0.0
        %2010 = vmatprep.subr.mxu0 0.0
        %2011 = vmatpush1.msra.mxu0 0.0
        %2012 = vmatprep.subr.mxu0 0.0
        %2013 = vmatpush1.msra.mxu0 0.0
        %2014 = vmatprep.subr.mxu0 0.0
        %2015 = vmatpush1.msra.mxu0 0.0
        %2016 = vmatprep.subr.mxu0 0.0
        %2017 = vmatpush1.msra.mxu0 0.0
        %2018 = vmatprep.subr.mxu0 0.0
        %2019 = vmatpush1.msra.mxu0 0.0
        %2020 = vmatprep.subr.mxu0 0.0
        %2021 = vmatpush1.msra.mxu0 0.0
        %2022 = vmatprep.subr.mxu0 0.0
        %2023 = vmatpush1.msra.mxu0 0.0
        %2024 = vmatprep.subr.mxu0 0.0
        %2025 = vmatpush1.msra.mxu0 0.0
        %2026 = vmatprep.subr.mxu0 0.0
        %2027 = vmatpush1.msra.mxu0 0.0
        %2028 = vmatprep.subr.mxu0 0.0
        %2029 = vmatpush1.msra.mxu0 0.0
        %2030 = vmatprep.subr.mxu0 0.0
        %2031 = vmatpush1.msra.mxu0 0.0
        %2032 = vmatprep.subr.mxu0 0.0
        %2033 = vmatpush1.msra.mxu0 0.0
        %2034 = vmatprep.subr.mxu0 0.0
        %2035 = vmatpush1.msra.mxu0 0.0
        %2036 = vmatprep.subr.mxu0 0.0
        %2037 = vmatpush1.msra.mxu0 0.0
        %2038 = vmatprep.subr.mxu0 0.0
        %2039 = vmatpush1.msra.mxu0 0.0
        %2040 = vmatprep.subr.mxu0 0.0
        %2041 = vmatpush1.msra.mxu0 0.0
        %2042 = vmatprep.subr.mxu0 0.0
        %2043 = vmatpush1.msra.mxu0 0.0
        %2044 = vmatprep.subr.mxu0 0.0
        %2045 = vmatpush1.msra.mxu0 0.0
        %2046 = vmatprep.subr.mxu0 0.0
        %2047 = vmatpush1.msra.mxu0 0.0
        %2048 = vmatprep.subr.mxu0 0.0
        %2049 = vmatpush1.msra.mxu0 0.0
        %2050 = vmatprep.subr.mxu0 0.0
        %2051 = vmatpush1.msra.mxu0 0.0
        %2052 = vmatprep.subr.mxu0 0.0
        %2053 = vmatpush1.msra.mxu0 0.0
        %2054 = vmatprep.subr.mxu0 0.0
        %2055 = vmatpush1.msra.mxu0 0.0
        %2056 = vmatprep.mubr.f32.mxu0 0.0
        %2057 = vmatmul.mubr.f32.gmra.mrb[0].mxu0 %v1919
        %v2058 = vpop.f32.mrb[0].mxu0
        %v2059 = vadd.f32 0.0, %v2058
        %v2060 = vpop.f32.mrb[0].mxu0
        %v2061 = vadd.f32 0.0, %v2060
        %2062 = vdwg.mxu0
        %2063 = vmatprep.subr.mxu0 %v1907
        %2064 = vmatpush1.msra.mxu0 %v1906
        %2065 = vmatprep.subr.mxu0 %v1915
        %2066 = vmatpush1.msra.mxu0 %v1914
        %2067 = vmatprep.subr.mxu0 0.0
        %2068 = vmatpush1.msra.mxu0 0.0
        %2069 = vmatprep.subr.mxu0 0.0
        %2070 = vmatpush1.msra.mxu0 0.0
        %2071 = vmatprep.subr.mxu0 0.0
        %2072 = vmatpush1.msra.mxu0 0.0
        %2073 = vmatprep.subr.mxu0 0.0
        %2074 = vmatpush1.msra.mxu0 0.0
        %2075 = vmatprep.subr.mxu0 0.0
        %2076 = vmatpush1.msra.mxu0 0.0
        %2077 = vmatprep.subr.mxu0 0.0
        %2078 = vmatpush1.msra.mxu0 0.0
        %2079 = vmatprep.subr.mxu0 0.0
        %2080 = vmatpush1.msra.mxu0 0.0
        %2081 = vmatprep.subr.mxu0 0.0
        %2082 = vmatpush1.msra.mxu0 0.0
        %2083 = vmatprep.subr.mxu0 0.0
        %2084 = vmatpush1.msra.mxu0 0.0
        %2085 = vmatprep.subr.mxu0 0.0
        %2086 = vmatpush1.msra.mxu0 0.0
        %2087 = vmatprep.subr.mxu0 0.0
        %2088 = vmatpush1.msra.mxu0 0.0
        %2089 = vmatprep.subr.mxu0 0.0
        %2090 = vmatpush1.msra.mxu0 0.0
        %2091 = vmatprep.subr.mxu0 0.0
        %2092 = vmatpush1.msra.mxu0 0.0
        %2093 = vmatprep.subr.mxu0 0.0
        %2094 = vmatpush1.msra.mxu0 0.0
        %2095 = vmatprep.subr.mxu0 0.0
        %2096 = vmatpush1.msra.mxu0 0.0
        %2097 = vmatprep.subr.mxu0 0.0
        %2098 = vmatpush1.msra.mxu0 0.0
        %2099 = vmatprep.subr.mxu0 0.0
        %2100 = vmatpush1.msra.mxu0 0.0
        %2101 = vmatprep.subr.mxu0 0.0
        %2102 = vmatpush1.msra.mxu0 0.0
        %2103 = vmatprep.subr.mxu0 0.0
        %2104 = vmatpush1.msra.mxu0 0.0
        %2105 = vmatprep.subr.mxu0 0.0
        %2106 = vmatpush1.msra.mxu0 0.0
        %2107 = vmatprep.subr.mxu0 0.0
        %2108 = vmatpush1.msra.mxu0 0.0
        %2109 = vmatprep.subr.mxu0 0.0
        %2110 = vmatpush1.msra.mxu0 0.0
        %2111 = vmatprep.subr.mxu0 0.0
        %2112 = vmatpush1.msra.mxu0 0.0
        %2113 = vmatprep.subr.mxu0 0.0
        %2114 = vmatpush1.msra.mxu0 0.0
        %2115 = vmatprep.subr.mxu0 0.0
        %2116 = vmatpush1.msra.mxu0 0.0
        %2117 = vmatprep.subr.mxu0 0.0
        %2118 = vmatpush1.msra.mxu0 0.0
        %2119 = vmatprep.subr.mxu0 0.0
        %2120 = vmatpush1.msra.mxu0 0.0
        %2121 = vmatprep.subr.mxu0 0.0
        %2122 = vmatpush1.msra.mxu0 0.0
        %2123 = vmatprep.subr.mxu0 0.0
        %2124 = vmatpush1.msra.mxu0 0.0
        %2125 = vmatprep.subr.mxu0 0.0
        %2126 = vmatpush1.msra.mxu0 0.0
        %2127 = vmatprep.mubr.f32.mxu0 0.0
        %2128 = vmatmul.mubr.f32.gmra.mrb[0].mxu0 %v1919
        %v2129 = vpop.f32.mrb[0].mxu0
        %v2130 = vadd.f32 0.0, %v2129
        %v2131 = vpop.f32.mrb[0].mxu0
        %v2132 = vadd.f32 0.0, %v2131
        %2133 = vdwg.mxu0
        %2134 = vmatprep.subr.mxu0 %v1909
        %2135 = vmatpush1.msra.mxu0 %v1908
        %2136 = vmatprep.subr.mxu0 %v1917
        %2137 = vmatpush1.msra.mxu0 %v1916
        %2138 = vmatprep.subr.mxu0 0.0
        %2139 = vmatpush1.msra.mxu0 0.0
        %2140 = vmatprep.subr.mxu0 0.0
        %2141 = vmatpush1.msra.mxu0 0.0
        %2142 = vmatprep.subr.mxu0 0.0
        %2143 = vmatpush1.msra.mxu0 0.0
        %2144 = vmatprep.subr.mxu0 0.0
        %2145 = vmatpush1.msra.mxu0 0.0
        %2146 = vmatprep.subr.mxu0 0.0
        %2147 = vmatpush1.msra.mxu0 0.0
        %2148 = vmatprep.subr.mxu0 0.0
        %2149 = vmatpush1.msra.mxu0 0.0
        %2150 = vmatprep.subr.mxu0 0.0
        %2151 = vmatpush1.msra.mxu0 0.0
        %2152 = vmatprep.subr.mxu0 0.0
        %2153 = vmatpush1.msra.mxu0 0.0
        %2154 = vmatprep.subr.mxu0 0.0
        %2155 = vmatpush1.msra.mxu0 0.0
        %2156 = vmatprep.subr.mxu0 0.0
        %2157 = vmatpush1.msra.mxu0 0.0
        %2158 = vmatprep.subr.mxu0 0.0
        %2159 = vmatpush1.msra.mxu0 0.0
        %2160 = vmatprep.subr.mxu0 0.0
        %2161 = vmatpush1.msra.mxu0 0.0
        %2162 = vmatprep.subr.mxu0 0.0
        %2163 = vmatpush1.msra.mxu0 0.0
        %2164 = vmatprep.subr.mxu0 0.0
        %2165 = vmatpush1.msra.mxu0 0.0
        %2166 = vmatprep.subr.mxu0 0.0
        %2167 = vmatpush1.msra.mxu0 0.0
        %2168 = vmatprep.subr.mxu0 0.0
        %2169 = vmatpush1.msra.mxu0 0.0
        %2170 = vmatprep.subr.mxu0 0.0
        %2171 = vmatpush1.msra.mxu0 0.0
        %2172 = vmatprep.subr.mxu0 0.0
        %2173 = vmatpush1.msra.mxu0 0.0
        %2174 = vmatprep.subr.mxu0 0.0
        %2175 = vmatpush1.msra.mxu0 0.0
        %2176 = vmatprep.subr.mxu0 0.0
        %2177 = vmatpush1.msra.mxu0 0.0
        %2178 = vmatprep.subr.mxu0 0.0
        %2179 = vmatpush1.msra.mxu0 0.0
        %2180 = vmatprep.subr.mxu0 0.0
        %2181 = vmatpush1.msra.mxu0 0.0
        %2182 = vmatprep.subr.mxu0 0.0
        %2183 = vmatpush1.msra.mxu0 0.0
        %2184 = vmatprep.subr.mxu0 0.0
        %2185 = vmatpush1.msra.mxu0 0.0
        %2186 = vmatprep.subr.mxu0 0.0
        %2187 = vmatpush1.msra.mxu0 0.0
        %2188 = vmatprep.subr.mxu0 0.0
        %2189 = vmatpush1.msra.mxu0 0.0
        %2190 = vmatprep.subr.mxu0 0.0
        %2191 = vmatpush1.msra.mxu0 0.0
        %2192 = vmatprep.subr.mxu0 0.0
        %2193 = vmatpush1.msra.mxu0 0.0
        %2194 = vmatprep.subr.mxu0 0.0
        %2195 = vmatpush1.msra.mxu0 0.0
        %2196 = vmatprep.subr.mxu0 0.0
        %2197 = vmatpush1.msra.mxu0 0.0
        %2198 = vmatprep.mubr.f32.mxu0 0.0
        %2199 = vmatmul.mubr.f32.gmra.mrb[0].mxu0 %v1919
        %v2200 = vpop.f32.mrb[0].mxu0
        %v2201 = vadd.f32 0.0, %v2200
        %v2202 = vpop.f32.mrb[0].mxu0
        %v2203 = vadd.f32 0.0, %v2202
        %2204 = vdwg.mxu0
        %2205 = vmatprep.subr.mxu0 0.0
        %2206 = vmatpush1.msra.mxu0 %v506
        %2207 = vmatprep.subr.mxu0 0.0
        %2208 = vmatpush1.msra.mxu0 %v507
        %2209 = vmatprep.subr.mxu0 0.0
        %2210 = vmatpush1.msra.mxu0 %v508
        %2211 = vmatprep.subr.mxu0 0.0
        %2212 = vmatpush1.msra.mxu0 %v509
        %2213 = vmatprep.subr.mxu0 0.0
        %2214 = vmatpush1.msra.mxu0 %v510
        %2215 = vmatprep.subr.mxu0 0.0
        %2216 = vmatpush1.msra.mxu0 %v511
        %2217 = vmatprep.subr.mxu0 0.0
        %2218 = vmatpush1.msra.mxu0 %v512
        %2219 = vmatprep.subr.mxu0 0.0
        %2220 = vmatpush1.msra.mxu0 %v513
        %2221 = vmatprep.subr.mxu0 0.0
        %2222 = vmatpush1.msra.mxu0 %v514
        %2223 = vmatprep.subr.mxu0 0.0
        %2224 = vmatpush1.msra.mxu0 %v515
        %2225 = vmatprep.subr.mxu0 0.0
        %2226 = vmatpush1.msra.mxu0 %v516
        %2227 = vmatprep.subr.mxu0 0.0
        %2228 = vmatpush1.msra.mxu0 %v517
        %2229 = vmatprep.subr.mxu0 0.0
        %2230 = vmatpush1.msra.mxu0 %v518
        %2231 = vmatprep.subr.mxu0 0.0
        %2232 = vmatpush1.msra.mxu0 %v519
        %2233 = vmatprep.subr.mxu0 0.0
        %2234 = vmatpush1.msra.mxu0 %v520
        %2235 = vmatprep.subr.mxu0 0.0
        %2236 = vmatpush1.msra.mxu0 %v521
        %2237 = vmatprep.subr.mxu0 0.0
        %2238 = vmatpush1.msra.mxu0 %v522
        %2239 = vmatprep.subr.mxu0 0.0
        %2240 = vmatpush1.msra.mxu0 %v523
        %2241 = vmatprep.subr.mxu0 0.0
        %2242 = vmatpush1.msra.mxu0 %v524
        %2243 = vmatprep.subr.mxu0 0.0
        %2244 = vmatpush1.msra.mxu0 %v525
        %2245 = vmatprep.subr.mxu0 0.0
        %2246 = vmatpush1.msra.mxu0 %v526
        %2247 = vmatprep.subr.mxu0 0.0
        %2248 = vmatpush1.msra.mxu0 %v527
        %2249 = vmatprep.subr.mxu0 0.0
        %2250 = vmatpush1.msra.mxu0 %v528
        %2251 = vmatprep.subr.mxu0 0.0
        %2252 = vmatpush1.msra.mxu0 %v529
        %2253 = vmatprep.subr.mxu0 0.0
        %2254 = vmatpush1.msra.mxu0 %v530
        %2255 = vmatprep.subr.mxu0 0.0
        %2256 = vmatpush1.msra.mxu0 %v531
        %2257 = vmatprep.subr.mxu0 0.0
        %2258 = vmatpush1.msra.mxu0 %v532
        %2259 = vmatprep.subr.mxu0 0.0
        %2260 = vmatpush1.msra.mxu0 %v533
        %2261 = vmatprep.subr.mxu0 0.0
        %2262 = vmatpush1.msra.mxu0 %v534
        %2263 = vmatprep.subr.mxu0 0.0
        %2264 = vmatpush1.msra.mxu0 %v535
        %2265 = vmatprep.subr.mxu0 0.0
        %2266 = vmatpush1.msra.mxu0 %v536
        %2267 = vmatprep.subr.mxu0 0.0
        %2268 = vmatpush1.msra.mxu0 %v537
        %2269 = vmatprep.mubr.f32.mxu0 %v1990
        %2270 = vmatmul.mubr.f32.gmra.mrb[0].mxu0 %v1988
        %v2271 = vpop.f32.mrb[0].mxu0
        %v2272 = vadd.f32 0.0, %v2271
        %v2273 = vpop.f32.mrb[0].mxu0
        %2274 = vdwg.mxu0
        %2275 = vmatprep.subr.mxu0 0.0
        %2276 = vmatpush1.msra.mxu0 %v538
        %2277 = vmatprep.subr.mxu0 0.0
        %2278 = vmatpush1.msra.mxu0 %v539
        %2279 = vmatprep.subr.mxu0 0.0
        %2280 = vmatpush1.msra.mxu0 %v540
        %2281 = vmatprep.subr.mxu0 0.0
        %2282 = vmatpush1.msra.mxu0 %v541
        %2283 = vmatprep.subr.mxu0 0.0
        %2284 = vmatpush1.msra.mxu0 %v542
        %2285 = vmatprep.subr.mxu0 0.0
        %2286 = vmatpush1.msra.mxu0 %v543
        %2287 = vmatprep.subr.mxu0 0.0
        %2288 = vmatpush1.msra.mxu0 %v544
        %2289 = vmatprep.subr.mxu0 0.0
        %2290 = vmatpush1.msra.mxu0 %v545
        %2291 = vmatprep.subr.mxu0 0.0
        %2292 = vmatpush1.msra.mxu0 %v546
        %2293 = vmatprep.subr.mxu0 0.0
        %2294 = vmatpush1.msra.mxu0 %v547
        %2295 = vmatprep.subr.mxu0 0.0
        %2296 = vmatpush1.msra.mxu0 %v548
        %2297 = vmatprep.subr.mxu0 0.0
        %2298 = vmatpush1.msra.mxu0 %v549
        %2299 = vmatprep.subr.mxu0 0.0
        %2300 = vmatpush1.msra.mxu0 %v550
        %2301 = vmatprep.subr.mxu0 0.0
        %2302 = vmatpush1.msra.mxu0 %v551
        %2303 = vmatprep.subr.mxu0 0.0
        %2304 = vmatpush1.msra.mxu0 %v552
        %2305 = vmatprep.subr.mxu0 0.0
        %2306 = vmatpush1.msra.mxu0 %v553
        %2307 = vmatprep.subr.mxu0 0.0
        %2308 = vmatpush1.msra.mxu0 %v554
        %2309 = vmatprep.subr.mxu0 0.0
        %2310 = vmatpush1.msra.mxu0 %v555
        %2311 = vmatprep.subr.mxu0 0.0
        %2312 = vmatpush1.msra.mxu0 %v556
        %2313 = vmatprep.subr.mxu0 0.0
        %2314 = vmatpush1.msra.mxu0 %v557
        %2315 = vmatprep.subr.mxu0 0.0
        %2316 = vmatpush1.msra.mxu0 %v558
        %2317 = vmatprep.subr.mxu0 0.0
        %2318 = vmatpush1.msra.mxu0 %v559
        %2319 = vmatprep.subr.mxu0 0.0
        %2320 = vmatpush1.msra.mxu0 %v560
        %2321 = vmatprep.subr.mxu0 0.0
        %2322 = vmatpush1.msra.mxu0 %v561
        %2323 = vmatprep.subr.mxu0 0.0
        %2324 = vmatpush1.msra.mxu0 %v562
        %2325 = vmatprep.subr.mxu0 0.0
        %2326 = vmatpush1.msra.mxu0 %v563
        %2327 = vmatprep.subr.mxu0 0.0
        %2328 = vmatpush1.msra.mxu0 %v564
        %2329 = vmatprep.subr.mxu0 0.0
        %2330 = vmatpush1.msra.mxu0 %v565
        %2331 = vmatprep.subr.mxu0 0.0
        %2332 = vmatpush1.msra.mxu0 %v566
        %2333 = vmatprep.subr.mxu0 0.0
        %2334 = vmatpush1.msra.mxu0 %v567
        %2335 = vmatprep.subr.mxu0 0.0
        %2336 = vmatpush1.msra.mxu0 %v568
        %2337 = vmatprep.subr.mxu0 0.0
        %2338 = vmatpush1.msra.mxu0 %v569
        %2339 = vmatprep.mubr.f32.mxu0 %v2061
        %2340 = vmatmul.mubr.f32.gmra.mrb[0].mxu0 %v2059
        %v2341 = vpop.f32.mrb[0].mxu0
        %v2342 = vadd.f32 %v2272, %v2341
        %v2343 = vpop.f32.mrb[0].mxu0
        %2344 = vdwg.mxu0
        %2345 = vmatprep.subr.mxu0 0.0
        %2346 = vmatpush1.msra.mxu0 %v570
        %2347 = vmatprep.subr.mxu0 0.0
        %2348 = vmatpush1.msra.mxu0 %v571
        %2349 = vmatprep.subr.mxu0 0.0
        %2350 = vmatpush1.msra.mxu0 %v572
        %2351 = vmatprep.subr.mxu0 0.0
        %2352 = vmatpush1.msra.mxu0 %v573
        %2353 = vmatprep.subr.mxu0 0.0
        %2354 = vmatpush1.msra.mxu0 %v574
        %2355 = vmatprep.subr.mxu0 0.0
        %2356 = vmatpush1.msra.mxu0 %v575
        %2357 = vmatprep.subr.mxu0 0.0
        %2358 = vmatpush1.msra.mxu0 %v576
        %2359 = vmatprep.subr.mxu0 0.0
        %2360 = vmatpush1.msra.mxu0 %v577
        %2361 = vmatprep.subr.mxu0 0.0
        %2362 = vmatpush1.msra.mxu0 %v578
        %2363 = vmatprep.subr.mxu0 0.0
        %2364 = vmatpush1.msra.mxu0 %v579
        %2365 = vmatprep.subr.mxu0 0.0
        %2366 = vmatpush1.msra.mxu0 %v580
        %2367 = vmatprep.subr.mxu0 0.0
        %2368 = vmatpush1.msra.mxu0 %v581
        %2369 = vmatprep.subr.mxu0 0.0
        %2370 = vmatpush1.msra.mxu0 %v582
        %2371 = vmatprep.subr.mxu0 0.0
        %2372 = vmatpush1.msra.mxu0 %v583
        %2373 = vmatprep.subr.mxu0 0.0
        %2374 = vmatpush1.msra.mxu0 %v584
        %2375 = vmatprep.subr.mxu0 0.0
        %2376 = vmatpush1.msra.mxu0 %v585
        %2377 = vmatprep.subr.mxu0 0.0
        %2378 = vmatpush1.msra.mxu0 %v586
        %2379 = vmatprep.subr.mxu0 0.0
        %2380 = vmatpush1.msra.mxu0 %v587
        %2381 = vmatprep.subr.mxu0 0.0
        %2382 = vmatpush1.msra.mxu0 %v588
        %2383 = vmatprep.subr.mxu0 0.0
        %2384 = vmatpush1.msra.mxu0 %v589
        %2385 = vmatprep.subr.mxu0 0.0
        %2386 = vmatpush1.msra.mxu0 %v590
        %2387 = vmatprep.subr.mxu0 0.0
        %2388 = vmatpush1.msra.mxu0 %v591
        %2389 = vmatprep.subr.mxu0 0.0
        %2390 = vmatpush1.msra.mxu0 %v592
        %2391 = vmatprep.subr.mxu0 0.0
        %2392 = vmatpush1.msra.mxu0 %v593
        %2393 = vmatprep.subr.mxu0 0.0
        %2394 = vmatpush1.msra.mxu0 %v594
        %2395 = vmatprep.subr.mxu0 0.0
        %2396 = vmatpush1.msra.mxu0 %v595
        %2397 = vmatprep.subr.mxu0 0.0
        %2398 = vmatpush1.msra.mxu0 %v596
        %2399 = vmatprep.subr.mxu0 0.0
        %2400 = vmatpush1.msra.mxu0 %v597
        %2401 = vmatprep.subr.mxu0 0.0
        %2402 = vmatpush1.msra.mxu0 %v598
        %2403 = vmatprep.subr.mxu0 0.0
        %2404 = vmatpush1.msra.mxu0 %v599
        %2405 = vmatprep.subr.mxu0 0.0
        %2406 = vmatpush1.msra.mxu0 %v600
        %2407 = vmatprep.subr.mxu0 0.0
        %2408 = vmatpush1.msra.mxu0 %v601
        %2409 = vmatprep.mubr.f32.mxu0 %v2132
        %2410 = vmatmul.mubr.f32.gmra.mrb[0].mxu0 %v2130
        %v2411 = vpop.f32.mrb[0].mxu0
        %v2412 = vadd.f32 %v2342, %v2411
        %v2413 = vpop.f32.mrb[0].mxu0
        %2414 = vdwg.mxu0
        %2415 = vmatprep.subr.mxu0 0.0
        %2416 = vmatpush1.msra.mxu0 %v602
        %2417 = vmatprep.subr.mxu0 0.0
        %2418 = vmatpush1.msra.mxu0 %v603
        %2419 = vmatprep.subr.mxu0 0.0
        %2420 = vmatpush1.msra.mxu0 %v604
        %2421 = vmatprep.subr.mxu0 0.0
        %2422 = vmatpush1.msra.mxu0 %v605
        %2423 = vmatprep.subr.mxu0 0.0
        %2424 = vmatpush1.msra.mxu0 %v606
        %2425 = vmatprep.subr.mxu0 0.0
        %2426 = vmatpush1.msra.mxu0 %v607
        %2427 = vmatprep.subr.mxu0 0.0
        %2428 = vmatpush1.msra.mxu0 %v608
        %2429 = vmatprep.subr.mxu0 0.0
        %2430 = vmatpush1.msra.mxu0 %v609
        %2431 = vmatprep.subr.mxu0 0.0
        %2432 = vmatpush1.msra.mxu0 %v610
        %2433 = vmatprep.subr.mxu0 0.0
        %2434 = vmatpush1.msra.mxu0 %v611
        %2435 = vmatprep.subr.mxu0 0.0
        %2436 = vmatpush1.msra.mxu0 %v612
        %2437 = vmatprep.subr.mxu0 0.0
        %2438 = vmatpush1.msra.mxu0 %v613
        %2439 = vmatprep.subr.mxu0 0.0
        %2440 = vmatpush1.msra.mxu0 %v614
        %2441 = vmatprep.subr.mxu0 0.0
        %2442 = vmatpush1.msra.mxu0 %v615
        %2443 = vmatprep.subr.mxu0 0.0
        %2444 = vmatpush1.msra.mxu0 %v616
        %2445 = vmatprep.subr.mxu0 0.0
        %2446 = vmatpush1.msra.mxu0 %v617
        %2447 = vmatprep.subr.mxu0 0.0
        %2448 = vmatpush1.msra.mxu0 %v618
        %2449 = vmatprep.subr.mxu0 0.0
        %2450 = vmatpush1.msra.mxu0 %v619
        %2451 = vmatprep.subr.mxu0 0.0
        %2452 = vmatpush1.msra.mxu0 %v620
        %2453 = vmatprep.subr.mxu0 0.0
        %2454 = vmatpush1.msra.mxu0 %v621
        %2455 = vmatprep.subr.mxu0 0.0
        %2456 = vmatpush1.msra.mxu0 %v622
        %2457 = vmatprep.subr.mxu0 0.0
        %2458 = vmatpush1.msra.mxu0 %v623
        %2459 = vmatprep.subr.mxu0 0.0
        %2460 = vmatpush1.msra.mxu0 %v624
        %2461 = vmatprep.subr.mxu0 0.0
        %2462 = vmatpush1.msra.mxu0 %v625
        %2463 = vmatprep.subr.mxu0 0.0
        %2464 = vmatpush1.msra.mxu0 %v626
        %2465 = vmatprep.subr.mxu0 0.0
        %2466 = vmatpush1.msra.mxu0 %v627
        %2467 = vmatprep.subr.mxu0 0.0
        %2468 = vmatpush1.msra.mxu0 %v628
        %2469 = vmatprep.subr.mxu0 0.0
        %2470 = vmatpush1.msra.mxu0 %v629
        %2471 = vmatprep.subr.mxu0 0.0
        %2472 = vmatpush1.msra.mxu0 %v630
        %2473 = vmatprep.subr.mxu0 0.0
        %2474 = vmatpush1.msra.mxu0 %v631
        %2475 = vmatprep.subr.mxu0 0.0
        %2476 = vmatpush1.msra.mxu0 %v632
        %2477 = vmatprep.subr.mxu0 0.0
        %2478 = vmatpush1.msra.mxu0 %v633
        %2479 = vmatprep.mubr.f32.mxu0 %v2203
        %2480 = vmatmul.mubr.f32.gmra.mrb[0].mxu0 %v2201
        %v2481 = vpop.f32.mrb[0].mxu0
        %v2482 = vadd.f32 %v2412, %v2481
        %v2483 = vpop.f32.mrb[0].mxu0
        %2484 = vdwg.mxu0
        %2485 = vmatprep.subr.mxu0 0.0
        %2486 = vmatpush1.msra.mxu0 %v638
        %2487 = vmatprep.subr.mxu0 0.0
        %2488 = vmatpush1.msra.mxu0 %v639
        %2489 = vmatprep.subr.mxu0 0.0
        %2490 = vmatpush1.msra.mxu0 %v640
        %2491 = vmatprep.subr.mxu0 0.0
        %2492 = vmatpush1.msra.mxu0 %v641
        %2493 = vmatprep.subr.mxu0 0.0
        %2494 = vmatpush1.msra.mxu0 0.0
        %2495 = vmatprep.subr.mxu0 0.0
        %2496 = vmatpush1.msra.mxu0 0.0
        %2497 = vmatprep.subr.mxu0 0.0
        %2498 = vmatpush1.msra.mxu0 0.0
        %2499 = vmatprep.subr.mxu0 0.0
        %2500 = vmatpush1.msra.mxu0 0.0
        %2501 = vmatprep.subr.mxu0 0.0
        %2502 = vmatpush1.msra.mxu0 0.0
        %2503 = vmatprep.subr.mxu0 0.0
        %2504 = vmatpush1.msra.mxu0 0.0
        %2505 = vmatprep.subr.mxu0 0.0
        %2506 = vmatpush1.msra.mxu0 0.0
        %2507 = vmatprep.subr.mxu0 0.0
        %2508 = vmatpush1.msra.mxu0 0.0
        %2509 = vmatprep.subr.mxu0 0.0
        %2510 = vmatpush1.msra.mxu0 0.0
        %2511 = vmatprep.subr.mxu0 0.0
        %2512 = vmatpush1.msra.mxu0 0.0
        %2513 = vmatprep.subr.mxu0 0.0
        %2514 = vmatpush1.msra.mxu0 0.0
        %2515 = vmatprep.subr.mxu0 0.0
        %2516 = vmatpush1.msra.mxu0 0.0
        %2517 = vmatprep.subr.mxu0 0.0
        %2518 = vmatpush1.msra.mxu0 0.0
        %2519 = vmatprep.subr.mxu0 0.0
        %2520 = vmatpush1.msra.mxu0 0.0
        %2521 = vmatprep.subr.mxu0 0.0
        %2522 = vmatpush1.msra.mxu0 0.0
        %2523 = vmatprep.subr.mxu0 0.0
        %2524 = vmatpush1.msra.mxu0 0.0
        %2525 = vmatprep.subr.mxu0 0.0
        %2526 = vmatpush1.msra.mxu0 0.0
        %2527 = vmatprep.subr.mxu0 0.0
        %2528 = vmatpush1.msra.mxu0 0.0
        %2529 = vmatprep.subr.mxu0 0.0
        %2530 = vmatpush1.msra.mxu0 0.0
        %2531 = vmatprep.subr.mxu0 0.0
        %2532 = vmatpush1.msra.mxu0 0.0
        %2533 = vmatprep.subr.mxu0 0.0
        %2534 = vmatpush1.msra.mxu0 0.0
        %2535 = vmatprep.subr.mxu0 0.0
        %2536 = vmatpush1.msra.mxu0 0.0
        %2537 = vmatprep.subr.mxu0 0.0
        %2538 = vmatpush1.msra.mxu0 0.0
        %2539 = vmatprep.subr.mxu0 0.0
        %2540 = vmatpush1.msra.mxu0 0.0
        %2541 = vmatprep.subr.mxu0 0.0
        %2542 = vmatpush1.msra.mxu0 0.0
        %2543 = vmatprep.subr.mxu0 0.0
        %2544 = vmatpush1.msra.mxu0 0.0
        %2545 = vmatprep.subr.mxu0 0.0
        %2546 = vmatpush1.msra.mxu0 0.0
        %2547 = vmatprep.subr.mxu0 0.0
        %2548 = vmatpush1.msra.mxu0 0.0
        %2549 = vmatprep.mubr.f32.mxu0 0.0
        %2550 = vmatmul.mubr.f32.gmra.mrb[0].mxu0 %v1302
        %v2551 = vpop.f32.mrb[0].mxu0
        %v2552 = vadd.f32 0.0, %v2551
        %v2553 = vpop.f32.mrb[0].mxu0
        %2554 = vdwg.mxu0
        %v2556 = vsel %vm1300, %v2482, 0
        %2558 = vmatprep.subr.mxu0 0.0
        %2559 = vmatpush1.msra.mxu0 %v634
        %2560 = vmatprep.subr.mxu0 0.0
        %2561 = vmatpush1.msra.mxu0 %v635
        %2562 = vmatprep.subr.mxu0 0.0
        %2563 = vmatpush1.msra.mxu0 %v636
        %2564 = vmatprep.subr.mxu0 0.0
        %2565 = vmatpush1.msra.mxu0 %v637
        %2566 = vmatprep.subr.mxu0 0.0
        %2567 = vmatpush1.msra.mxu0 0.0
        %2568 = vmatprep.subr.mxu0 0.0
        %2569 = vmatpush1.msra.mxu0 0.0
        %2570 = vmatprep.subr.mxu0 0.0
        %2571 = vmatpush1.msra.mxu0 0.0
        %2572 = vmatprep.subr.mxu0 0.0
        %2573 = vmatpush1.msra.mxu0 0.0
        %2574 = vmatprep.subr.mxu0 0.0
        %2575 = vmatpush1.msra.mxu0 0.0
        %2576 = vmatprep.subr.mxu0 0.0
        %2577 = vmatpush1.msra.mxu0 0.0
        %2578 = vmatprep.subr.mxu0 0.0
        %2579 = vmatpush1.msra.mxu0 0.0
        %2580 = vmatprep.subr.mxu0 0.0
        %2581 = vmatpush1.msra.mxu0 0.0
        %2582 = vmatprep.subr.mxu0 0.0
        %2583 = vmatpush1.msra.mxu0 0.0
        %2584 = vmatprep.subr.mxu0 0.0
        %2585 = vmatpush1.msra.mxu0 0.0
        %2586 = vmatprep.subr.mxu0 0.0
        %2587 = vmatpush1.msra.mxu0 0.0
        %2588 = vmatprep.subr.mxu0 0.0
        %2589 = vmatpush1.msra.mxu0 0.0
        %2590 = vmatprep.subr.mxu0 0.0
        %2591 = vmatpush1.msra.mxu0 0.0
        %2592 = vmatprep.subr.mxu0 0.0
        %2593 = vmatpush1.msra.mxu0 0.0
        %2594 = vmatprep.subr.mxu0 0.0
        %2595 = vmatpush1.msra.mxu0 0.0
        %2596 = vmatprep.subr.mxu0 0.0
        %2597 = vmatpush1.msra.mxu0 0.0
        %2598 = vmatprep.subr.mxu0 0.0
        %2599 = vmatpush1.msra.mxu0 0.0
        %2600 = vmatprep.subr.mxu0 0.0
        %2601 = vmatpush1.msra.mxu0 0.0
        %2602 = vmatprep.subr.mxu0 0.0
        %2603 = vmatpush1.msra.mxu0 0.0
        %2604 = vmatprep.subr.mxu0 0.0
        %2605 = vmatpush1.msra.mxu0 0.0
        %2606 = vmatprep.subr.mxu0 0.0
        %2607 = vmatpush1.msra.mxu0 0.0
        %2608 = vmatprep.subr.mxu0 0.0
        %2609 = vmatpush1.msra.mxu0 0.0
        %2610 = vmatprep.subr.mxu0 0.0
        %2611 = vmatpush1.msra.mxu0 0.0
        %2612 = vmatprep.subr.mxu0 0.0
        %2613 = vmatpush1.msra.mxu0 0.0
        %2614 = vmatprep.subr.mxu0 0.0
        %2615 = vmatpush1.msra.mxu0 0.0
        %2616 = vmatprep.subr.mxu0 0.0
        %2617 = vmatpush1.msra.mxu0 0.0
        %2618 = vmatprep.subr.mxu0 0.0
        %2619 = vmatpush1.msra.mxu0 0.0
        %2620 = vmatprep.subr.mxu0 0.0
        %2621 = vmatpush1.msra.mxu0 0.0
        %2622 = vmatprep.mubr.f32.mxu0 0.0
        %2623 = vmatmul.mubr.f32.gmra.mrb[0].mxu0 %v2556
        %v2624 = vpop.f32.mrb[0].mxu0
        %v2625 = vadd.f32 %v2552, %v2624
        %v2626 = vpop.f32.mrb[0].mxu0
        %2627 = vdwg.mxu0
        %v2628 = vlaneseq
        %v2629 = vshrl.u32 %v2628, 7
        %v2630 = vsub.s32 1, %v2629
        %v2631 = vrot.slane %v467, %v2630
        %2632 = vrot.lane.b32.xlu0 %v2631, 64
        %v2633 = vpop.permute.xlu0 %2632
        %v2634 = vsel %vm969, %v968, %v2633
        %v2636 = vadd.f32 %v2625, %v2634
        %v2637 = vxor.u32 %v2636, 2147483648
        %v2638 = vmul.f32 %v2637, 1.442695
        %v2639 = vpow.pop %v2638
        %v2640 = vadd.f32 %v2639, 1.0
        %v2641 = vrcp.pop %v2640
        %v2642 = vmul.f32 1.0, %v2641
        %2644 = vrot.lane.b32.xlu0 %v2636, 32
        %v2645 = vpop.permute.xlu0 %2644
        %v2647 = vmul.f32 %v2642, %v2645
        %2649 = vrot.lane.b32.xlu0 %v2647, 64
        %v2650 = vpop.permute.xlu0 %2649
        %v2652 = vadd.f32 %v2636, %v2650
        %v2653 = vtanh.pop %v2652
        %v2654 = vsub.f32 1.0, %v2642
        %2656 = vrot.lane.b32.xlu0 %v2653, 96
        %v2657 = vpop.permute.xlu0 %2656
        %v2659 = vmul.f32 %v2654, %v2657
        %2660 = vrot.lane.b32.xlu0 %v721, 32
        %v2661 = vpop.permute.xlu0 %2660
        %v2663 = vmul.f32 %v2642, %v2661
        %v2664 = vadd.f32 %v2659, %v2663
        %2666 = vrot.lane.b32.xlu0 %v2664, 96
        %v2667 = vpop.permute.xlu0 %2666
        %v2668 = vsel %vm1300, %v2667, 0
        %2670 = vmatprep.subr.mxu0 %v475
        %2671 = vmatpush1.msra.mxu0 %v474
        %2672 = vmatprep.subr.mxu0 %v483
        %2673 = vmatpush1.msra.mxu0 %v482
        %2674 = vmatprep.subr.mxu0 %v491
        %2675 = vmatpush1.msra.mxu0 %v490
        %2676 = vmatprep.subr.mxu0 %v499
        %2677 = vmatpush1.msra.mxu0 %v498
        %2678 = vmatprep.subr.mxu0 0.0
        %2679 = vmatpush1.msra.mxu0 0.0
        %2680 = vmatprep.subr.mxu0 0.0
        %2681 = vmatpush1.msra.mxu0 0.0
        %2682 = vmatprep.subr.mxu0 0.0
        %2683 = vmatpush1.msra.mxu0 0.0
        %2684 = vmatprep.subr.mxu0 0.0
        %2685 = vmatpush1.msra.mxu0 0.0
        %2686 = vmatprep.subr.mxu0 0.0
        %2687 = vmatpush1.msra.mxu0 0.0
        %2688 = vmatprep.subr.mxu0 0.0
        %2689 = vmatpush1.msra.mxu0 0.0
        %2690 = vmatprep.subr.mxu0 0.0
        %2691 = vmatpush1.msra.mxu0 0.0
        %2692 = vmatprep.subr.mxu0 0.0
        %2693 = vmatpush1.msra.mxu0 0.0
        %2694 = vmatprep.subr.mxu0 0.0
        %2695 = vmatpush1.msra.mxu0 0.0
        %2696 = vmatprep.subr.mxu0 0.0
        %2697 = vmatpush1.msra.mxu0 0.0
        %2698 = vmatprep.subr.mxu0 0.0
        %2699 = vmatpush1.msra.mxu0 0.0
        %2700 = vmatprep.subr.mxu0 0.0
        %2701 = vmatpush1.msra.mxu0 0.0
        %2702 = vmatprep.subr.mxu0 0.0
        %2703 = vmatpush1.msra.mxu0 0.0
        %2704 = vmatprep.subr.mxu0 0.0
        %2705 = vmatpush1.msra.mxu0 0.0
        %2706 = vmatprep.subr.mxu0 0.0
        %2707 = vmatpush1.msra.mxu0 0.0
        %2708 = vmatprep.subr.mxu0 0.0
        %2709 = vmatpush1.msra.mxu0 0.0
        %2710 = vmatprep.subr.mxu0 0.0
        %2711 = vmatpush1.msra.mxu0 0.0
        %2712 = vmatprep.subr.mxu0 0.0
        %2713 = vmatpush1.msra.mxu0 0.0
        %2714 = vmatprep.subr.mxu0 0.0
        %2715 = vmatpush1.msra.mxu0 0.0
        %2716 = vmatprep.subr.mxu0 0.0
        %2717 = vmatpush1.msra.mxu0 0.0
        %2718 = vmatprep.subr.mxu0 0.0
        %2719 = vmatpush1.msra.mxu0 0.0
        %2720 = vmatprep.subr.mxu0 0.0
        %2721 = vmatpush1.msra.mxu0 0.0
        %2722 = vmatprep.subr.mxu0 0.0
        %2723 = vmatpush1.msra.mxu0 0.0
        %2724 = vmatprep.subr.mxu0 0.0
        %2725 = vmatpush1.msra.mxu0 0.0
        %2726 = vmatprep.subr.mxu0 0.0
        %2727 = vmatpush1.msra.mxu0 0.0
        %2728 = vmatprep.subr.mxu0 0.0
        %2729 = vmatpush1.msra.mxu0 0.0
        %2730 = vmatprep.subr.mxu0 0.0
        %2731 = vmatpush1.msra.mxu0 0.0
        %2732 = vmatprep.subr.mxu0 0.0
        %2733 = vmatpush1.msra.mxu0 0.0
        %2734 = vmatprep.mubr.f32.mxu0 0.0
        %2735 = vmatmul.mubr.f32.gmra.mrb[0].mxu0 %v2668
        %v2736 = vpop.f32.mrb[0].mxu0
        %v2737 = vadd.f32 0.0, %v2736
        %v2738 = vpop.f32.mrb[0].mxu0
        %v2739 = vadd.f32 0.0, %v2738
        %2740 = vdwg.mxu0
        %2741 = vmatprep.subr.mxu0 %v477
        %2742 = vmatpush1.msra.mxu0 %v476
        %2743 = vmatprep.subr.mxu0 %v485
        %2744 = vmatpush1.msra.mxu0 %v484
        %2745 = vmatprep.subr.mxu0 %v493
        %2746 = vmatpush1.msra.mxu0 %v492
        %2747 = vmatprep.subr.mxu0 %v501
        %2748 = vmatpush1.msra.mxu0 %v500
        %2749 = vmatprep.subr.mxu0 0.0
        %2750 = vmatpush1.msra.mxu0 0.0
        %2751 = vmatprep.subr.mxu0 0.0
        %2752 = vmatpush1.msra.mxu0 0.0
        %2753 = vmatprep.subr.mxu0 0.0
        %2754 = vmatpush1.msra.mxu0 0.0
        %2755 = vmatprep.subr.mxu0 0.0
        %2756 = vmatpush1.msra.mxu0 0.0
        %2757 = vmatprep.subr.mxu0 0.0
        %2758 = vmatpush1.msra.mxu0 0.0
        %2759 = vmatprep.subr.mxu0 0.0
        %2760 = vmatpush1.msra.mxu0 0.0
        %2761 = vmatprep.subr.mxu0 0.0
        %2762 = vmatpush1.msra.mxu0 0.0
        %2763 = vmatprep.subr.mxu0 0.0
        %2764 = vmatpush1.msra.mxu0 0.0
        %2765 = vmatprep.subr.mxu0 0.0
        %2766 = vmatpush1.msra.mxu0 0.0
        %2767 = vmatprep.subr.mxu0 0.0
        %2768 = vmatpush1.msra.mxu0 0.0
        %2769 = vmatprep.subr.mxu0 0.0
        %2770 = vmatpush1.msra.mxu0 0.0
        %2771 = vmatprep.subr.mxu0 0.0
        %2772 = vmatpush1.msra.mxu0 0.0
        %2773 = vmatprep.subr.mxu0 0.0
        %2774 = vmatpush1.msra.mxu0 0.0
        %2775 = vmatprep.subr.mxu0 0.0
        %2776 = vmatpush1.msra.mxu0 0.0
        %2777 = vmatprep.subr.mxu0 0.0
        %2778 = vmatpush1.msra.mxu0 0.0
        %2779 = vmatprep.subr.mxu0 0.0
        %2780 = vmatpush1.msra.mxu0 0.0
        %2781 = vmatprep.subr.mxu0 0.0
        %2782 = vmatpush1.msra.mxu0 0.0
        %2783 = vmatprep.subr.mxu0 0.0
        %2784 = vmatpush1.msra.mxu0 0.0
        %2785 = vmatprep.subr.mxu0 0.0
        %2786 = vmatpush1.msra.mxu0 0.0
        %2787 = vmatprep.subr.mxu0 0.0
        %2788 = vmatpush1.msra.mxu0 0.0
        %2789 = vmatprep.subr.mxu0 0.0
        %2790 = vmatpush1.msra.mxu0 0.0
        %2791 = vmatprep.subr.mxu0 0.0
        %2792 = vmatpush1.msra.mxu0 0.0
        %2793 = vmatprep.subr.mxu0 0.0
        %2794 = vmatpush1.msra.mxu0 0.0
        %2795 = vmatprep.subr.mxu0 0.0
        %2796 = vmatpush1.msra.mxu0 0.0
        %2797 = vmatprep.subr.mxu0 0.0
        %2798 = vmatpush1.msra.mxu0 0.0
        %2799 = vmatprep.subr.mxu0 0.0
        %2800 = vmatpush1.msra.mxu0 0.0
        %2801 = vmatprep.subr.mxu0 0.0
        %2802 = vmatpush1.msra.mxu0 0.0
        %2803 = vmatprep.subr.mxu0 0.0
        %2804 = vmatpush1.msra.mxu0 0.0
        %2805 = vmatprep.mubr.f32.mxu0 0.0
        %2806 = vmatmul.mubr.f32.gmra.mrb[0].mxu0 %v2668
        %v2807 = vpop.f32.mrb[0].mxu0
        %v2808 = vadd.f32 0.0, %v2807
        %v2809 = vpop.f32.mrb[0].mxu0
        %v2810 = vadd.f32 0.0, %v2809
        %2811 = vdwg.mxu0
        %2812 = vmatprep.subr.mxu0 %v479
        %2813 = vmatpush1.msra.mxu0 %v478
        %2814 = vmatprep.subr.mxu0 %v487
        %2815 = vmatpush1.msra.mxu0 %v486
        %2816 = vmatprep.subr.mxu0 %v495
        %2817 = vmatpush1.msra.mxu0 %v494
        %2818 = vmatprep.subr.mxu0 %v503
        %2819 = vmatpush1.msra.mxu0 %v502
        %2820 = vmatprep.subr.mxu0 0.0
        %2821 = vmatpush1.msra.mxu0 0.0
        %2822 = vmatprep.subr.mxu0 0.0
        %2823 = vmatpush1.msra.mxu0 0.0
        %2824 = vmatprep.subr.mxu0 0.0
        %2825 = vmatpush1.msra.mxu0 0.0
        %2826 = vmatprep.subr.mxu0 0.0
        %2827 = vmatpush1.msra.mxu0 0.0
        %2828 = vmatprep.subr.mxu0 0.0
        %2829 = vmatpush1.msra.mxu0 0.0
        %2830 = vmatprep.subr.mxu0 0.0
        %2831 = vmatpush1.msra.mxu0 0.0
        %2832 = vmatprep.subr.mxu0 0.0
        %2833 = vmatpush1.msra.mxu0 0.0
        %2834 = vmatprep.subr.mxu0 0.0
        %2835 = vmatpush1.msra.mxu0 0.0
        %2836 = vmatprep.subr.mxu0 0.0
        %2837 = vmatpush1.msra.mxu0 0.0
        %2838 = vmatprep.subr.mxu0 0.0
        %2839 = vmatpush1.msra.mxu0 0.0
        %2840 = vmatprep.subr.mxu0 0.0
        %2841 = vmatpush1.msra.mxu0 0.0
        %2842 = vmatprep.subr.mxu0 0.0
        %2843 = vmatpush1.msra.mxu0 0.0
        %2844 = vmatprep.subr.mxu0 0.0
        %2845 = vmatpush1.msra.mxu0 0.0
        %2846 = vmatprep.subr.mxu0 0.0
        %2847 = vmatpush1.msra.mxu0 0.0
        %2848 = vmatprep.subr.mxu0 0.0
        %2849 = vmatpush1.msra.mxu0 0.0
        %2850 = vmatprep.subr.mxu0 0.0
        %2851 = vmatpush1.msra.mxu0 0.0
        %2852 = vmatprep.subr.mxu0 0.0
        %2853 = vmatpush1.msra.mxu0 0.0
        %2854 = vmatprep.subr.mxu0 0.0
        %2855 = vmatpush1.msra.mxu0 0.0
        %2856 = vmatprep.subr.mxu0 0.0
        %2857 = vmatpush1.msra.mxu0 0.0
        %2858 = vmatprep.subr.mxu0 0.0
        %2859 = vmatpush1.msra.mxu0 0.0
        %2860 = vmatprep.subr.mxu0 0.0
        %2861 = vmatpush1.msra.mxu0 0.0
        %2862 = vmatprep.subr.mxu0 0.0
        %2863 = vmatpush1.msra.mxu0 0.0
        %2864 = vmatprep.subr.mxu0 0.0
        %2865 = vmatpush1.msra.mxu0 0.0
        %2866 = vmatprep.subr.mxu0 0.0
        %2867 = vmatpush1.msra.mxu0 0.0
        %2868 = vmatprep.subr.mxu0 0.0
        %2869 = vmatpush1.msra.mxu0 0.0
        %2870 = vmatprep.subr.mxu0 0.0
        %2871 = vmatpush1.msra.mxu0 0.0
        %2872 = vmatprep.subr.mxu0 0.0
        %2873 = vmatpush1.msra.mxu0 0.0
        %2874 = vmatprep.subr.mxu0 0.0
        %2875 = vmatpush1.msra.mxu0 0.0
        %2876 = vmatprep.mubr.f32.mxu0 0.0
        %2877 = vmatmul.mubr.f32.gmra.mrb[0].mxu0 %v2668
        %v2878 = vpop.f32.mrb[0].mxu0
        %v2879 = vadd.f32 0.0, %v2878
        %v2880 = vpop.f32.mrb[0].mxu0
        %v2881 = vadd.f32 0.0, %v2880
        %2882 = vdwg.mxu0
        %2883 = vmatprep.subr.mxu0 %v481
        %2884 = vmatpush1.msra.mxu0 %v480
        %2885 = vmatprep.subr.mxu0 %v489
        %2886 = vmatpush1.msra.mxu0 %v488
        %2887 = vmatprep.subr.mxu0 %v497
        %2888 = vmatpush1.msra.mxu0 %v496
        %2889 = vmatprep.subr.mxu0 %v505
        %2890 = vmatpush1.msra.mxu0 %v504
        %2891 = vmatprep.subr.mxu0 0.0
        %2892 = vmatpush1.msra.mxu0 0.0
        %2893 = vmatprep.subr.mxu0 0.0
        %2894 = vmatpush1.msra.mxu0 0.0
        %2895 = vmatprep.subr.mxu0 0.0
        %2896 = vmatpush1.msra.mxu0 0.0
        %2897 = vmatprep.subr.mxu0 0.0
        %2898 = vmatpush1.msra.mxu0 0.0
        %2899 = vmatprep.subr.mxu0 0.0
        %2900 = vmatpush1.msra.mxu0 0.0
        %2901 = vmatprep.subr.mxu0 0.0
        %2902 = vmatpush1.msra.mxu0 0.0
        %2903 = vmatprep.subr.mxu0 0.0
        %2904 = vmatpush1.msra.mxu0 0.0
        %2905 = vmatprep.subr.mxu0 0.0
        %2906 = vmatpush1.msra.mxu0 0.0
        %2907 = vmatprep.subr.mxu0 0.0
        %2908 = vmatpush1.msra.mxu0 0.0
        %2909 = vmatprep.subr.mxu0 0.0
        %2910 = vmatpush1.msra.mxu0 0.0
        %2911 = vmatprep.subr.mxu0 0.0
        %2912 = vmatpush1.msra.mxu0 0.0
        %2913 = vmatprep.subr.mxu0 0.0
        %2914 = vmatpush1.msra.mxu0 0.0
        %2915 = vmatprep.subr.mxu0 0.0
        %2916 = vmatpush1.msra.mxu0 0.0
        %2917 = vmatprep.subr.mxu0 0.0
        %2918 = vmatpush1.msra.mxu0 0.0
        %2919 = vmatprep.subr.mxu0 0.0
        %2920 = vmatpush1.msra.mxu0 0.0
        %2921 = vmatprep.subr.mxu0 0.0
        %2922 = vmatpush1.msra.mxu0 0.0
        %2923 = vmatprep.subr.mxu0 0.0
        %2924 = vmatpush1.msra.mxu0 0.0
        %2925 = vmatprep.subr.mxu0 0.0
        %2926 = vmatpush1.msra.mxu0 0.0
        %2927 = vmatprep.subr.mxu0 0.0
        %2928 = vmatpush1.msra.mxu0 0.0
        %2929 = vmatprep.subr.mxu0 0.0
        %2930 = vmatpush1.msra.mxu0 0.0
        %2931 = vmatprep.subr.mxu0 0.0
        %2932 = vmatpush1.msra.mxu0 0.0
        %2933 = vmatprep.subr.mxu0 0.0
        %2934 = vmatpush1.msra.mxu0 0.0
        %2935 = vmatprep.subr.mxu0 0.0
        %2936 = vmatpush1.msra.mxu0 0.0
        %2937 = vmatprep.subr.mxu0 0.0
        %2938 = vmatpush1.msra.mxu0 0.0
        %2939 = vmatprep.subr.mxu0 0.0
        %2940 = vmatpush1.msra.mxu0 0.0
        %2941 = vmatprep.subr.mxu0 0.0
        %2942 = vmatpush1.msra.mxu0 0.0
        %2943 = vmatprep.subr.mxu0 0.0
        %2944 = vmatpush1.msra.mxu0 0.0
        %2945 = vmatprep.subr.mxu0 0.0
        %2946 = vmatpush1.msra.mxu0 0.0
        %2947 = vmatprep.mubr.f32.mxu0 0.0
        %2948 = vmatmul.mubr.f32.gmra.mrb[0].mxu0 %v2668
        %v2949 = vpop.f32.mrb[0].mxu0
        %v2950 = vadd.f32 0.0, %v2949
        %v2951 = vpop.f32.mrb[0].mxu0
        %v2952 = vadd.f32 0.0, %v2951
        %2953 = vdwg.mxu0
        %2954 = vmatprep.subr.mxu0 %v2739
        %2955 = vmatpush1.msra.mxu0 %v2737
        %2956 = vmatprep.subr.mxu0 0.0
        %2957 = vmatpush1.msra.mxu0 0.0
        %2958 = vmatprep.subr.mxu0 0.0
        %2959 = vmatpush1.msra.mxu0 0.0
        %2960 = vmatprep.subr.mxu0 0.0
        %2961 = vmatpush1.msra.mxu0 0.0
        %2962 = vmatprep.subr.mxu0 0.0
        %2963 = vmatpush1.msra.mxu0 0.0
        %2964 = vmatprep.subr.mxu0 0.0
        %2965 = vmatpush1.msra.mxu0 0.0
        %2966 = vmatprep.subr.mxu0 0.0
        %2967 = vmatpush1.msra.mxu0 0.0
        %2968 = vmatprep.subr.mxu0 0.0
        %2969 = vmatpush1.msra.mxu0 0.0
        %2970 = vmatprep.subr.mxu0 0.0
        %2971 = vmatpush1.msra.mxu0 0.0
        %2972 = vmatprep.subr.mxu0 0.0
        %2973 = vmatpush1.msra.mxu0 0.0
        %2974 = vmatprep.subr.mxu0 0.0
        %2975 = vmatpush1.msra.mxu0 0.0
        %2976 = vmatprep.subr.mxu0 0.0
        %2977 = vmatpush1.msra.mxu0 0.0
        %2978 = vmatprep.subr.mxu0 0.0
        %2979 = vmatpush1.msra.mxu0 0.0
        %2980 = vmatprep.subr.mxu0 0.0
        %2981 = vmatpush1.msra.mxu0 0.0
        %2982 = vmatprep.subr.mxu0 0.0
        %2983 = vmatpush1.msra.mxu0 0.0
        %2984 = vmatprep.subr.mxu0 0.0
        %2985 = vmatpush1.msra.mxu0 0.0
        %2986 = vmatprep.subr.mxu0 0.0
        %2987 = vmatpush1.msra.mxu0 0.0
        %2988 = vmatprep.subr.mxu0 0.0
        %2989 = vmatpush1.msra.mxu0 0.0
        %2990 = vmatprep.subr.mxu0 0.0
        %2991 = vmatpush1.msra.mxu0 0.0
        %2992 = vmatprep.subr.mxu0 0.0
        %2993 = vmatpush1.msra.mxu0 0.0
        %2994 = vmatprep.subr.mxu0 0.0
        %2995 = vmatpush1.msra.mxu0 0.0
        %2996 = vmatprep.subr.mxu0 0.0
        %2997 = vmatpush1.msra.mxu0 0.0
        %2998 = vmatprep.subr.mxu0 0.0
        %2999 = vmatpush1.msra.mxu0 0.0
        %3000 = vmatprep.subr.mxu0 0.0
        %3001 = vmatpush1.msra.mxu0 0.0
        %3002 = vmatprep.subr.mxu0 0.0
        %3003 = vmatpush1.msra.mxu0 0.0
        %3004 = vmatprep.subr.mxu0 0.0
        %3005 = vmatpush1.msra.mxu0 0.0
        %3006 = vmatprep.subr.mxu0 0.0
        %3007 = vmatpush1.msra.mxu0 0.0
        %3008 = vmatprep.subr.mxu0 0.0
        %3009 = vmatpush1.msra.mxu0 0.0
        %3010 = vmatprep.subr.mxu0 0.0
        %3011 = vmatpush1.msra.mxu0 0.0
        %3012 = vmatprep.subr.mxu0 0.0
        %3013 = vmatpush1.msra.mxu0 0.0
        %3014 = vmatprep.subr.mxu0 0.0
        %3015 = vmatpush1.msra.mxu0 0.0
        %3016 = vmatprep.subr.mxu0 0.0
        %3017 = vmatpush1.msra.mxu0 0.0
        %3018 = vmatprep.mubr.f32.mxu0 0.0
        %3019 = vmatmul.mubr.f32.gmra.mrb[0].mxu0 %v1589
        %v3020 = vpop.f32.mrb[0].mxu0
        %v3021 = vadd.f32 0.0, %v3020
        %v3022 = vpop.f32.mrb[0].mxu0
        %v3023 = vadd.f32 0.0, %v3022
        %3024 = vmatprep.mubr.f32.mxu0 0.0
        %3025 = vmatmul.mubr.f32.gmra.mrb[0].mxu0 %v1592
        %v3026 = vpop.f32.mrb[0].mxu0
        %v3027 = vadd.f32 0.0, %v3026
        %v3028 = vpop.f32.mrb[0].mxu0
        %v3029 = vadd.f32 0.0, %v3028
        %3030 = vdwg.mxu0
        %3031 = vmatprep.subr.mxu0 %v2810
        %3032 = vmatpush1.msra.mxu0 %v2808
        %3033 = vmatprep.subr.mxu0 0.0
        %3034 = vmatpush1.msra.mxu0 0.0
        %3035 = vmatprep.subr.mxu0 0.0
        %3036 = vmatpush1.msra.mxu0 0.0
        %3037 = vmatprep.subr.mxu0 0.0
        %3038 = vmatpush1.msra.mxu0 0.0
        %3039 = vmatprep.subr.mxu0 0.0
        %3040 = vmatpush1.msra.mxu0 0.0
        %3041 = vmatprep.subr.mxu0 0.0
        %3042 = vmatpush1.msra.mxu0 0.0
        %3043 = vmatprep.subr.mxu0 0.0
        %3044 = vmatpush1.msra.mxu0 0.0
        %3045 = vmatprep.subr.mxu0 0.0
        %3046 = vmatpush1.msra.mxu0 0.0
        %3047 = vmatprep.subr.mxu0 0.0
        %3048 = vmatpush1.msra.mxu0 0.0
        %3049 = vmatprep.subr.mxu0 0.0
        %3050 = vmatpush1.msra.mxu0 0.0
        %3051 = vmatprep.subr.mxu0 0.0
        %3052 = vmatpush1.msra.mxu0 0.0
        %3053 = vmatprep.subr.mxu0 0.0
        %3054 = vmatpush1.msra.mxu0 0.0
        %3055 = vmatprep.subr.mxu0 0.0
        %3056 = vmatpush1.msra.mxu0 0.0
        %3057 = vmatprep.subr.mxu0 0.0
        %3058 = vmatpush1.msra.mxu0 0.0
        %3059 = vmatprep.subr.mxu0 0.0
        %3060 = vmatpush1.msra.mxu0 0.0
        %3061 = vmatprep.subr.mxu0 0.0
        %3062 = vmatpush1.msra.mxu0 0.0
        %3063 = vmatprep.subr.mxu0 0.0
        %3064 = vmatpush1.msra.mxu0 0.0
        %3065 = vmatprep.subr.mxu0 0.0
        %3066 = vmatpush1.msra.mxu0 0.0
        %3067 = vmatprep.subr.mxu0 0.0
        %3068 = vmatpush1.msra.mxu0 0.0
        %3069 = vmatprep.subr.mxu0 0.0
        %3070 = vmatpush1.msra.mxu0 0.0
        %3071 = vmatprep.subr.mxu0 0.0
        %3072 = vmatpush1.msra.mxu0 0.0
        %3073 = vmatprep.subr.mxu0 0.0
        %3074 = vmatpush1.msra.mxu0 0.0
        %3075 = vmatprep.subr.mxu0 0.0
        %3076 = vmatpush1.msra.mxu0 0.0
        %3077 = vmatprep.subr.mxu0 0.0
        %3078 = vmatpush1.msra.mxu0 0.0
        %3079 = vmatprep.subr.mxu0 0.0
        %3080 = vmatpush1.msra.mxu0 0.0
        %3081 = vmatprep.subr.mxu0 0.0
        %3082 = vmatpush1.msra.mxu0 0.0
        %3083 = vmatprep.subr.mxu0 0.0
        %3084 = vmatpush1.msra.mxu0 0.0
        %3085 = vmatprep.subr.mxu0 0.0
        %3086 = vmatpush1.msra.mxu0 0.0
        %3087 = vmatprep.subr.mxu0 0.0
        %3088 = vmatpush1.msra.mxu0 0.0
        %3089 = vmatprep.subr.mxu0 0.0
        %3090 = vmatpush1.msra.mxu0 0.0
        %3091 = vmatprep.subr.mxu0 0.0
        %3092 = vmatpush1.msra.mxu0 0.0
        %3093 = vmatprep.subr.mxu0 0.0
        %3094 = vmatpush1.msra.mxu0 0.0
        %3095 = vmatprep.mubr.f32.mxu0 0.0
        %3096 = vmatmul.mubr.f32.gmra.mrb[0].mxu0 %v1589
        %v3097 = vpop.f32.mrb[0].mxu0
        %v3098 = vadd.f32 0.0, %v3097
        %v3099 = vpop.f32.mrb[0].mxu0
        %v3100 = vadd.f32 0.0, %v3099
        %3101 = vmatprep.mubr.f32.mxu0 0.0
        %3102 = vmatmul.mubr.f32.gmra.mrb[0].mxu0 %v1592
        %v3103 = vpop.f32.mrb[0].mxu0
        %v3104 = vadd.f32 0.0, %v3103
        %v3105 = vpop.f32.mrb[0].mxu0
        %v3106 = vadd.f32 0.0, %v3105
        %3107 = vdwg.mxu0
        %3108 = vmatprep.subr.mxu0 %v2881
        %3109 = vmatpush1.msra.mxu0 %v2879
        %3110 = vmatprep.subr.mxu0 0.0
        %3111 = vmatpush1.msra.mxu0 0.0
        %3112 = vmatprep.subr.mxu0 0.0
        %3113 = vmatpush1.msra.mxu0 0.0
        %3114 = vmatprep.subr.mxu0 0.0
        %3115 = vmatpush1.msra.mxu0 0.0
        %3116 = vmatprep.subr.mxu0 0.0
        %3117 = vmatpush1.msra.mxu0 0.0
        %3118 = vmatprep.subr.mxu0 0.0
        %3119 = vmatpush1.msra.mxu0 0.0
        %3120 = vmatprep.subr.mxu0 0.0
        %3121 = vmatpush1.msra.mxu0 0.0
        %3122 = vmatprep.subr.mxu0 0.0
        %3123 = vmatpush1.msra.mxu0 0.0
        %3124 = vmatprep.subr.mxu0 0.0
        %3125 = vmatpush1.msra.mxu0 0.0
        %3126 = vmatprep.subr.mxu0 0.0
        %3127 = vmatpush1.msra.mxu0 0.0
        %3128 = vmatprep.subr.mxu0 0.0
        %3129 = vmatpush1.msra.mxu0 0.0
        %3130 = vmatprep.subr.mxu0 0.0
        %3131 = vmatpush1.msra.mxu0 0.0
        %3132 = vmatprep.subr.mxu0 0.0
        %3133 = vmatpush1.msra.mxu0 0.0
        %3134 = vmatprep.subr.mxu0 0.0
        %3135 = vmatpush1.msra.mxu0 0.0
        %3136 = vmatprep.subr.mxu0 0.0
        %3137 = vmatpush1.msra.mxu0 0.0
        %3138 = vmatprep.subr.mxu0 0.0
        %3139 = vmatpush1.msra.mxu0 0.0
        %3140 = vmatprep.subr.mxu0 0.0
        %3141 = vmatpush1.msra.mxu0 0.0
        %3142 = vmatprep.subr.mxu0 0.0
        %3143 = vmatpush1.msra.mxu0 0.0
        %3144 = vmatprep.subr.mxu0 0.0
        %3145 = vmatpush1.msra.mxu0 0.0
        %3146 = vmatprep.subr.mxu0 0.0
        %3147 = vmatpush1.msra.mxu0 0.0
        %3148 = vmatprep.subr.mxu0 0.0
        %3149 = vmatpush1.msra.mxu0 0.0
        %3150 = vmatprep.subr.mxu0 0.0
        %3151 = vmatpush1.msra.mxu0 0.0
        %3152 = vmatprep.subr.mxu0 0.0
        %3153 = vmatpush1.msra.mxu0 0.0
        %3154 = vmatprep.subr.mxu0 0.0
        %3155 = vmatpush1.msra.mxu0 0.0
        %3156 = vmatprep.subr.mxu0 0.0
        %3157 = vmatpush1.msra.mxu0 0.0
        %3158 = vmatprep.subr.mxu0 0.0
        %3159 = vmatpush1.msra.mxu0 0.0
        %3160 = vmatprep.subr.mxu0 0.0
        %3161 = vmatpush1.msra.mxu0 0.0
        %3162 = vmatprep.subr.mxu0 0.0
        %3163 = vmatpush1.msra.mxu0 0.0
        %3164 = vmatprep.subr.mxu0 0.0
        %3165 = vmatpush1.msra.mxu0 0.0
        %3166 = vmatprep.subr.mxu0 0.0
        %3167 = vmatpush1.msra.mxu0 0.0
        %3168 = vmatprep.subr.mxu0 0.0
        %3169 = vmatpush1.msra.mxu0 0.0
        %3170 = vmatprep.subr.mxu0 0.0
        %3171 = vmatpush1.msra.mxu0 0.0
        %3172 = vmatprep.mubr.f32.mxu0 0.0
        %3173 = vmatmul.mubr.f32.gmra.mrb[0].mxu0 %v1589
        %v3174 = vpop.f32.mrb[0].mxu0
        %v3175 = vadd.f32 0.0, %v3174
        %v3176 = vpop.f32.mrb[0].mxu0
        %v3177 = vadd.f32 0.0, %v3176
        %3178 = vmatprep.mubr.f32.mxu0 0.0
        %3179 = vmatmul.mubr.f32.gmra.mrb[0].mxu0 %v1592
        %v3180 = vpop.f32.mrb[0].mxu0
        %v3181 = vadd.f32 0.0, %v3180
        %v3182 = vpop.f32.mrb[0].mxu0
        %v3183 = vadd.f32 0.0, %v3182
        %3184 = vdwg.mxu0
        %3185 = vmatprep.subr.mxu0 %v2952
        %3186 = vmatpush1.msra.mxu0 %v2950
        %3187 = vmatprep.subr.mxu0 0.0
        %3188 = vmatpush1.msra.mxu0 0.0
        %3189 = vmatprep.subr.mxu0 0.0
        %3190 = vmatpush1.msra.mxu0 0.0
        %3191 = vmatprep.subr.mxu0 0.0
        %3192 = vmatpush1.msra.mxu0 0.0
        %3193 = vmatprep.subr.mxu0 0.0
        %3194 = vmatpush1.msra.mxu0 0.0
        %3195 = vmatprep.subr.mxu0 0.0
        %3196 = vmatpush1.msra.mxu0 0.0
        %3197 = vmatprep.subr.mxu0 0.0
        %3198 = vmatpush1.msra.mxu0 0.0
        %3199 = vmatprep.subr.mxu0 0.0
        %3200 = vmatpush1.msra.mxu0 0.0
        %3201 = vmatprep.subr.mxu0 0.0
        %3202 = vmatpush1.msra.mxu0 0.0
        %3203 = vmatprep.subr.mxu0 0.0
        %3204 = vmatpush1.msra.mxu0 0.0
        %3205 = vmatprep.subr.mxu0 0.0
        %3206 = vmatpush1.msra.mxu0 0.0
        %3207 = vmatprep.subr.mxu0 0.0
        %3208 = vmatpush1.msra.mxu0 0.0
        %3209 = vmatprep.subr.mxu0 0.0
        %3210 = vmatpush1.msra.mxu0 0.0
        %3211 = vmatprep.subr.mxu0 0.0
        %3212 = vmatpush1.msra.mxu0 0.0
        %3213 = vmatprep.subr.mxu0 0.0
        %3214 = vmatpush1.msra.mxu0 0.0
        %3215 = vmatprep.subr.mxu0 0.0
        %3216 = vmatpush1.msra.mxu0 0.0
        %3217 = vmatprep.subr.mxu0 0.0
        %3218 = vmatpush1.msra.mxu0 0.0
        %3219 = vmatprep.subr.mxu0 0.0
        %3220 = vmatpush1.msra.mxu0 0.0
        %3221 = vmatprep.subr.mxu0 0.0
        %3222 = vmatpush1.msra.mxu0 0.0
        %3223 = vmatprep.subr.mxu0 0.0
        %3224 = vmatpush1.msra.mxu0 0.0
        %3225 = vmatprep.subr.mxu0 0.0
        %3226 = vmatpush1.msra.mxu0 0.0
        %3227 = vmatprep.subr.mxu0 0.0
        %3228 = vmatpush1.msra.mxu0 0.0
        %3229 = vmatprep.subr.mxu0 0.0
        %3230 = vmatpush1.msra.mxu0 0.0
        %3231 = vmatprep.subr.mxu0 0.0
        %3232 = vmatpush1.msra.mxu0 0.0
        %3233 = vmatprep.subr.mxu0 0.0
        %3234 = vmatpush1.msra.mxu0 0.0
        %3235 = vmatprep.subr.mxu0 0.0
        %3236 = vmatpush1.msra.mxu0 0.0
        %3237 = vmatprep.subr.mxu0 0.0
        %3238 = vmatpush1.msra.mxu0 0.0
        %3239 = vmatprep.subr.mxu0 0.0
        %3240 = vmatpush1.msra.mxu0 0.0
        %3241 = vmatprep.subr.mxu0 0.0
        %3242 = vmatpush1.msra.mxu0 0.0
        %3243 = vmatprep.subr.mxu0 0.0
        %3244 = vmatpush1.msra.mxu0 0.0
        %3245 = vmatprep.subr.mxu0 0.0
        %3246 = vmatpush1.msra.mxu0 0.0
        %3247 = vmatprep.subr.mxu0 0.0
        %3248 = vmatpush1.msra.mxu0 0.0
        %3249 = vmatprep.mubr.f32.mxu0 0.0
        %3250 = vmatmul.mubr.f32.gmra.mrb[0].mxu0 %v1589
        %v3251 = vpop.f32.mrb[0].mxu0
        %v3252 = vadd.f32 0.0, %v3251
        %v3253 = vpop.f32.mrb[0].mxu0
        %v3254 = vadd.f32 0.0, %v3253
        %3255 = vmatprep.mubr.f32.mxu0 0.0
        %3256 = vmatmul.mubr.f32.gmra.mrb[0].mxu0 %v1592
        %v3257 = vpop.f32.mrb[0].mxu0
        %v3258 = vadd.f32 0.0, %v3257
        %v3259 = vpop.f32.mrb[0].mxu0
        %v3260 = vadd.f32 0.0, %v3259
        %3261 = vdwg.mxu0
        %v3262 = vmul.f32 %v3021, %v1059
        %v3263 = vmul.f32 %v3023, %v1061
        %v3264 = vmul.f32 %v3098, %v1136
        %v3265 = vmul.f32 %v3100, %v1138
        %v3266 = vmul.f32 %v3175, %v1213
        %v3267 = vmul.f32 %v3177, %v1215
        %v3268 = vmul.f32 %v3252, %v1290
        %v3269 = vmul.f32 %v3254, %v1292
        %v3270 = vmul.f32 %v3027, %v1065
        %v3271 = vmul.f32 %v3029, %v1067
        %v3272 = vmul.f32 %v3104, %v1142
        %v3273 = vmul.f32 %v3106, %v1144
        %v3274 = vmul.f32 %v3181, %v1219
        %v3275 = vmul.f32 %v3183, %v1221
        %v3276 = vmul.f32 %v3258, %v1296
        %v3277 = vmul.f32 %v3260, %v1298
        %3278 = vmatprep.subr.mxu0 %v3263
        %3279 = vmatpush1.msra.mxu0 %v3262
        %3280 = vmatprep.subr.mxu0 %v3271
        %3281 = vmatpush1.msra.mxu0 %v3270
        %3282 = vmatprep.subr.mxu0 0.0
        %3283 = vmatpush1.msra.mxu0 0.0
        %3284 = vmatprep.subr.mxu0 0.0
        %3285 = vmatpush1.msra.mxu0 0.0
        %3286 = vmatprep.subr.mxu0 0.0
        %3287 = vmatpush1.msra.mxu0 0.0
        %3288 = vmatprep.subr.mxu0 0.0
        %3289 = vmatpush1.msra.mxu0 0.0
        %3290 = vmatprep.subr.mxu0 0.0
        %3291 = vmatpush1.msra.mxu0 0.0
        %3292 = vmatprep.subr.mxu0 0.0
        %3293 = vmatpush1.msra.mxu0 0.0
        %3294 = vmatprep.subr.mxu0 0.0
        %3295 = vmatpush1.msra.mxu0 0.0
        %3296 = vmatprep.subr.mxu0 0.0
        %3297 = vmatpush1.msra.mxu0 0.0
        %3298 = vmatprep.subr.mxu0 0.0
        %3299 = vmatpush1.msra.mxu0 0.0
        %3300 = vmatprep.subr.mxu0 0.0
        %3301 = vmatpush1.msra.mxu0 0.0
        %3302 = vmatprep.subr.mxu0 0.0
        %3303 = vmatpush1.msra.mxu0 0.0
        %3304 = vmatprep.subr.mxu0 0.0
        %3305 = vmatpush1.msra.mxu0 0.0
        %3306 = vmatprep.subr.mxu0 0.0
        %3307 = vmatpush1.msra.mxu0 0.0
        %3308 = vmatprep.subr.mxu0 0.0
        %3309 = vmatpush1.msra.mxu0 0.0
        %3310 = vmatprep.subr.mxu0 0.0
        %3311 = vmatpush1.msra.mxu0 0.0
        %3312 = vmatprep.subr.mxu0 0.0
        %3313 = vmatpush1.msra.mxu0 0.0
        %3314 = vmatprep.subr.mxu0 0.0
        %3315 = vmatpush1.msra.mxu0 0.0
        %3316 = vmatprep.subr.mxu0 0.0
        %3317 = vmatpush1.msra.mxu0 0.0
        %3318 = vmatprep.subr.mxu0 0.0
        %3319 = vmatpush1.msra.mxu0 0.0
        %3320 = vmatprep.subr.mxu0 0.0
        %3321 = vmatpush1.msra.mxu0 0.0
        %3322 = vmatprep.subr.mxu0 0.0
        %3323 = vmatpush1.msra.mxu0 0.0
        %3324 = vmatprep.subr.mxu0 0.0
        %3325 = vmatpush1.msra.mxu0 0.0
        %3326 = vmatprep.subr.mxu0 0.0
        %3327 = vmatpush1.msra.mxu0 0.0
        %3328 = vmatprep.subr.mxu0 0.0
        %3329 = vmatpush1.msra.mxu0 0.0
        %3330 = vmatprep.subr.mxu0 0.0
        %3331 = vmatpush1.msra.mxu0 0.0
        %3332 = vmatprep.subr.mxu0 0.0
        %3333 = vmatpush1.msra.mxu0 0.0
        %3334 = vmatprep.subr.mxu0 0.0
        %3335 = vmatpush1.msra.mxu0 0.0
        %3336 = vmatprep.subr.mxu0 0.0
        %3337 = vmatpush1.msra.mxu0 0.0
        %3338 = vmatprep.subr.mxu0 0.0
        %3339 = vmatpush1.msra.mxu0 0.0
        %3340 = vmatprep.subr.mxu0 0.0
        %3341 = vmatpush1.msra.mxu0 0.0
        %3342 = vmatprep.mubr.f32.mxu0 0.0
        %3343 = vmatmul.mubr.f32.gmra.mrb[0].mxu0 %v1919
        %v3344 = vpop.f32.mrb[0].mxu0
        %v3345 = vadd.f32 0.0, %v3344
        %v3346 = vpop.f32.mrb[0].mxu0
        %v3347 = vadd.f32 0.0, %v3346
        %3348 = vdwg.mxu0
        %3349 = vmatprep.subr.mxu0 %v3265
        %3350 = vmatpush1.msra.mxu0 %v3264
        %3351 = vmatprep.subr.mxu0 %v3273
        %3352 = vmatpush1.msra.mxu0 %v3272
        %3353 = vmatprep.subr.mxu0 0.0
        %3354 = vmatpush1.msra.mxu0 0.0
        %3355 = vmatprep.subr.mxu0 0.0
        %3356 = vmatpush1.msra.mxu0 0.0
        %3357 = vmatprep.subr.mxu0 0.0
        %3358 = vmatpush1.msra.mxu0 0.0
        %3359 = vmatprep.subr.mxu0 0.0
        %3360 = vmatpush1.msra.mxu0 0.0
        %3361 = vmatprep.subr.mxu0 0.0
        %3362 = vmatpush1.msra.mxu0 0.0
        %3363 = vmatprep.subr.mxu0 0.0
        %3364 = vmatpush1.msra.mxu0 0.0
        %3365 = vmatprep.subr.mxu0 0.0
        %3366 = vmatpush1.msra.mxu0 0.0
        %3367 = vmatprep.subr.mxu0 0.0
        %3368 = vmatpush1.msra.mxu0 0.0
        %3369 = vmatprep.subr.mxu0 0.0
        %3370 = vmatpush1.msra.mxu0 0.0
        %3371 = vmatprep.subr.mxu0 0.0
        %3372 = vmatpush1.msra.mxu0 0.0
        %3373 = vmatprep.subr.mxu0 0.0
        %3374 = vmatpush1.msra.mxu0 0.0
        %3375 = vmatprep.subr.mxu0 0.0
        %3376 = vmatpush1.msra.mxu0 0.0
        %3377 = vmatprep.subr.mxu0 0.0
        %3378 = vmatpush1.msra.mxu0 0.0
        %3379 = vmatprep.subr.mxu0 0.0
        %3380 = vmatpush1.msra.mxu0 0.0
        %3381 = vmatprep.subr.mxu0 0.0
        %3382 = vmatpush1.msra.mxu0 0.0
        %3383 = vmatprep.subr.mxu0 0.0
        %3384 = vmatpush1.msra.mxu0 0.0
        %3385 = vmatprep.subr.mxu0 0.0
        %3386 = vmatpush1.msra.mxu0 0.0
        %3387 = vmatprep.subr.mxu0 0.0
        %3388 = vmatpush1.msra.mxu0 0.0
        %3389 = vmatprep.subr.mxu0 0.0
        %3390 = vmatpush1.msra.mxu0 0.0
        %3391 = vmatprep.subr.mxu0 0.0
        %3392 = vmatpush1.msra.mxu0 0.0
        %3393 = vmatprep.subr.mxu0 0.0
        %3394 = vmatpush1.msra.mxu0 0.0
        %3395 = vmatprep.subr.mxu0 0.0
        %3396 = vmatpush1.msra.mxu0 0.0
        %3397 = vmatprep.subr.mxu0 0.0
        %3398 = vmatpush1.msra.mxu0 0.0
        %3399 = vmatprep.subr.mxu0 0.0
        %3400 = vmatpush1.msra.mxu0 0.0
        %3401 = vmatprep.subr.mxu0 0.0
        %3402 = vmatpush1.msra.mxu0 0.0
        %3403 = vmatprep.subr.mxu0 0.0
        %3404 = vmatpush1.msra.mxu0 0.0
        %3405 = vmatprep.subr.mxu0 0.0
        %3406 = vmatpush1.msra.mxu0 0.0
        %3407 = vmatprep.subr.mxu0 0.0
        %3408 = vmatpush1.msra.mxu0 0.0
        %3409 = vmatprep.subr.mxu0 0.0
        %3410 = vmatpush1.msra.mxu0 0.0
        %3411 = vmatprep.subr.mxu0 0.0
        %3412 = vmatpush1.msra.mxu0 0.0
        %3413 = vmatprep.mubr.f32.mxu0 0.0
        %3414 = vmatmul.mubr.f32.gmra.mrb[0].mxu0 %v1919
        %v3415 = vpop.f32.mrb[0].mxu0
        %v3416 = vadd.f32 0.0, %v3415
        %v3417 = vpop.f32.mrb[0].mxu0
        %v3418 = vadd.f32 0.0, %v3417
        %3419 = vdwg.mxu0
        %3420 = vmatprep.subr.mxu0 %v3267
        %3421 = vmatpush1.msra.mxu0 %v3266
        %3422 = vmatprep.subr.mxu0 %v3275
        %3423 = vmatpush1.msra.mxu0 %v3274
        %3424 = vmatprep.subr.mxu0 0.0
        %3425 = vmatpush1.msra.mxu0 0.0
        %3426 = vmatprep.subr.mxu0 0.0
        %3427 = vmatpush1.msra.mxu0 0.0
        %3428 = vmatprep.subr.mxu0 0.0
        %3429 = vmatpush1.msra.mxu0 0.0
        %3430 = vmatprep.subr.mxu0 0.0
        %3431 = vmatpush1.msra.mxu0 0.0
        %3432 = vmatprep.subr.mxu0 0.0
        %3433 = vmatpush1.msra.mxu0 0.0
        %3434 = vmatprep.subr.mxu0 0.0
        %3435 = vmatpush1.msra.mxu0 0.0
        %3436 = vmatprep.subr.mxu0 0.0
        %3437 = vmatpush1.msra.mxu0 0.0
        %3438 = vmatprep.subr.mxu0 0.0
        %3439 = vmatpush1.msra.mxu0 0.0
        %3440 = vmatprep.subr.mxu0 0.0
        %3441 = vmatpush1.msra.mxu0 0.0
        %3442 = vmatprep.subr.mxu0 0.0
        %3443 = vmatpush1.msra.mxu0 0.0
        %3444 = vmatprep.subr.mxu0 0.0
        %3445 = vmatpush1.msra.mxu0 0.0
        %3446 = vmatprep.subr.mxu0 0.0
        %3447 = vmatpush1.msra.mxu0 0.0
        %3448 = vmatprep.subr.mxu0 0.0
        %3449 = vmatpush1.msra.mxu0 0.0
        %3450 = vmatprep.subr.mxu0 0.0
        %3451 = vmatpush1.msra.mxu0 0.0
        %3452 = vmatprep.subr.mxu0 0.0
        %3453 = vmatpush1.msra.mxu0 0.0
        %3454 = vmatprep.subr.mxu0 0.0
        %3455 = vmatpush1.msra.mxu0 0.0
        %3456 = vmatprep.subr.mxu0 0.0
        %3457 = vmatpush1.msra.mxu0 0.0
        %3458 = vmatprep.subr.mxu0 0.0
        %3459 = vmatpush1.msra.mxu0 0.0
        %3460 = vmatprep.subr.mxu0 0.0
        %3461 = vmatpush1.msra.mxu0 0.0
        %3462 = vmatprep.subr.mxu0 0.0
        %3463 = vmatpush1.msra.mxu0 0.0
        %3464 = vmatprep.subr.mxu0 0.0
        %3465 = vmatpush1.msra.mxu0 0.0
        %3466 = vmatprep.subr.mxu0 0.0
        %3467 = vmatpush1.msra.mxu0 0.0
        %3468 = vmatprep.subr.mxu0 0.0
        %3469 = vmatpush1.msra.mxu0 0.0
        %3470 = vmatprep.subr.mxu0 0.0
        %3471 = vmatpush1.msra.mxu0 0.0
        %3472 = vmatprep.subr.mxu0 0.0
        %3473 = vmatpush1.msra.mxu0 0.0
        %3474 = vmatprep.subr.mxu0 0.0
        %3475 = vmatpush1.msra.mxu0 0.0
        %3476 = vmatprep.subr.mxu0 0.0
        %3477 = vmatpush1.msra.mxu0 0.0
        %3478 = vmatprep.subr.mxu0 0.0
        %3479 = vmatpush1.msra.mxu0 0.0
        %3480 = vmatprep.subr.mxu0 0.0
        %3481 = vmatpush1.msra.mxu0 0.0
        %3482 = vmatprep.subr.mxu0 0.0
        %3483 = vmatpush1.msra.mxu0 0.0
        %3484 = vmatprep.mubr.f32.mxu0 0.0
        %3485 = vmatmul.mubr.f32.gmra.mrb[0].mxu0 %v1919
        %v3486 = vpop.f32.mrb[0].mxu0
        %v3487 = vadd.f32 0.0, %v3486
        %v3488 = vpop.f32.mrb[0].mxu0
        %v3489 = vadd.f32 0.0, %v3488
        %3490 = vdwg.mxu0
        %3491 = vmatprep.subr.mxu0 %v3269
        %3492 = vmatpush1.msra.mxu0 %v3268
        %3493 = vmatprep.subr.mxu0 %v3277
        %3494 = vmatpush1.msra.mxu0 %v3276
        %3495 = vmatprep.subr.mxu0 0.0
        %3496 = vmatpush1.msra.mxu0 0.0
        %3497 = vmatprep.subr.mxu0 0.0
        %3498 = vmatpush1.msra.mxu0 0.0
        %3499 = vmatprep.subr.mxu0 0.0
        %3500 = vmatpush1.msra.mxu0 0.0
        %3501 = vmatprep.subr.mxu0 0.0
        %3502 = vmatpush1.msra.mxu0 0.0
        %3503 = vmatprep.subr.mxu0 0.0
        %3504 = vmatpush1.msra.mxu0 0.0
        %3505 = vmatprep.subr.mxu0 0.0
        %3506 = vmatpush1.msra.mxu0 0.0
        %3507 = vmatprep.subr.mxu0 0.0
        %3508 = vmatpush1.msra.mxu0 0.0
        %3509 = vmatprep.subr.mxu0 0.0
        %3510 = vmatpush1.msra.mxu0 0.0
        %3511 = vmatprep.subr.mxu0 0.0
        %3512 = vmatpush1.msra.mxu0 0.0
        %3513 = vmatprep.subr.mxu0 0.0
        %3514 = vmatpush1.msra.mxu0 0.0
        %3515 = vmatprep.subr.mxu0 0.0
        %3516 = vmatpush1.msra.mxu0 0.0
        %3517 = vmatprep.subr.mxu0 0.0
        %3518 = vmatpush1.msra.mxu0 0.0
        %3519 = vmatprep.subr.mxu0 0.0
        %3520 = vmatpush1.msra.mxu0 0.0
        %3521 = vmatprep.subr.mxu0 0.0
        %3522 = vmatpush1.msra.mxu0 0.0
        %3523 = vmatprep.subr.mxu0 0.0
        %3524 = vmatpush1.msra.mxu0 0.0
        %3525 = vmatprep.subr.mxu0 0.0
        %3526 = vmatpush1.msra.mxu0 0.0
        %3527 = vmatprep.subr.mxu0 0.0
        %3528 = vmatpush1.msra.mxu0 0.0
        %3529 = vmatprep.subr.mxu0 0.0
        %3530 = vmatpush1.msra.mxu0 0.0
        %3531 = vmatprep.subr.mxu0 0.0
        %3532 = vmatpush1.msra.mxu0 0.0
        %3533 = vmatprep.subr.mxu0 0.0
        %3534 = vmatpush1.msra.mxu0 0.0
        %3535 = vmatprep.subr.mxu0 0.0
        %3536 = vmatpush1.msra.mxu0 0.0
        %3537 = vmatprep.subr.mxu0 0.0
        %3538 = vmatpush1.msra.mxu0 0.0
        %3539 = vmatprep.subr.mxu0 0.0
        %3540 = vmatpush1.msra.mxu0 0.0
        %3541 = vmatprep.subr.mxu0 0.0
        %3542 = vmatpush1.msra.mxu0 0.0
        %3543 = vmatprep.subr.mxu0 0.0
        %3544 = vmatpush1.msra.mxu0 0.0
        %3545 = vmatprep.subr.mxu0 0.0
        %3546 = vmatpush1.msra.mxu0 0.0
        %3547 = vmatprep.subr.mxu0 0.0
        %3548 = vmatpush1.msra.mxu0 0.0
        %3549 = vmatprep.subr.mxu0 0.0
        %3550 = vmatpush1.msra.mxu0 0.0
        %3551 = vmatprep.subr.mxu0 0.0
        %3552 = vmatpush1.msra.mxu0 0.0
        %3553 = vmatprep.subr.mxu0 0.0
        %3554 = vmatpush1.msra.mxu0 0.0
        %3555 = vmatprep.mubr.f32.mxu0 0.0
        %3556 = vmatmul.mubr.f32.gmra.mrb[0].mxu0 %v1919
        %v3557 = vpop.f32.mrb[0].mxu0
        %v3558 = vadd.f32 0.0, %v3557
        %v3559 = vpop.f32.mrb[0].mxu0
        %v3560 = vadd.f32 0.0, %v3559
        %3561 = vdwg.mxu0
        %3562 = vmatprep.subr.mxu0 0.0
        %3563 = vmatpush1.msra.mxu0 %v506
        %3564 = vmatprep.subr.mxu0 0.0
        %3565 = vmatpush1.msra.mxu0 %v507
        %3566 = vmatprep.subr.mxu0 0.0
        %3567 = vmatpush1.msra.mxu0 %v508
        %3568 = vmatprep.subr.mxu0 0.0
        %3569 = vmatpush1.msra.mxu0 %v509
        %3570 = vmatprep.subr.mxu0 0.0
        %3571 = vmatpush1.msra.mxu0 %v510
        %3572 = vmatprep.subr.mxu0 0.0
        %3573 = vmatpush1.msra.mxu0 %v511
        %3574 = vmatprep.subr.mxu0 0.0
        %3575 = vmatpush1.msra.mxu0 %v512
        %3576 = vmatprep.subr.mxu0 0.0
        %3577 = vmatpush1.msra.mxu0 %v513
        %3578 = vmatprep.subr.mxu0 0.0
        %3579 = vmatpush1.msra.mxu0 %v514
        %3580 = vmatprep.subr.mxu0 0.0
        %3581 = vmatpush1.msra.mxu0 %v515
        %3582 = vmatprep.subr.mxu0 0.0
        %3583 = vmatpush1.msra.mxu0 %v516
        %3584 = vmatprep.subr.mxu0 0.0
        %3585 = vmatpush1.msra.mxu0 %v517
        %3586 = vmatprep.subr.mxu0 0.0
        %3587 = vmatpush1.msra.mxu0 %v518
        %3588 = vmatprep.subr.mxu0 0.0
        %3589 = vmatpush1.msra.mxu0 %v519
        %3590 = vmatprep.subr.mxu0 0.0
        %3591 = vmatpush1.msra.mxu0 %v520
        %3592 = vmatprep.subr.mxu0 0.0
        %3593 = vmatpush1.msra.mxu0 %v521
        %3594 = vmatprep.subr.mxu0 0.0
        %3595 = vmatpush1.msra.mxu0 %v522
        %3596 = vmatprep.subr.mxu0 0.0
        %3597 = vmatpush1.msra.mxu0 %v523
        %3598 = vmatprep.subr.mxu0 0.0
        %3599 = vmatpush1.msra.mxu0 %v524
        %3600 = vmatprep.subr.mxu0 0.0
        %3601 = vmatpush1.msra.mxu0 %v525
        %3602 = vmatprep.subr.mxu0 0.0
        %3603 = vmatpush1.msra.mxu0 %v526
        %3604 = vmatprep.subr.mxu0 0.0
        %3605 = vmatpush1.msra.mxu0 %v527
        %3606 = vmatprep.subr.mxu0 0.0
        %3607 = vmatpush1.msra.mxu0 %v528
        %3608 = vmatprep.subr.mxu0 0.0
        %3609 = vmatpush1.msra.mxu0 %v529
        %3610 = vmatprep.subr.mxu0 0.0
        %3611 = vmatpush1.msra.mxu0 %v530
        %3612 = vmatprep.subr.mxu0 0.0
        %3613 = vmatpush1.msra.mxu0 %v531
        %3614 = vmatprep.subr.mxu0 0.0
        %3615 = vmatpush1.msra.mxu0 %v532
        %3616 = vmatprep.subr.mxu0 0.0
        %3617 = vmatpush1.msra.mxu0 %v533
        %3618 = vmatprep.subr.mxu0 0.0
        %3619 = vmatpush1.msra.mxu0 %v534
        %3620 = vmatprep.subr.mxu0 0.0
        %3621 = vmatpush1.msra.mxu0 %v535
        %3622 = vmatprep.subr.mxu0 0.0
        %3623 = vmatpush1.msra.mxu0 %v536
        %3624 = vmatprep.subr.mxu0 0.0
        %3625 = vmatpush1.msra.mxu0 %v537
        %3626 = vmatprep.mubr.f32.mxu0 %v3347
        %3627 = vmatmul.mubr.f32.gmra.mrb[0].mxu0 %v3345
        %v3628 = vpop.f32.mrb[0].mxu0
        %v3629 = vadd.f32 0.0, %v3628
        %v3630 = vpop.f32.mrb[0].mxu0
        %3631 = vdwg.mxu0
        %3632 = vmatprep.subr.mxu0 0.0
        %3633 = vmatpush1.msra.mxu0 %v538
        %3634 = vmatprep.subr.mxu0 0.0
        %3635 = vmatpush1.msra.mxu0 %v539
        %3636 = vmatprep.subr.mxu0 0.0
        %3637 = vmatpush1.msra.mxu0 %v540
        %3638 = vmatprep.subr.mxu0 0.0
        %3639 = vmatpush1.msra.mxu0 %v541
        %3640 = vmatprep.subr.mxu0 0.0
        %3641 = vmatpush1.msra.mxu0 %v542
        %3642 = vmatprep.subr.mxu0 0.0
        %3643 = vmatpush1.msra.mxu0 %v543
        %3644 = vmatprep.subr.mxu0 0.0
        %3645 = vmatpush1.msra.mxu0 %v544
        %3646 = vmatprep.subr.mxu0 0.0
        %3647 = vmatpush1.msra.mxu0 %v545
        %3648 = vmatprep.subr.mxu0 0.0
        %3649 = vmatpush1.msra.mxu0 %v546
        %3650 = vmatprep.subr.mxu0 0.0
        %3651 = vmatpush1.msra.mxu0 %v547
        %3652 = vmatprep.subr.mxu0 0.0
        %3653 = vmatpush1.msra.mxu0 %v548
        %3654 = vmatprep.subr.mxu0 0.0
        %3655 = vmatpush1.msra.mxu0 %v549
        %3656 = vmatprep.subr.mxu0 0.0
        %3657 = vmatpush1.msra.mxu0 %v550
        %3658 = vmatprep.subr.mxu0 0.0
        %3659 = vmatpush1.msra.mxu0 %v551
        %3660 = vmatprep.subr.mxu0 0.0
        %3661 = vmatpush1.msra.mxu0 %v552
        %3662 = vmatprep.subr.mxu0 0.0
        %3663 = vmatpush1.msra.mxu0 %v553
        %3664 = vmatprep.subr.mxu0 0.0
        %3665 = vmatpush1.msra.mxu0 %v554
        %3666 = vmatprep.subr.mxu0 0.0
        %3667 = vmatpush1.msra.mxu0 %v555
        %3668 = vmatprep.subr.mxu0 0.0
        %3669 = vmatpush1.msra.mxu0 %v556
        %3670 = vmatprep.subr.mxu0 0.0
        %3671 = vmatpush1.msra.mxu0 %v557
        %3672 = vmatprep.subr.mxu0 0.0
        %3673 = vmatpush1.msra.mxu0 %v558
        %3674 = vmatprep.subr.mxu0 0.0
        %3675 = vmatpush1.msra.mxu0 %v559
        %3676 = vmatprep.subr.mxu0 0.0
        %3677 = vmatpush1.msra.mxu0 %v560
        %3678 = vmatprep.subr.mxu0 0.0
        %3679 = vmatpush1.msra.mxu0 %v561
        %3680 = vmatprep.subr.mxu0 0.0
        %3681 = vmatpush1.msra.mxu0 %v562
        %3682 = vmatprep.subr.mxu0 0.0
        %3683 = vmatpush1.msra.mxu0 %v563
        %3684 = vmatprep.subr.mxu0 0.0
        %3685 = vmatpush1.msra.mxu0 %v564
        %3686 = vmatprep.subr.mxu0 0.0
        %3687 = vmatpush1.msra.mxu0 %v565
        %3688 = vmatprep.subr.mxu0 0.0
        %3689 = vmatpush1.msra.mxu0 %v566
        %3690 = vmatprep.subr.mxu0 0.0
        %3691 = vmatpush1.msra.mxu0 %v567
        %3692 = vmatprep.subr.mxu0 0.0
        %3693 = vmatpush1.msra.mxu0 %v568
        %3694 = vmatprep.subr.mxu0 0.0
        %3695 = vmatpush1.msra.mxu0 %v569
        %3696 = vmatprep.mubr.f32.mxu0 %v3418
        %3697 = vmatmul.mubr.f32.gmra.mrb[0].mxu0 %v3416
        %v3698 = vpop.f32.mrb[0].mxu0
        %v3699 = vadd.f32 %v3629, %v3698
        %v3700 = vpop.f32.mrb[0].mxu0
        %3701 = vdwg.mxu0
        %3702 = vmatprep.subr.mxu0 0.0
        %3703 = vmatpush1.msra.mxu0 %v570
        %3704 = vmatprep.subr.mxu0 0.0
        %3705 = vmatpush1.msra.mxu0 %v571
        %3706 = vmatprep.subr.mxu0 0.0
        %3707 = vmatpush1.msra.mxu0 %v572
        %3708 = vmatprep.subr.mxu0 0.0
        %3709 = vmatpush1.msra.mxu0 %v573
        %3710 = vmatprep.subr.mxu0 0.0
        %3711 = vmatpush1.msra.mxu0 %v574
        %3712 = vmatprep.subr.mxu0 0.0
        %3713 = vmatpush1.msra.mxu0 %v575
        %3714 = vmatprep.subr.mxu0 0.0
        %3715 = vmatpush1.msra.mxu0 %v576
        %3716 = vmatprep.subr.mxu0 0.0
        %3717 = vmatpush1.msra.mxu0 %v577
        %3718 = vmatprep.subr.mxu0 0.0
        %3719 = vmatpush1.msra.mxu0 %v578
        %3720 = vmatprep.subr.mxu0 0.0
        %3721 = vmatpush1.msra.mxu0 %v579
        %3722 = vmatprep.subr.mxu0 0.0
        %3723 = vmatpush1.msra.mxu0 %v580
        %3724 = vmatprep.subr.mxu0 0.0
        %3725 = vmatpush1.msra.mxu0 %v581
        %3726 = vmatprep.subr.mxu0 0.0
        %3727 = vmatpush1.msra.mxu0 %v582
        %3728 = vmatprep.subr.mxu0 0.0
        %3729 = vmatpush1.msra.mxu0 %v583
        %3730 = vmatprep.subr.mxu0 0.0
        %3731 = vmatpush1.msra.mxu0 %v584
        %3732 = vmatprep.subr.mxu0 0.0
        %3733 = vmatpush1.msra.mxu0 %v585
        %3734 = vmatprep.subr.mxu0 0.0
        %3735 = vmatpush1.msra.mxu0 %v586
        %3736 = vmatprep.subr.mxu0 0.0
        %3737 = vmatpush1.msra.mxu0 %v587
        %3738 = vmatprep.subr.mxu0 0.0
        %3739 = vmatpush1.msra.mxu0 %v588
        %3740 = vmatprep.subr.mxu0 0.0
        %3741 = vmatpush1.msra.mxu0 %v589
        %3742 = vmatprep.subr.mxu0 0.0
        %3743 = vmatpush1.msra.mxu0 %v590
        %3744 = vmatprep.subr.mxu0 0.0
        %3745 = vmatpush1.msra.mxu0 %v591
        %3746 = vmatprep.subr.mxu0 0.0
        %3747 = vmatpush1.msra.mxu0 %v592
        %3748 = vmatprep.subr.mxu0 0.0
        %3749 = vmatpush1.msra.mxu0 %v593
        %3750 = vmatprep.subr.mxu0 0.0
        %3751 = vmatpush1.msra.mxu0 %v594
        %3752 = vmatprep.subr.mxu0 0.0
        %3753 = vmatpush1.msra.mxu0 %v595
        %3754 = vmatprep.subr.mxu0 0.0
        %3755 = vmatpush1.msra.mxu0 %v596
        %3756 = vmatprep.subr.mxu0 0.0
        %3757 = vmatpush1.msra.mxu0 %v597
        %3758 = vmatprep.subr.mxu0 0.0
        %3759 = vmatpush1.msra.mxu0 %v598
        %3760 = vmatprep.subr.mxu0 0.0
        %3761 = vmatpush1.msra.mxu0 %v599
        %3762 = vmatprep.subr.mxu0 0.0
        %3763 = vmatpush1.msra.mxu0 %v600
        %3764 = vmatprep.subr.mxu0 0.0
        %3765 = vmatpush1.msra.mxu0 %v601
        %3766 = vmatprep.mubr.f32.mxu0 %v3489
        %3767 = vmatmul.mubr.f32.gmra.mrb[0].mxu0 %v3487
        %v3768 = vpop.f32.mrb[0].mxu0
        %v3769 = vadd.f32 %v3699, %v3768
        %v3770 = vpop.f32.mrb[0].mxu0
        %3771 = vdwg.mxu0
        %3772 = vmatprep.subr.mxu0 0.0
        %3773 = vmatpush1.msra.mxu0 %v602
        %3774 = vmatprep.subr.mxu0 0.0
        %3775 = vmatpush1.msra.mxu0 %v603
        %3776 = vmatprep.subr.mxu0 0.0
        %3777 = vmatpush1.msra.mxu0 %v604
        %3778 = vmatprep.subr.mxu0 0.0
        %3779 = vmatpush1.msra.mxu0 %v605
        %3780 = vmatprep.subr.mxu0 0.0
        %3781 = vmatpush1.msra.mxu0 %v606
        %3782 = vmatprep.subr.mxu0 0.0
        %3783 = vmatpush1.msra.mxu0 %v607
        %3784 = vmatprep.subr.mxu0 0.0
        %3785 = vmatpush1.msra.mxu0 %v608
        %3786 = vmatprep.subr.mxu0 0.0
        %3787 = vmatpush1.msra.mxu0 %v609
        %3788 = vmatprep.subr.mxu0 0.0
        %3789 = vmatpush1.msra.mxu0 %v610
        %3790 = vmatprep.subr.mxu0 0.0
        %3791 = vmatpush1.msra.mxu0 %v611
        %3792 = vmatprep.subr.mxu0 0.0
        %3793 = vmatpush1.msra.mxu0 %v612
        %3794 = vmatprep.subr.mxu0 0.0
        %3795 = vmatpush1.msra.mxu0 %v613
        %3796 = vmatprep.subr.mxu0 0.0
        %3797 = vmatpush1.msra.mxu0 %v614
        %3798 = vmatprep.subr.mxu0 0.0
        %3799 = vmatpush1.msra.mxu0 %v615
        %3800 = vmatprep.subr.mxu0 0.0
        %3801 = vmatpush1.msra.mxu0 %v616
        %3802 = vmatprep.subr.mxu0 0.0
        %3803 = vmatpush1.msra.mxu0 %v617
        %3804 = vmatprep.subr.mxu0 0.0
        %3805 = vmatpush1.msra.mxu0 %v618
        %3806 = vmatprep.subr.mxu0 0.0
        %3807 = vmatpush1.msra.mxu0 %v619
        %3808 = vmatprep.subr.mxu0 0.0
        %3809 = vmatpush1.msra.mxu0 %v620
        %3810 = vmatprep.subr.mxu0 0.0
        %3811 = vmatpush1.msra.mxu0 %v621
        %3812 = vmatprep.subr.mxu0 0.0
        %3813 = vmatpush1.msra.mxu0 %v622
        %3814 = vmatprep.subr.mxu0 0.0
        %3815 = vmatpush1.msra.mxu0 %v623
        %3816 = vmatprep.subr.mxu0 0.0
        %3817 = vmatpush1.msra.mxu0 %v624
        %3818 = vmatprep.subr.mxu0 0.0
        %3819 = vmatpush1.msra.mxu0 %v625
        %3820 = vmatprep.subr.mxu0 0.0
        %3821 = vmatpush1.msra.mxu0 %v626
        %3822 = vmatprep.subr.mxu0 0.0
        %3823 = vmatpush1.msra.mxu0 %v627
        %3824 = vmatprep.subr.mxu0 0.0
        %3825 = vmatpush1.msra.mxu0 %v628
        %3826 = vmatprep.subr.mxu0 0.0
        %3827 = vmatpush1.msra.mxu0 %v629
        %3828 = vmatprep.subr.mxu0 0.0
        %3829 = vmatpush1.msra.mxu0 %v630
        %3830 = vmatprep.subr.mxu0 0.0
        %3831 = vmatpush1.msra.mxu0 %v631
        %3832 = vmatprep.subr.mxu0 0.0
        %3833 = vmatpush1.msra.mxu0 %v632
        %3834 = vmatprep.subr.mxu0 0.0
        %3835 = vmatpush1.msra.mxu0 %v633
        %3836 = vmatprep.mubr.f32.mxu0 %v3560
        %3837 = vmatmul.mubr.f32.gmra.mrb[0].mxu0 %v3558
        %v3838 = vpop.f32.mrb[0].mxu0
        %v3839 = vadd.f32 %v3769, %v3838
        %v3840 = vpop.f32.mrb[0].mxu0
        %3841 = vdwg.mxu0
        %3842 = vmatprep.subr.mxu0 0.0
        %3843 = vmatpush1.msra.mxu0 %v638
        %3844 = vmatprep.subr.mxu0 0.0
        %3845 = vmatpush1.msra.mxu0 %v639
        %3846 = vmatprep.subr.mxu0 0.0
        %3847 = vmatpush1.msra.mxu0 %v640
        %3848 = vmatprep.subr.mxu0 0.0
        %3849 = vmatpush1.msra.mxu0 %v641
        %3850 = vmatprep.subr.mxu0 0.0
        %3851 = vmatpush1.msra.mxu0 0.0
        %3852 = vmatprep.subr.mxu0 0.0
        %3853 = vmatpush1.msra.mxu0 0.0
        %3854 = vmatprep.subr.mxu0 0.0
        %3855 = vmatpush1.msra.mxu0 0.0
        %3856 = vmatprep.subr.mxu0 0.0
        %3857 = vmatpush1.msra.mxu0 0.0
        %3858 = vmatprep.subr.mxu0 0.0
        %3859 = vmatpush1.msra.mxu0 0.0
        %3860 = vmatprep.subr.mxu0 0.0
        %3861 = vmatpush1.msra.mxu0 0.0
        %3862 = vmatprep.subr.mxu0 0.0
        %3863 = vmatpush1.msra.mxu0 0.0
        %3864 = vmatprep.subr.mxu0 0.0
        %3865 = vmatpush1.msra.mxu0 0.0
        %3866 = vmatprep.subr.mxu0 0.0
        %3867 = vmatpush1.msra.mxu0 0.0
        %3868 = vmatprep.subr.mxu0 0.0
        %3869 = vmatpush1.msra.mxu0 0.0
        %3870 = vmatprep.subr.mxu0 0.0
        %3871 = vmatpush1.msra.mxu0 0.0
        %3872 = vmatprep.subr.mxu0 0.0
        %3873 = vmatpush1.msra.mxu0 0.0
        %3874 = vmatprep.subr.mxu0 0.0
        %3875 = vmatpush1.msra.mxu0 0.0
        %3876 = vmatprep.subr.mxu0 0.0
        %3877 = vmatpush1.msra.mxu0 0.0
        %3878 = vmatprep.subr.mxu0 0.0
        %3879 = vmatpush1.msra.mxu0 0.0
        %3880 = vmatprep.subr.mxu0 0.0
        %3881 = vmatpush1.msra.mxu0 0.0
        %3882 = vmatprep.subr.mxu0 0.0
        %3883 = vmatpush1.msra.mxu0 0.0
        %3884 = vmatprep.subr.mxu0 0.0
        %3885 = vmatpush1.msra.mxu0 0.0
        %3886 = vmatprep.subr.mxu0 0.0
        %3887 = vmatpush1.msra.mxu0 0.0
        %3888 = vmatprep.subr.mxu0 0.0
        %3889 = vmatpush1.msra.mxu0 0.0
        %3890 = vmatprep.subr.mxu0 0.0
        %3891 = vmatpush1.msra.mxu0 0.0
        %3892 = vmatprep.subr.mxu0 0.0
        %3893 = vmatpush1.msra.mxu0 0.0
        %3894 = vmatprep.subr.mxu0 0.0
        %3895 = vmatpush1.msra.mxu0 0.0
        %3896 = vmatprep.subr.mxu0 0.0
        %3897 = vmatpush1.msra.mxu0 0.0
        %3898 = vmatprep.subr.mxu0 0.0
        %3899 = vmatpush1.msra.mxu0 0.0
        %3900 = vmatprep.subr.mxu0 0.0
        %3901 = vmatpush1.msra.mxu0 0.0
        %3902 = vmatprep.subr.mxu0 0.0
        %3903 = vmatpush1.msra.mxu0 0.0
        %3904 = vmatprep.subr.mxu0 0.0
        %3905 = vmatpush1.msra.mxu0 0.0
        %3906 = vmatprep.mubr.f32.mxu0 0.0
        %3907 = vmatmul.mubr.f32.gmra.mrb[0].mxu0 %v2668
        %v3908 = vpop.f32.mrb[0].mxu0
        %v3909 = vadd.f32 0.0, %v3908
        %v3910 = vpop.f32.mrb[0].mxu0
        %3911 = vdwg.mxu0
        %v3913 = vsel %vm1300, %v3839, 0
        %3915 = vmatprep.subr.mxu0 0.0
        %3916 = vmatpush1.msra.mxu0 %v634
        %3917 = vmatprep.subr.mxu0 0.0
        %3918 = vmatpush1.msra.mxu0 %v635
        %3919 = vmatprep.subr.mxu0 0.0
        %3920 = vmatpush1.msra.mxu0 %v636
        %3921 = vmatprep.subr.mxu0 0.0
        %3922 = vmatpush1.msra.mxu0 %v637
        %3923 = vmatprep.subr.mxu0 0.0
        %3924 = vmatpush1.msra.mxu0 0.0
        %3925 = vmatprep.subr.mxu0 0.0
        %3926 = vmatpush1.msra.mxu0 0.0
        %3927 = vmatprep.subr.mxu0 0.0
        %3928 = vmatpush1.msra.mxu0 0.0
        %3929 = vmatprep.subr.mxu0 0.0
        %3930 = vmatpush1.msra.mxu0 0.0
        %3931 = vmatprep.subr.mxu0 0.0
        %3932 = vmatpush1.msra.mxu0 0.0
        %3933 = vmatprep.subr.mxu0 0.0
        %3934 = vmatpush1.msra.mxu0 0.0
        %3935 = vmatprep.subr.mxu0 0.0
        %3936 = vmatpush1.msra.mxu0 0.0
        %3937 = vmatprep.subr.mxu0 0.0
        %3938 = vmatpush1.msra.mxu0 0.0
        %3939 = vmatprep.subr.mxu0 0.0
        %3940 = vmatpush1.msra.mxu0 0.0
        %3941 = vmatprep.subr.mxu0 0.0
        %3942 = vmatpush1.msra.mxu0 0.0
        %3943 = vmatprep.subr.mxu0 0.0
        %3944 = vmatpush1.msra.mxu0 0.0
        %3945 = vmatprep.subr.mxu0 0.0
        %3946 = vmatpush1.msra.mxu0 0.0
        %3947 = vmatprep.subr.mxu0 0.0
        %3948 = vmatpush1.msra.mxu0 0.0
        %3949 = vmatprep.subr.mxu0 0.0
        %3950 = vmatpush1.msra.mxu0 0.0
        %3951 = vmatprep.subr.mxu0 0.0
        %3952 = vmatpush1.msra.mxu0 0.0
        %3953 = vmatprep.subr.mxu0 0.0
        %3954 = vmatpush1.msra.mxu0 0.0
        %3955 = vmatprep.subr.mxu0 0.0
        %3956 = vmatpush1.msra.mxu0 0.0
        %3957 = vmatprep.subr.mxu0 0.0
        %3958 = vmatpush1.msra.mxu0 0.0
        %3959 = vmatprep.subr.mxu0 0.0
        %3960 = vmatpush1.msra.mxu0 0.0
        %3961 = vmatprep.subr.mxu0 0.0
        %3962 = vmatpush1.msra.mxu0 0.0
        %3963 = vmatprep.subr.mxu0 0.0
        %3964 = vmatpush1.msra.mxu0 0.0
        %3965 = vmatprep.subr.mxu0 0.0
        %3966 = vmatpush1.msra.mxu0 0.0
        %3967 = vmatprep.subr.mxu0 0.0
        %3968 = vmatpush1.msra.mxu0 0.0
        %3969 = vmatprep.subr.mxu0 0.0
        %3970 = vmatpush1.msra.mxu0 0.0
        %3971 = vmatprep.subr.mxu0 0.0
        %3972 = vmatpush1.msra.mxu0 0.0
        %3973 = vmatprep.subr.mxu0 0.0
        %3974 = vmatpush1.msra.mxu0 0.0
        %3975 = vmatprep.subr.mxu0 0.0
        %3976 = vmatpush1.msra.mxu0 0.0
        %3977 = vmatprep.subr.mxu0 0.0
        %3978 = vmatpush1.msra.mxu0 0.0
        %3979 = vmatprep.mubr.f32.mxu0 0.0
        %3980 = vmatmul.mubr.f32.gmra.mrb[0].mxu0 %v3913
        %v3981 = vpop.f32.mrb[0].mxu0
        %v3982 = vadd.f32 %v3909, %v3981
        %v3983 = vpop.f32.mrb[0].mxu0
        %3984 = vdwg.mxu0
        %v3985 = vadd.f32 %v3982, %v2634
        %v3986 = vxor.u32 %v3985, 2147483648
        %v3987 = vmul.f32 %v3986, 1.442695
        %v3988 = vpow.pop %v3987
        %v3989 = vadd.f32 %v3988, 1.0
        %v3990 = vrcp.pop %v3989
        %v3991 = vmul.f32 1.0, %v3990
        %3993 = vrot.lane.b32.xlu0 %v3985, 32
        %v3994 = vpop.permute.xlu0 %3993
        %v3996 = vmul.f32 %v3991, %v3994
        %3998 = vrot.lane.b32.xlu0 %v3996, 64
        %v3999 = vpop.permute.xlu0 %3998
        %v4001 = vadd.f32 %v3985, %v3999
        %v4002 = vtanh.pop %v4001
        %v4003 = vsub.f32 1.0, %v3991
        %4005 = vrot.lane.b32.xlu0 %v4002, 96
        %v4006 = vpop.permute.xlu0 %4005
        %v4008 = vmul.f32 %v4003, %v4006
        %v4009 = vmul.f32 %v3991, %v2664
        %v4010 = vadd.f32 %v4008, %v4009
        %4012 = vrot.lane.b32.xlu0 %v4010, 96
        %v4013 = vpop.permute.xlu0 %4012
        %v4014 = vsel %vm1300, %v4013, 0
        %4016 = vmatprep.subr.mxu0 %v475
        %4017 = vmatpush1.msra.mxu0 %v474
        %4018 = vmatprep.subr.mxu0 %v483
        %4019 = vmatpush1.msra.mxu0 %v482
        %4020 = vmatprep.subr.mxu0 %v491
        %4021 = vmatpush1.msra.mxu0 %v490
        %4022 = vmatprep.subr.mxu0 %v499
        %4023 = vmatpush1.msra.mxu0 %v498
        %4024 = vmatprep.subr.mxu0 0.0
        %4025 = vmatpush1.msra.mxu0 0.0
        %4026 = vmatprep.subr.mxu0 0.0
        %4027 = vmatpush1.msra.mxu0 0.0
        %4028 = vmatprep.subr.mxu0 0.0
        %4029 = vmatpush1.msra.mxu0 0.0
        %4030 = vmatprep.subr.mxu0 0.0
        %4031 = vmatpush1.msra.mxu0 0.0
        %4032 = vmatprep.subr.mxu0 0.0
        %4033 = vmatpush1.msra.mxu0 0.0
        %4034 = vmatprep.subr.mxu0 0.0
        %4035 = vmatpush1.msra.mxu0 0.0
        %4036 = vmatprep.subr.mxu0 0.0
        %4037 = vmatpush1.msra.mxu0 0.0
        %4038 = vmatprep.subr.mxu0 0.0
        %4039 = vmatpush1.msra.mxu0 0.0
        %4040 = vmatprep.subr.mxu0 0.0
        %4041 = vmatpush1.msra.mxu0 0.0
        %4042 = vmatprep.subr.mxu0 0.0
        %4043 = vmatpush1.msra.mxu0 0.0
        %4044 = vmatprep.subr.mxu0 0.0
        %4045 = vmatpush1.msra.mxu0 0.0
        %4046 = vmatprep.subr.mxu0 0.0
        %4047 = vmatpush1.msra.mxu0 0.0
        %4048 = vmatprep.subr.mxu0 0.0
        %4049 = vmatpush1.msra.mxu0 0.0
        %4050 = vmatprep.subr.mxu0 0.0
        %4051 = vmatpush1.msra.mxu0 0.0
        %4052 = vmatprep.subr.mxu0 0.0
        %4053 = vmatpush1.msra.mxu0 0.0
        %4054 = vmatprep.subr.mxu0 0.0
        %4055 = vmatpush1.msra.mxu0 0.0
        %4056 = vmatprep.subr.mxu0 0.0
        %4057 = vmatpush1.msra.mxu0 0.0
        %4058 = vmatprep.subr.mxu0 0.0
        %4059 = vmatpush1.msra.mxu0 0.0
        %4060 = vmatprep.subr.mxu0 0.0
        %4061 = vmatpush1.msra.mxu0 0.0
        %4062 = vmatprep.subr.mxu0 0.0
        %4063 = vmatpush1.msra.mxu0 0.0
        %4064 = vmatprep.subr.mxu0 0.0
        %4065 = vmatpush1.msra.mxu0 0.0
        %4066 = vmatprep.subr.mxu0 0.0
        %4067 = vmatpush1.msra.mxu0 0.0
        %4068 = vmatprep.subr.mxu0 0.0
        %4069 = vmatpush1.msra.mxu0 0.0
        %4070 = vmatprep.subr.mxu0 0.0
        %4071 = vmatpush1.msra.mxu0 0.0
        %4072 = vmatprep.subr.mxu0 0.0
        %4073 = vmatpush1.msra.mxu0 0.0
        %4074 = vmatprep.subr.mxu0 0.0
        %4075 = vmatpush1.msra.mxu0 0.0
        %4076 = vmatprep.subr.mxu0 0.0
        %4077 = vmatpush1.msra.mxu0 0.0
        %4078 = vmatprep.subr.mxu0 0.0
        %4079 = vmatpush1.msra.mxu0 0.0
        %4080 = vmatprep.mubr.f32.mxu0 0.0
        %4081 = vmatmul.mubr.f32.gmra.mrb[0].mxu0 %v4014
        %v4082 = vpop.f32.mrb[0].mxu0
        %v4083 = vadd.f32 0.0, %v4082
        %v4084 = vpop.f32.mrb[0].mxu0
        %v4085 = vadd.f32 0.0, %v4084
        %4086 = vdwg.mxu0
        %4087 = vmatprep.subr.mxu0 %v477
        %4088 = vmatpush1.msra.mxu0 %v476
        %4089 = vmatprep.subr.mxu0 %v485
        %4090 = vmatpush1.msra.mxu0 %v484
        %4091 = vmatprep.subr.mxu0 %v493
        %4092 = vmatpush1.msra.mxu0 %v492
        %4093 = vmatprep.subr.mxu0 %v501
        %4094 = vmatpush1.msra.mxu0 %v500
        %4095 = vmatprep.subr.mxu0 0.0
        %4096 = vmatpush1.msra.mxu0 0.0
        %4097 = vmatprep.subr.mxu0 0.0
        %4098 = vmatpush1.msra.mxu0 0.0
        %4099 = vmatprep.subr.mxu0 0.0
        %4100 = vmatpush1.msra.mxu0 0.0
        %4101 = vmatprep.subr.mxu0 0.0
        %4102 = vmatpush1.msra.mxu0 0.0
        %4103 = vmatprep.subr.mxu0 0.0
        %4104 = vmatpush1.msra.mxu0 0.0
        %4105 = vmatprep.subr.mxu0 0.0
        %4106 = vmatpush1.msra.mxu0 0.0
        %4107 = vmatprep.subr.mxu0 0.0
        %4108 = vmatpush1.msra.mxu0 0.0
        %4109 = vmatprep.subr.mxu0 0.0
        %4110 = vmatpush1.msra.mxu0 0.0
        %4111 = vmatprep.subr.mxu0 0.0
        %4112 = vmatpush1.msra.mxu0 0.0
        %4113 = vmatprep.subr.mxu0 0.0
        %4114 = vmatpush1.msra.mxu0 0.0
        %4115 = vmatprep.subr.mxu0 0.0
        %4116 = vmatpush1.msra.mxu0 0.0
        %4117 = vmatprep.subr.mxu0 0.0
        %4118 = vmatpush1.msra.mxu0 0.0
        %4119 = vmatprep.subr.mxu0 0.0
        %4120 = vmatpush1.msra.mxu0 0.0
        %4121 = vmatprep.subr.mxu0 0.0
        %4122 = vmatpush1.msra.mxu0 0.0
        %4123 = vmatprep.subr.mxu0 0.0
        %4124 = vmatpush1.msra.mxu0 0.0
        %4125 = vmatprep.subr.mxu0 0.0
        %4126 = vmatpush1.msra.mxu0 0.0
        %4127 = vmatprep.subr.mxu0 0.0
        %4128 = vmatpush1.msra.mxu0 0.0
        %4129 = vmatprep.subr.mxu0 0.0
        %4130 = vmatpush1.msra.mxu0 0.0
        %4131 = vmatprep.subr.mxu0 0.0
        %4132 = vmatpush1.msra.mxu0 0.0
        %4133 = vmatprep.subr.mxu0 0.0
        %4134 = vmatpush1.msra.mxu0 0.0
        %4135 = vmatprep.subr.mxu0 0.0
        %4136 = vmatpush1.msra.mxu0 0.0
        %4137 = vmatprep.subr.mxu0 0.0
        %4138 = vmatpush1.msra.mxu0 0.0
        %4139 = vmatprep.subr.mxu0 0.0
        %4140 = vmatpush1.msra.mxu0 0.0
        %4141 = vmatprep.subr.mxu0 0.0
        %4142 = vmatpush1.msra.mxu0 0.0
        %4143 = vmatprep.subr.mxu0 0.0
        %4144 = vmatpush1.msra.mxu0 0.0
        %4145 = vmatprep.subr.mxu0 0.0
        %4146 = vmatpush1.msra.mxu0 0.0
        %4147 = vmatprep.subr.mxu0 0.0
        %4148 = vmatpush1.msra.mxu0 0.0
        %4149 = vmatprep.subr.mxu0 0.0
        %4150 = vmatpush1.msra.mxu0 0.0
        %4151 = vmatprep.mubr.f32.mxu0 0.0
        %4152 = vmatmul.mubr.f32.gmra.mrb[0].mxu0 %v4014
        %v4153 = vpop.f32.mrb[0].mxu0
        %v4154 = vadd.f32 0.0, %v4153
        %v4155 = vpop.f32.mrb[0].mxu0
        %v4156 = vadd.f32 0.0, %v4155
        %4157 = vdwg.mxu0
        %4158 = vmatprep.subr.mxu0 %v479
        %4159 = vmatpush1.msra.mxu0 %v478
        %4160 = vmatprep.subr.mxu0 %v487
        %4161 = vmatpush1.msra.mxu0 %v486
        %4162 = vmatprep.subr.mxu0 %v495
        %4163 = vmatpush1.msra.mxu0 %v494
        %4164 = vmatprep.subr.mxu0 %v503
        %4165 = vmatpush1.msra.mxu0 %v502
        %4166 = vmatprep.subr.mxu0 0.0
        %4167 = vmatpush1.msra.mxu0 0.0
        %4168 = vmatprep.subr.mxu0 0.0
        %4169 = vmatpush1.msra.mxu0 0.0
        %4170 = vmatprep.subr.mxu0 0.0
        %4171 = vmatpush1.msra.mxu0 0.0
        %4172 = vmatprep.subr.mxu0 0.0
        %4173 = vmatpush1.msra.mxu0 0.0
        %4174 = vmatprep.subr.mxu0 0.0
        %4175 = vmatpush1.msra.mxu0 0.0
        %4176 = vmatprep.subr.mxu0 0.0
        %4177 = vmatpush1.msra.mxu0 0.0
        %4178 = vmatprep.subr.mxu0 0.0
        %4179 = vmatpush1.msra.mxu0 0.0
        %4180 = vmatprep.subr.mxu0 0.0
        %4181 = vmatpush1.msra.mxu0 0.0
        %4182 = vmatprep.subr.mxu0 0.0
        %4183 = vmatpush1.msra.mxu0 0.0
        %4184 = vmatprep.subr.mxu0 0.0
        %4185 = vmatpush1.msra.mxu0 0.0
        %4186 = vmatprep.subr.mxu0 0.0
        %4187 = vmatpush1.msra.mxu0 0.0
        %4188 = vmatprep.subr.mxu0 0.0
        %4189 = vmatpush1.msra.mxu0 0.0
        %4190 = vmatprep.subr.mxu0 0.0
        %4191 = vmatpush1.msra.mxu0 0.0
        %4192 = vmatprep.subr.mxu0 0.0
        %4193 = vmatpush1.msra.mxu0 0.0
        %4194 = vmatprep.subr.mxu0 0.0
        %4195 = vmatpush1.msra.mxu0 0.0
        %4196 = vmatprep.subr.mxu0 0.0
        %4197 = vmatpush1.msra.mxu0 0.0
        %4198 = vmatprep.subr.mxu0 0.0
        %4199 = vmatpush1.msra.mxu0 0.0
        %4200 = vmatprep.subr.mxu0 0.0
        %4201 = vmatpush1.msra.mxu0 0.0
        %4202 = vmatprep.subr.mxu0 0.0
        %4203 = vmatpush1.msra.mxu0 0.0
        %4204 = vmatprep.subr.mxu0 0.0
        %4205 = vmatpush1.msra.mxu0 0.0
        %4206 = vmatprep.subr.mxu0 0.0
        %4207 = vmatpush1.msra.mxu0 0.0
        %4208 = vmatprep.subr.mxu0 0.0
        %4209 = vmatpush1.msra.mxu0 0.0
        %4210 = vmatprep.subr.mxu0 0.0
        %4211 = vmatpush1.msra.mxu0 0.0
        %4212 = vmatprep.subr.mxu0 0.0
        %4213 = vmatpush1.msra.mxu0 0.0
        %4214 = vmatprep.subr.mxu0 0.0
        %4215 = vmatpush1.msra.mxu0 0.0
        %4216 = vmatprep.subr.mxu0 0.0
        %4217 = vmatpush1.msra.mxu0 0.0
        %4218 = vmatprep.subr.mxu0 0.0
        %4219 = vmatpush1.msra.mxu0 0.0
        %4220 = vmatprep.subr.mxu0 0.0
        %4221 = vmatpush1.msra.mxu0 0.0
        %4222 = vmatprep.mubr.f32.mxu0 0.0
        %4223 = vmatmul.mubr.f32.gmra.mrb[0].mxu0 %v4014
        %v4224 = vpop.f32.mrb[0].mxu0
        %v4225 = vadd.f32 0.0, %v4224
        %v4226 = vpop.f32.mrb[0].mxu0
        %v4227 = vadd.f32 0.0, %v4226
        %4228 = vdwg.mxu0
        %4229 = vmatprep.subr.mxu0 %v481
        %4230 = vmatpush1.msra.mxu0 %v480
        %4231 = vmatprep.subr.mxu0 %v489
        %4232 = vmatpush1.msra.mxu0 %v488
        %4233 = vmatprep.subr.mxu0 %v497
        %4234 = vmatpush1.msra.mxu0 %v496
        %4235 = vmatprep.subr.mxu0 %v505
        %4236 = vmatpush1.msra.mxu0 %v504
        %4237 = vmatprep.subr.mxu0 0.0
        %4238 = vmatpush1.msra.mxu0 0.0
        %4239 = vmatprep.subr.mxu0 0.0
        %4240 = vmatpush1.msra.mxu0 0.0
        %4241 = vmatprep.subr.mxu0 0.0
        %4242 = vmatpush1.msra.mxu0 0.0
        %4243 = vmatprep.subr.mxu0 0.0
        %4244 = vmatpush1.msra.mxu0 0.0
        %4245 = vmatprep.subr.mxu0 0.0
        %4246 = vmatpush1.msra.mxu0 0.0
        %4247 = vmatprep.subr.mxu0 0.0
        %4248 = vmatpush1.msra.mxu0 0.0
        %4249 = vmatprep.subr.mxu0 0.0
        %4250 = vmatpush1.msra.mxu0 0.0
        %4251 = vmatprep.subr.mxu0 0.0
        %4252 = vmatpush1.msra.mxu0 0.0
        %4253 = vmatprep.subr.mxu0 0.0
        %4254 = vmatpush1.msra.mxu0 0.0
        %4255 = vmatprep.subr.mxu0 0.0
        %4256 = vmatpush1.msra.mxu0 0.0
        %4257 = vmatprep.subr.mxu0 0.0
        %4258 = vmatpush1.msra.mxu0 0.0
        %4259 = vmatprep.subr.mxu0 0.0
        %4260 = vmatpush1.msra.mxu0 0.0
        %4261 = vmatprep.subr.mxu0 0.0
        %4262 = vmatpush1.msra.mxu0 0.0
        %4263 = vmatprep.subr.mxu0 0.0
        %4264 = vmatpush1.msra.mxu0 0.0
        %4265 = vmatprep.subr.mxu0 0.0
        %4266 = vmatpush1.msra.mxu0 0.0
        %4267 = vmatprep.subr.mxu0 0.0
        %4268 = vmatpush1.msra.mxu0 0.0
        %4269 = vmatprep.subr.mxu0 0.0
        %4270 = vmatpush1.msra.mxu0 0.0
        %4271 = vmatprep.subr.mxu0 0.0
        %4272 = vmatpush1.msra.mxu0 0.0
        %4273 = vmatprep.subr.mxu0 0.0
        %4274 = vmatpush1.msra.mxu0 0.0
        %4275 = vmatprep.subr.mxu0 0.0
        %4276 = vmatpush1.msra.mxu0 0.0
        %4277 = vmatprep.subr.mxu0 0.0
        %4278 = vmatpush1.msra.mxu0 0.0
        %4279 = vmatprep.subr.mxu0 0.0
        %4280 = vmatpush1.msra.mxu0 0.0
        %4281 = vmatprep.subr.mxu0 0.0
        %4282 = vmatpush1.msra.mxu0 0.0
        %4283 = vmatprep.subr.mxu0 0.0
        %4284 = vmatpush1.msra.mxu0 0.0
        %4285 = vmatprep.subr.mxu0 0.0
        %4286 = vmatpush1.msra.mxu0 0.0
        %4287 = vmatprep.subr.mxu0 0.0
        %4288 = vmatpush1.msra.mxu0 0.0
        %4289 = vmatprep.subr.mxu0 0.0
        %4290 = vmatpush1.msra.mxu0 0.0
        %4291 = vmatprep.subr.mxu0 0.0
        %4292 = vmatpush1.msra.mxu0 0.0
        %4293 = vmatprep.mubr.f32.mxu0 0.0
        %4294 = vmatmul.mubr.f32.gmra.mrb[0].mxu0 %v4014
        %v4295 = vpop.f32.mrb[0].mxu0
        %v4296 = vadd.f32 0.0, %v4295
        %v4297 = vpop.f32.mrb[0].mxu0
        %v4298 = vadd.f32 0.0, %v4297
        %4299 = vdwg.mxu0
        %4300 = vmatprep.subr.mxu0 %v4085
        %4301 = vmatpush1.msra.mxu0 %v4083
        %4302 = vmatprep.subr.mxu0 0.0
        %4303 = vmatpush1.msra.mxu0 0.0
        %4304 = vmatprep.subr.mxu0 0.0
        %4305 = vmatpush1.msra.mxu0 0.0
        %4306 = vmatprep.subr.mxu0 0.0
        %4307 = vmatpush1.msra.mxu0 0.0
        %4308 = vmatprep.subr.mxu0 0.0
        %4309 = vmatpush1.msra.mxu0 0.0
        %4310 = vmatprep.subr.mxu0 0.0
        %4311 = vmatpush1.msra.mxu0 0.0
        %4312 = vmatprep.subr.mxu0 0.0
        %4313 = vmatpush1.msra.mxu0 0.0
        %4314 = vmatprep.subr.mxu0 0.0
        %4315 = vmatpush1.msra.mxu0 0.0
        %4316 = vmatprep.subr.mxu0 0.0
        %4317 = vmatpush1.msra.mxu0 0.0
        %4318 = vmatprep.subr.mxu0 0.0
        %4319 = vmatpush1.msra.mxu0 0.0
        %4320 = vmatprep.subr.mxu0 0.0
        %4321 = vmatpush1.msra.mxu0 0.0
        %4322 = vmatprep.subr.mxu0 0.0
        %4323 = vmatpush1.msra.mxu0 0.0
        %4324 = vmatprep.subr.mxu0 0.0
        %4325 = vmatpush1.msra.mxu0 0.0
        %4326 = vmatprep.subr.mxu0 0.0
        %4327 = vmatpush1.msra.mxu0 0.0
        %4328 = vmatprep.subr.mxu0 0.0
        %4329 = vmatpush1.msra.mxu0 0.0
        %4330 = vmatprep.subr.mxu0 0.0
        %4331 = vmatpush1.msra.mxu0 0.0
        %4332 = vmatprep.subr.mxu0 0.0
        %4333 = vmatpush1.msra.mxu0 0.0
        %4334 = vmatprep.subr.mxu0 0.0
        %4335 = vmatpush1.msra.mxu0 0.0
        %4336 = vmatprep.subr.mxu0 0.0
        %4337 = vmatpush1.msra.mxu0 0.0
        %4338 = vmatprep.subr.mxu0 0.0
        %4339 = vmatpush1.msra.mxu0 0.0
        %4340 = vmatprep.subr.mxu0 0.0
        %4341 = vmatpush1.msra.mxu0 0.0
        %4342 = vmatprep.subr.mxu0 0.0
        %4343 = vmatpush1.msra.mxu0 0.0
        %4344 = vmatprep.subr.mxu0 0.0
        %4345 = vmatpush1.msra.mxu0 0.0
        %4346 = vmatprep.subr.mxu0 0.0
        %4347 = vmatpush1.msra.mxu0 0.0
        %4348 = vmatprep.subr.mxu0 0.0
        %4349 = vmatpush1.msra.mxu0 0.0
        %4350 = vmatprep.subr.mxu0 0.0
        %4351 = vmatpush1.msra.mxu0 0.0
        %4352 = vmatprep.subr.mxu0 0.0
        %4353 = vmatpush1.msra.mxu0 0.0
        %4354 = vmatprep.subr.mxu0 0.0
        %4355 = vmatpush1.msra.mxu0 0.0
        %4356 = vmatprep.subr.mxu0 0.0
        %4357 = vmatpush1.msra.mxu0 0.0
        %4358 = vmatprep.subr.mxu0 0.0
        %4359 = vmatpush1.msra.mxu0 0.0
        %4360 = vmatprep.subr.mxu0 0.0
        %4361 = vmatpush1.msra.mxu0 0.0
        %4362 = vmatprep.subr.mxu0 0.0
        %4363 = vmatpush1.msra.mxu0 0.0
        %4364 = vmatprep.mubr.f32.mxu0 0.0
        %4365 = vmatmul.mubr.f32.gmra.mrb[0].mxu0 %v1589
        %v4366 = vpop.f32.mrb[0].mxu0
        %v4367 = vadd.f32 0.0, %v4366
        %v4368 = vpop.f32.mrb[0].mxu0
        %v4369 = vadd.f32 0.0, %v4368
        %4370 = vmatprep.mubr.f32.mxu0 0.0
        %4371 = vmatmul.mubr.f32.gmra.mrb[0].mxu0 %v1592
        %v4372 = vpop.f32.mrb[0].mxu0
        %v4373 = vadd.f32 0.0, %v4372
        %v4374 = vpop.f32.mrb[0].mxu0
        %v4375 = vadd.f32 0.0, %v4374
        %4376 = vdwg.mxu0
        %4377 = vmatprep.subr.mxu0 %v4156
        %4378 = vmatpush1.msra.mxu0 %v4154
        %4379 = vmatprep.subr.mxu0 0.0
        %4380 = vmatpush1.msra.mxu0 0.0
        %4381 = vmatprep.subr.mxu0 0.0
        %4382 = vmatpush1.msra.mxu0 0.0
        %4383 = vmatprep.subr.mxu0 0.0
        %4384 = vmatpush1.msra.mxu0 0.0
        %4385 = vmatprep.subr.mxu0 0.0
        %4386 = vmatpush1.msra.mxu0 0.0
        %4387 = vmatprep.subr.mxu0 0.0
        %4388 = vmatpush1.msra.mxu0 0.0
        %4389 = vmatprep.subr.mxu0 0.0
        %4390 = vmatpush1.msra.mxu0 0.0
        %4391 = vmatprep.subr.mxu0 0.0
        %4392 = vmatpush1.msra.mxu0 0.0
        %4393 = vmatprep.subr.mxu0 0.0
        %4394 = vmatpush1.msra.mxu0 0.0
        %4395 = vmatprep.subr.mxu0 0.0
        %4396 = vmatpush1.msra.mxu0 0.0
        %4397 = vmatprep.subr.mxu0 0.0
        %4398 = vmatpush1.msra.mxu0 0.0
        %4399 = vmatprep.subr.mxu0 0.0
        %4400 = vmatpush1.msra.mxu0 0.0
        %4401 = vmatprep.subr.mxu0 0.0
        %4402 = vmatpush1.msra.mxu0 0.0
        %4403 = vmatprep.subr.mxu0 0.0
        %4404 = vmatpush1.msra.mxu0 0.0
        %4405 = vmatprep.subr.mxu0 0.0
        %4406 = vmatpush1.msra.mxu0 0.0
        %4407 = vmatprep.subr.mxu0 0.0
        %4408 = vmatpush1.msra.mxu0 0.0
        %4409 = vmatprep.subr.mxu0 0.0
        %4410 = vmatpush1.msra.mxu0 0.0
        %4411 = vmatprep.subr.mxu0 0.0
        %4412 = vmatpush1.msra.mxu0 0.0
        %4413 = vmatprep.subr.mxu0 0.0
        %4414 = vmatpush1.msra.mxu0 0.0
        %4415 = vmatprep.subr.mxu0 0.0
        %4416 = vmatpush1.msra.mxu0 0.0
        %4417 = vmatprep.subr.mxu0 0.0
        %4418 = vmatpush1.msra.mxu0 0.0
        %4419 = vmatprep.subr.mxu0 0.0
        %4420 = vmatpush1.msra.mxu0 0.0
        %4421 = vmatprep.subr.mxu0 0.0
        %4422 = vmatpush1.msra.mxu0 0.0
        %4423 = vmatprep.subr.mxu0 0.0
        %4424 = vmatpush1.msra.mxu0 0.0
        %4425 = vmatprep.subr.mxu0 0.0
        %4426 = vmatpush1.msra.mxu0 0.0
        %4427 = vmatprep.subr.mxu0 0.0
        %4428 = vmatpush1.msra.mxu0 0.0
        %4429 = vmatprep.subr.mxu0 0.0
        %4430 = vmatpush1.msra.mxu0 0.0
        %4431 = vmatprep.subr.mxu0 0.0
        %4432 = vmatpush1.msra.mxu0 0.0
        %4433 = vmatprep.subr.mxu0 0.0
        %4434 = vmatpush1.msra.mxu0 0.0
        %4435 = vmatprep.subr.mxu0 0.0
        %4436 = vmatpush1.msra.mxu0 0.0
        %4437 = vmatprep.subr.mxu0 0.0
        %4438 = vmatpush1.msra.mxu0 0.0
        %4439 = vmatprep.subr.mxu0 0.0
        %4440 = vmatpush1.msra.mxu0 0.0
        %4441 = vmatprep.mubr.f32.mxu0 0.0
        %4442 = vmatmul.mubr.f32.gmra.mrb[0].mxu0 %v1589
        %v4443 = vpop.f32.mrb[0].mxu0
        %v4444 = vadd.f32 0.0, %v4443
        %v4445 = vpop.f32.mrb[0].mxu0
        %v4446 = vadd.f32 0.0, %v4445
        %4447 = vmatprep.mubr.f32.mxu0 0.0
        %4448 = vmatmul.mubr.f32.gmra.mrb[0].mxu0 %v1592
        %v4449 = vpop.f32.mrb[0].mxu0
        %v4450 = vadd.f32 0.0, %v4449
        %v4451 = vpop.f32.mrb[0].mxu0
        %v4452 = vadd.f32 0.0, %v4451
        %4453 = vdwg.mxu0
        %4454 = vmatprep.subr.mxu0 %v4227
        %4455 = vmatpush1.msra.mxu0 %v4225
        %4456 = vmatprep.subr.mxu0 0.0
        %4457 = vmatpush1.msra.mxu0 0.0
        %4458 = vmatprep.subr.mxu0 0.0
        %4459 = vmatpush1.msra.mxu0 0.0
        %4460 = vmatprep.subr.mxu0 0.0
        %4461 = vmatpush1.msra.mxu0 0.0
        %4462 = vmatprep.subr.mxu0 0.0
        %4463 = vmatpush1.msra.mxu0 0.0
        %4464 = vmatprep.subr.mxu0 0.0
        %4465 = vmatpush1.msra.mxu0 0.0
        %4466 = vmatprep.subr.mxu0 0.0
        %4467 = vmatpush1.msra.mxu0 0.0
        %4468 = vmatprep.subr.mxu0 0.0
        %4469 = vmatpush1.msra.mxu0 0.0
        %4470 = vmatprep.subr.mxu0 0.0
        %4471 = vmatpush1.msra.mxu0 0.0
        %4472 = vmatprep.subr.mxu0 0.0
        %4473 = vmatpush1.msra.mxu0 0.0
        %4474 = vmatprep.subr.mxu0 0.0
        %4475 = vmatpush1.msra.mxu0 0.0
        %4476 = vmatprep.subr.mxu0 0.0
        %4477 = vmatpush1.msra.mxu0 0.0
        %4478 = vmatprep.subr.mxu0 0.0
        %4479 = vmatpush1.msra.mxu0 0.0
        %4480 = vmatprep.subr.mxu0 0.0
        %4481 = vmatpush1.msra.mxu0 0.0
        %4482 = vmatprep.subr.mxu0 0.0
        %4483 = vmatpush1.msra.mxu0 0.0
        %4484 = vmatprep.subr.mxu0 0.0
        %4485 = vmatpush1.msra.mxu0 0.0
        %4486 = vmatprep.subr.mxu0 0.0
        %4487 = vmatpush1.msra.mxu0 0.0
        %4488 = vmatprep.subr.mxu0 0.0
        %4489 = vmatpush1.msra.mxu0 0.0
        %4490 = vmatprep.subr.mxu0 0.0
        %4491 = vmatpush1.msra.mxu0 0.0
        %4492 = vmatprep.subr.mxu0 0.0
        %4493 = vmatpush1.msra.mxu0 0.0
        %4494 = vmatprep.subr.mxu0 0.0
        %4495 = vmatpush1.msra.mxu0 0.0
        %4496 = vmatprep.subr.mxu0 0.0
        %4497 = vmatpush1.msra.mxu0 0.0
        %4498 = vmatprep.subr.mxu0 0.0
        %4499 = vmatpush1.msra.mxu0 0.0
        %4500 = vmatprep.subr.mxu0 0.0
        %4501 = vmatpush1.msra.mxu0 0.0
        %4502 = vmatprep.subr.mxu0 0.0
        %4503 = vmatpush1.msra.mxu0 0.0
        %4504 = vmatprep.subr.mxu0 0.0
        %4505 = vmatpush1.msra.mxu0 0.0
        %4506 = vmatprep.subr.mxu0 0.0
        %4507 = vmatpush1.msra.mxu0 0.0
        %4508 = vmatprep.subr.mxu0 0.0
        %4509 = vmatpush1.msra.mxu0 0.0
        %4510 = vmatprep.subr.mxu0 0.0
        %4511 = vmatpush1.msra.mxu0 0.0
        %4512 = vmatprep.subr.mxu0 0.0
        %4513 = vmatpush1.msra.mxu0 0.0
        %4514 = vmatprep.subr.mxu0 0.0
        %4515 = vmatpush1.msra.mxu0 0.0
        %4516 = vmatprep.subr.mxu0 0.0
        %4517 = vmatpush1.msra.mxu0 0.0
        %4518 = vmatprep.mubr.f32.mxu0 0.0
        %4519 = vmatmul.mubr.f32.gmra.mrb[0].mxu0 %v1589
        %v4520 = vpop.f32.mrb[0].mxu0
        %v4521 = vadd.f32 0.0, %v4520
        %v4522 = vpop.f32.mrb[0].mxu0
        %v4523 = vadd.f32 0.0, %v4522
        %4524 = vmatprep.mubr.f32.mxu0 0.0
        %4525 = vmatmul.mubr.f32.gmra.mrb[0].mxu0 %v1592
        %v4526 = vpop.f32.mrb[0].mxu0
        %v4527 = vadd.f32 0.0, %v4526
        %v4528 = vpop.f32.mrb[0].mxu0
        %v4529 = vadd.f32 0.0, %v4528
        %4530 = vdwg.mxu0
        %4531 = vmatprep.subr.mxu0 %v4298
        %4532 = vmatpush1.msra.mxu0 %v4296
        %4533 = vmatprep.subr.mxu0 0.0
        %4534 = vmatpush1.msra.mxu0 0.0
        %4535 = vmatprep.subr.mxu0 0.0
        %4536 = vmatpush1.msra.mxu0 0.0
        %4537 = vmatprep.subr.mxu0 0.0
        %4538 = vmatpush1.msra.mxu0 0.0
        %4539 = vmatprep.subr.mxu0 0.0
        %4540 = vmatpush1.msra.mxu0 0.0
        %4541 = vmatprep.subr.mxu0 0.0
        %4542 = vmatpush1.msra.mxu0 0.0
        %4543 = vmatprep.subr.mxu0 0.0
        %4544 = vmatpush1.msra.mxu0 0.0
        %4545 = vmatprep.subr.mxu0 0.0
        %4546 = vmatpush1.msra.mxu0 0.0
        %4547 = vmatprep.subr.mxu0 0.0
        %4548 = vmatpush1.msra.mxu0 0.0
        %4549 = vmatprep.subr.mxu0 0.0
        %4550 = vmatpush1.msra.mxu0 0.0
        %4551 = vmatprep.subr.mxu0 0.0
        %4552 = vmatpush1.msra.mxu0 0.0
        %4553 = vmatprep.subr.mxu0 0.0
        %4554 = vmatpush1.msra.mxu0 0.0
        %4555 = vmatprep.subr.mxu0 0.0
        %4556 = vmatpush1.msra.mxu0 0.0
        %4557 = vmatprep.subr.mxu0 0.0
        %4558 = vmatpush1.msra.mxu0 0.0
        %4559 = vmatprep.subr.mxu0 0.0
        %4560 = vmatpush1.msra.mxu0 0.0
        %4561 = vmatprep.subr.mxu0 0.0
        %4562 = vmatpush1.msra.mxu0 0.0
        %4563 = vmatprep.subr.mxu0 0.0
        %4564 = vmatpush1.msra.mxu0 0.0
        %4565 = vmatprep.subr.mxu0 0.0
        %4566 = vmatpush1.msra.mxu0 0.0
        %4567 = vmatprep.subr.mxu0 0.0
        %4568 = vmatpush1.msra.mxu0 0.0
        %4569 = vmatprep.subr.mxu0 0.0
        %4570 = vmatpush1.msra.mxu0 0.0
        %4571 = vmatprep.subr.mxu0 0.0
        %4572 = vmatpush1.msra.mxu0 0.0
        %4573 = vmatprep.subr.mxu0 0.0
        %4574 = vmatpush1.msra.mxu0 0.0
        %4575 = vmatprep.subr.mxu0 0.0
        %4576 = vmatpush1.msra.mxu0 0.0
        %4577 = vmatprep.subr.mxu0 0.0
        %4578 = vmatpush1.msra.mxu0 0.0
        %4579 = vmatprep.subr.mxu0 0.0
        %4580 = vmatpush1.msra.mxu0 0.0
        %4581 = vmatprep.subr.mxu0 0.0
        %4582 = vmatpush1.msra.mxu0 0.0
        %4583 = vmatprep.subr.mxu0 0.0
        %4584 = vmatpush1.msra.mxu0 0.0
        %4585 = vmatprep.subr.mxu0 0.0
        %4586 = vmatpush1.msra.mxu0 0.0
        %4587 = vmatprep.subr.mxu0 0.0
        %4588 = vmatpush1.msra.mxu0 0.0
        %4589 = vmatprep.subr.mxu0 0.0
        %4590 = vmatpush1.msra.mxu0 0.0
        %4591 = vmatprep.subr.mxu0 0.0
        %4592 = vmatpush1.msra.mxu0 0.0
        %4593 = vmatprep.subr.mxu0 0.0
        %4594 = vmatpush1.msra.mxu0 0.0
        %4595 = vmatprep.mubr.f32.mxu0 0.0
        %4596 = vmatmul.mubr.f32.gmra.mrb[0].mxu0 %v1589
        %v4597 = vpop.f32.mrb[0].mxu0
        %v4598 = vadd.f32 0.0, %v4597
        %v4599 = vpop.f32.mrb[0].mxu0
        %v4600 = vadd.f32 0.0, %v4599
        %4601 = vmatprep.mubr.f32.mxu0 0.0
        %4602 = vmatmul.mubr.f32.gmra.mrb[0].mxu0 %v1592
        %v4603 = vpop.f32.mrb[0].mxu0
        %v4604 = vadd.f32 0.0, %v4603
        %v4605 = vpop.f32.mrb[0].mxu0
        %v4606 = vadd.f32 0.0, %v4605
        %4607 = vdwg.mxu0
        %v4608 = vmul.f32 %v4367, %v1059
        %v4609 = vmul.f32 %v4369, %v1061
        %v4610 = vmul.f32 %v4444, %v1136
        %v4611 = vmul.f32 %v4446, %v1138
        %v4612 = vmul.f32 %v4521, %v1213
        %v4613 = vmul.f32 %v4523, %v1215
        %v4614 = vmul.f32 %v4598, %v1290
        %v4615 = vmul.f32 %v4600, %v1292
        %v4616 = vmul.f32 %v4373, %v1065
        %v4617 = vmul.f32 %v4375, %v1067
        %v4618 = vmul.f32 %v4450, %v1142
        %v4619 = vmul.f32 %v4452, %v1144
        %v4620 = vmul.f32 %v4527, %v1219
        %v4621 = vmul.f32 %v4529, %v1221
        %v4622 = vmul.f32 %v4604, %v1296
        %v4623 = vmul.f32 %v4606, %v1298
        %4624 = vmatprep.subr.mxu0 %v4609
        %4625 = vmatpush1.msra.mxu0 %v4608
        %4626 = vmatprep.subr.mxu0 %v4617
        %4627 = vmatpush1.msra.mxu0 %v4616
        %4628 = vmatprep.subr.mxu0 0.0
        %4629 = vmatpush1.msra.mxu0 0.0
        %4630 = vmatprep.subr.mxu0 0.0
        %4631 = vmatpush1.msra.mxu0 0.0
        %4632 = vmatprep.subr.mxu0 0.0
        %4633 = vmatpush1.msra.mxu0 0.0
        %4634 = vmatprep.subr.mxu0 0.0
        %4635 = vmatpush1.msra.mxu0 0.0
        %4636 = vmatprep.subr.mxu0 0.0
        %4637 = vmatpush1.msra.mxu0 0.0
        %4638 = vmatprep.subr.mxu0 0.0
        %4639 = vmatpush1.msra.mxu0 0.0
        %4640 = vmatprep.subr.mxu0 0.0
        %4641 = vmatpush1.msra.mxu0 0.0
        %4642 = vmatprep.subr.mxu0 0.0
        %4643 = vmatpush1.msra.mxu0 0.0
        %4644 = vmatprep.subr.mxu0 0.0
        %4645 = vmatpush1.msra.mxu0 0.0
        %4646 = vmatprep.subr.mxu0 0.0
        %4647 = vmatpush1.msra.mxu0 0.0
        %4648 = vmatprep.subr.mxu0 0.0
        %4649 = vmatpush1.msra.mxu0 0.0
        %4650 = vmatprep.subr.mxu0 0.0
        %4651 = vmatpush1.msra.mxu0 0.0
        %4652 = vmatprep.subr.mxu0 0.0
        %4653 = vmatpush1.msra.mxu0 0.0
        %4654 = vmatprep.subr.mxu0 0.0
        %4655 = vmatpush1.msra.mxu0 0.0
        %4656 = vmatprep.subr.mxu0 0.0
        %4657 = vmatpush1.msra.mxu0 0.0
        %4658 = vmatprep.subr.mxu0 0.0
        %4659 = vmatpush1.msra.mxu0 0.0
        %4660 = vmatprep.subr.mxu0 0.0
        %4661 = vmatpush1.msra.mxu0 0.0
        %4662 = vmatprep.subr.mxu0 0.0
        %4663 = vmatpush1.msra.mxu0 0.0
        %4664 = vmatprep.subr.mxu0 0.0
        %4665 = vmatpush1.msra.mxu0 0.0
        %4666 = vmatprep.subr.mxu0 0.0
        %4667 = vmatpush1.msra.mxu0 0.0
        %4668 = vmatprep.subr.mxu0 0.0
        %4669 = vmatpush1.msra.mxu0 0.0
        %4670 = vmatprep.subr.mxu0 0.0
        %4671 = vmatpush1.msra.mxu0 0.0
        %4672 = vmatprep.subr.mxu0 0.0
        %4673 = vmatpush1.msra.mxu0 0.0
        %4674 = vmatprep.subr.mxu0 0.0
        %4675 = vmatpush1.msra.mxu0 0.0
        %4676 = vmatprep.subr.mxu0 0.0
        %4677 = vmatpush1.msra.mxu0 0.0
        %4678 = vmatprep.subr.mxu0 0.0
        %4679 = vmatpush1.msra.mxu0 0.0
        %4680 = vmatprep.subr.mxu0 0.0
        %4681 = vmatpush1.msra.mxu0 0.0
        %4682 = vmatprep.subr.mxu0 0.0
        %4683 = vmatpush1.msra.mxu0 0.0
        %4684 = vmatprep.subr.mxu0 0.0
        %4685 = vmatpush1.msra.mxu0 0.0
        %4686 = vmatprep.subr.mxu0 0.0
        %4687 = vmatpush1.msra.mxu0 0.0
        %4688 = vmatprep.mubr.f32.mxu0 0.0
        %4689 = vmatmul.mubr.f32.gmra.mrb[0].mxu0 %v1919
        %v4690 = vpop.f32.mrb[0].mxu0
        %v4691 = vadd.f32 0.0, %v4690
        %v4692 = vpop.f32.mrb[0].mxu0
        %v4693 = vadd.f32 0.0, %v4692
        %4694 = vdwg.mxu0
        %4695 = vmatprep.subr.mxu0 %v4611
        %4696 = vmatpush1.msra.mxu0 %v4610
        %4697 = vmatprep.subr.mxu0 %v4619
        %4698 = vmatpush1.msra.mxu0 %v4618
        %4699 = vmatprep.subr.mxu0 0.0
        %4700 = vmatpush1.msra.mxu0 0.0
        %4701 = vmatprep.subr.mxu0 0.0
        %4702 = vmatpush1.msra.mxu0 0.0
        %4703 = vmatprep.subr.mxu0 0.0
        %4704 = vmatpush1.msra.mxu0 0.0
        %4705 = vmatprep.subr.mxu0 0.0
        %4706 = vmatpush1.msra.mxu0 0.0
        %4707 = vmatprep.subr.mxu0 0.0
        %4708 = vmatpush1.msra.mxu0 0.0
        %4709 = vmatprep.subr.mxu0 0.0
        %4710 = vmatpush1.msra.mxu0 0.0
        %4711 = vmatprep.subr.mxu0 0.0
        %4712 = vmatpush1.msra.mxu0 0.0
        %4713 = vmatprep.subr.mxu0 0.0
        %4714 = vmatpush1.msra.mxu0 0.0
        %4715 = vmatprep.subr.mxu0 0.0
        %4716 = vmatpush1.msra.mxu0 0.0
        %4717 = vmatprep.subr.mxu0 0.0
        %4718 = vmatpush1.msra.mxu0 0.0
        %4719 = vmatprep.subr.mxu0 0.0
        %4720 = vmatpush1.msra.mxu0 0.0
        %4721 = vmatprep.subr.mxu0 0.0
        %4722 = vmatpush1.msra.mxu0 0.0
        %4723 = vmatprep.subr.mxu0 0.0
        %4724 = vmatpush1.msra.mxu0 0.0
        %4725 = vmatprep.subr.mxu0 0.0
        %4726 = vmatpush1.msra.mxu0 0.0
        %4727 = vmatprep.subr.mxu0 0.0
        %4728 = vmatpush1.msra.mxu0 0.0
        %4729 = vmatprep.subr.mxu0 0.0
        %4730 = vmatpush1.msra.mxu0 0.0
        %4731 = vmatprep.subr.mxu0 0.0
        %4732 = vmatpush1.msra.mxu0 0.0
        %4733 = vmatprep.subr.mxu0 0.0
        %4734 = vmatpush1.msra.mxu0 0.0
        %4735 = vmatprep.subr.mxu0 0.0
        %4736 = vmatpush1.msra.mxu0 0.0
        %4737 = vmatprep.subr.mxu0 0.0
        %4738 = vmatpush1.msra.mxu0 0.0
        %4739 = vmatprep.subr.mxu0 0.0
        %4740 = vmatpush1.msra.mxu0 0.0
        %4741 = vmatprep.subr.mxu0 0.0
        %4742 = vmatpush1.msra.mxu0 0.0
        %4743 = vmatprep.subr.mxu0 0.0
        %4744 = vmatpush1.msra.mxu0 0.0
        %4745 = vmatprep.subr.mxu0 0.0
        %4746 = vmatpush1.msra.mxu0 0.0
        %4747 = vmatprep.subr.mxu0 0.0
        %4748 = vmatpush1.msra.mxu0 0.0
        %4749 = vmatprep.subr.mxu0 0.0
        %4750 = vmatpush1.msra.mxu0 0.0
        %4751 = vmatprep.subr.mxu0 0.0
        %4752 = vmatpush1.msra.mxu0 0.0
        %4753 = vmatprep.subr.mxu0 0.0
        %4754 = vmatpush1.msra.mxu0 0.0
        %4755 = vmatprep.subr.mxu0 0.0
        %4756 = vmatpush1.msra.mxu0 0.0
        %4757 = vmatprep.subr.mxu0 0.0
        %4758 = vmatpush1.msra.mxu0 0.0
        %4759 = vmatprep.mubr.f32.mxu0 0.0
        %4760 = vmatmul.mubr.f32.gmra.mrb[0].mxu0 %v1919
        %v4761 = vpop.f32.mrb[0].mxu0
        %v4762 = vadd.f32 0.0, %v4761
        %v4763 = vpop.f32.mrb[0].mxu0
        %v4764 = vadd.f32 0.0, %v4763
        %4765 = vdwg.mxu0
        %4766 = vmatprep.subr.mxu0 %v4613
        %4767 = vmatpush1.msra.mxu0 %v4612
        %4768 = vmatprep.subr.mxu0 %v4621
        %4769 = vmatpush1.msra.mxu0 %v4620
        %4770 = vmatprep.subr.mxu0 0.0
        %4771 = vmatpush1.msra.mxu0 0.0
        %4772 = vmatprep.subr.mxu0 0.0
        %4773 = vmatpush1.msra.mxu0 0.0
        %4774 = vmatprep.subr.mxu0 0.0
        %4775 = vmatpush1.msra.mxu0 0.0
        %4776 = vmatprep.subr.mxu0 0.0
        %4777 = vmatpush1.msra.mxu0 0.0
        %4778 = vmatprep.subr.mxu0 0.0
        %4779 = vmatpush1.msra.mxu0 0.0
        %4780 = vmatprep.subr.mxu0 0.0
        %4781 = vmatpush1.msra.mxu0 0.0
        %4782 = vmatprep.subr.mxu0 0.0
        %4783 = vmatpush1.msra.mxu0 0.0
        %4784 = vmatprep.subr.mxu0 0.0
        %4785 = vmatpush1.msra.mxu0 0.0
        %4786 = vmatprep.subr.mxu0 0.0
        %4787 = vmatpush1.msra.mxu0 0.0
        %4788 = vmatprep.subr.mxu0 0.0
        %4789 = vmatpush1.msra.mxu0 0.0
        %4790 = vmatprep.subr.mxu0 0.0
        %4791 = vmatpush1.msra.mxu0 0.0
        %4792 = vmatprep.subr.mxu0 0.0
        %4793 = vmatpush1.msra.mxu0 0.0
        %4794 = vmatprep.subr.mxu0 0.0
        %4795 = vmatpush1.msra.mxu0 0.0
        %4796 = vmatprep.subr.mxu0 0.0
        %4797 = vmatpush1.msra.mxu0 0.0
        %4798 = vmatprep.subr.mxu0 0.0
        %4799 = vmatpush1.msra.mxu0 0.0
        %4800 = vmatprep.subr.mxu0 0.0
        %4801 = vmatpush1.msra.mxu0 0.0
        %4802 = vmatprep.subr.mxu0 0.0
        %4803 = vmatpush1.msra.mxu0 0.0
        %4804 = vmatprep.subr.mxu0 0.0
        %4805 = vmatpush1.msra.mxu0 0.0
        %4806 = vmatprep.subr.mxu0 0.0
        %4807 = vmatpush1.msra.mxu0 0.0
        %4808 = vmatprep.subr.mxu0 0.0
        %4809 = vmatpush1.msra.mxu0 0.0
        %4810 = vmatprep.subr.mxu0 0.0
        %4811 = vmatpush1.msra.mxu0 0.0
        %4812 = vmatprep.subr.mxu0 0.0
        %4813 = vmatpush1.msra.mxu0 0.0
        %4814 = vmatprep.subr.mxu0 0.0
        %4815 = vmatpush1.msra.mxu0 0.0
        %4816 = vmatprep.subr.mxu0 0.0
        %4817 = vmatpush1.msra.mxu0 0.0
        %4818 = vmatprep.subr.mxu0 0.0
        %4819 = vmatpush1.msra.mxu0 0.0
        %4820 = vmatprep.subr.mxu0 0.0
        %4821 = vmatpush1.msra.mxu0 0.0
        %4822 = vmatprep.subr.mxu0 0.0
        %4823 = vmatpush1.msra.mxu0 0.0
        %4824 = vmatprep.subr.mxu0 0.0
        %4825 = vmatpush1.msra.mxu0 0.0
        %4826 = vmatprep.subr.mxu0 0.0
        %4827 = vmatpush1.msra.mxu0 0.0
        %4828 = vmatprep.subr.mxu0 0.0
        %4829 = vmatpush1.msra.mxu0 0.0
        %4830 = vmatprep.mubr.f32.mxu0 0.0
        %4831 = vmatmul.mubr.f32.gmra.mrb[0].mxu0 %v1919
        %v4832 = vpop.f32.mrb[0].mxu0
        %v4833 = vadd.f32 0.0, %v4832
        %v4834 = vpop.f32.mrb[0].mxu0
        %v4835 = vadd.f32 0.0, %v4834
        %4836 = vdwg.mxu0
        %4837 = vmatprep.subr.mxu0 %v4615
        %4838 = vmatpush1.msra.mxu0 %v4614
        %4839 = vmatprep.subr.mxu0 %v4623
        %4840 = vmatpush1.msra.mxu0 %v4622
        %4841 = vmatprep.subr.mxu0 0.0
        %4842 = vmatpush1.msra.mxu0 0.0
        %4843 = vmatprep.subr.mxu0 0.0
        %4844 = vmatpush1.msra.mxu0 0.0
        %4845 = vmatprep.subr.mxu0 0.0
        %4846 = vmatpush1.msra.mxu0 0.0
        %4847 = vmatprep.subr.mxu0 0.0
        %4848 = vmatpush1.msra.mxu0 0.0
        %4849 = vmatprep.subr.mxu0 0.0
        %4850 = vmatpush1.msra.mxu0 0.0
        %4851 = vmatprep.subr.mxu0 0.0
        %4852 = vmatpush1.msra.mxu0 0.0
        %4853 = vmatprep.subr.mxu0 0.0
        %4854 = vmatpush1.msra.mxu0 0.0
        %4855 = vmatprep.subr.mxu0 0.0
        %4856 = vmatpush1.msra.mxu0 0.0
        %4857 = vmatprep.subr.mxu0 0.0
        %4858 = vmatpush1.msra.mxu0 0.0
        %4859 = vmatprep.subr.mxu0 0.0
        %4860 = vmatpush1.msra.mxu0 0.0
        %4861 = vmatprep.subr.mxu0 0.0
        %4862 = vmatpush1.msra.mxu0 0.0
        %4863 = vmatprep.subr.mxu0 0.0
        %4864 = vmatpush1.msra.mxu0 0.0
        %4865 = vmatprep.subr.mxu0 0.0
        %4866 = vmatpush1.msra.mxu0 0.0
        %4867 = vmatprep.subr.mxu0 0.0
        %4868 = vmatpush1.msra.mxu0 0.0
        %4869 = vmatprep.subr.mxu0 0.0
        %4870 = vmatpush1.msra.mxu0 0.0
        %4871 = vmatprep.subr.mxu0 0.0
        %4872 = vmatpush1.msra.mxu0 0.0
        %4873 = vmatprep.subr.mxu0 0.0
        %4874 = vmatpush1.msra.mxu0 0.0
        %4875 = vmatprep.subr.mxu0 0.0
        %4876 = vmatpush1.msra.mxu0 0.0
        %4877 = vmatprep.subr.mxu0 0.0
        %4878 = vmatpush1.msra.mxu0 0.0
        %4879 = vmatprep.subr.mxu0 0.0
        %4880 = vmatpush1.msra.mxu0 0.0
        %4881 = vmatprep.subr.mxu0 0.0
        %4882 = vmatpush1.msra.mxu0 0.0
        %4883 = vmatprep.subr.mxu0 0.0
        %4884 = vmatpush1.msra.mxu0 0.0
        %4885 = vmatprep.subr.mxu0 0.0
        %4886 = vmatpush1.msra.mxu0 0.0
        %4887 = vmatprep.subr.mxu0 0.0
        %4888 = vmatpush1.msra.mxu0 0.0
        %4889 = vmatprep.subr.mxu0 0.0
        %4890 = vmatpush1.msra.mxu0 0.0
        %4891 = vmatprep.subr.mxu0 0.0
        %4892 = vmatpush1.msra.mxu0 0.0
        %4893 = vmatprep.subr.mxu0 0.0
        %4894 = vmatpush1.msra.mxu0 0.0
        %4895 = vmatprep.subr.mxu0 0.0
        %4896 = vmatpush1.msra.mxu0 0.0
        %4897 = vmatprep.subr.mxu0 0.0
        %4898 = vmatpush1.msra.mxu0 0.0
        %4899 = vmatprep.subr.mxu0 0.0
        %4900 = vmatpush1.msra.mxu0 0.0
        %4901 = vmatprep.mubr.f32.mxu0 0.0
        %4902 = vmatmul.mubr.f32.gmra.mrb[0].mxu0 %v1919
        %v4903 = vpop.f32.mrb[0].mxu0
        %v4904 = vadd.f32 0.0, %v4903
        %v4905 = vpop.f32.mrb[0].mxu0
        %v4906 = vadd.f32 0.0, %v4905
        %4907 = vdwg.mxu0
        %4908 = vmatprep.subr.mxu0 0.0
        %4909 = vmatpush1.msra.mxu0 %v506
        %4910 = vmatprep.subr.mxu0 0.0
        %4911 = vmatpush1.msra.mxu0 %v507
        %4912 = vmatprep.subr.mxu0 0.0
        %4913 = vmatpush1.msra.mxu0 %v508
        %4914 = vmatprep.subr.mxu0 0.0
        %4915 = vmatpush1.msra.mxu0 %v509
        %4916 = vmatprep.subr.mxu0 0.0
        %4917 = vmatpush1.msra.mxu0 %v510
        %4918 = vmatprep.subr.mxu0 0.0
        %4919 = vmatpush1.msra.mxu0 %v511
        %4920 = vmatprep.subr.mxu0 0.0
        %4921 = vmatpush1.msra.mxu0 %v512
        %4922 = vmatprep.subr.mxu0 0.0
        %4923 = vmatpush1.msra.mxu0 %v513
        %4924 = vmatprep.subr.mxu0 0.0
        %4925 = vmatpush1.msra.mxu0 %v514
        %4926 = vmatprep.subr.mxu0 0.0
        %4927 = vmatpush1.msra.mxu0 %v515
        %4928 = vmatprep.subr.mxu0 0.0
        %4929 = vmatpush1.msra.mxu0 %v516
        %4930 = vmatprep.subr.mxu0 0.0
        %4931 = vmatpush1.msra.mxu0 %v517
        %4932 = vmatprep.subr.mxu0 0.0
        %4933 = vmatpush1.msra.mxu0 %v518
        %4934 = vmatprep.subr.mxu0 0.0
        %4935 = vmatpush1.msra.mxu0 %v519
        %4936 = vmatprep.subr.mxu0 0.0
        %4937 = vmatpush1.msra.mxu0 %v520
        %4938 = vmatprep.subr.mxu0 0.0
        %4939 = vmatpush1.msra.mxu0 %v521
        %4940 = vmatprep.subr.mxu0 0.0
        %4941 = vmatpush1.msra.mxu0 %v522
        %4942 = vmatprep.subr.mxu0 0.0
        %4943 = vmatpush1.msra.mxu0 %v523
        %4944 = vmatprep.subr.mxu0 0.0
        %4945 = vmatpush1.msra.mxu0 %v524
        %4946 = vmatprep.subr.mxu0 0.0
        %4947 = vmatpush1.msra.mxu0 %v525
        %4948 = vmatprep.subr.mxu0 0.0
        %4949 = vmatpush1.msra.mxu0 %v526
        %4950 = vmatprep.subr.mxu0 0.0
        %4951 = vmatpush1.msra.mxu0 %v527
        %4952 = vmatprep.subr.mxu0 0.0
        %4953 = vmatpush1.msra.mxu0 %v528
        %4954 = vmatprep.subr.mxu0 0.0
        %4955 = vmatpush1.msra.mxu0 %v529
        %4956 = vmatprep.subr.mxu0 0.0
        %4957 = vmatpush1.msra.mxu0 %v530
        %4958 = vmatprep.subr.mxu0 0.0
        %4959 = vmatpush1.msra.mxu0 %v531
        %4960 = vmatprep.subr.mxu0 0.0
        %4961 = vmatpush1.msra.mxu0 %v532
        %4962 = vmatprep.subr.mxu0 0.0
        %4963 = vmatpush1.msra.mxu0 %v533
        %4964 = vmatprep.subr.mxu0 0.0
        %4965 = vmatpush1.msra.mxu0 %v534
        %4966 = vmatprep.subr.mxu0 0.0
        %4967 = vmatpush1.msra.mxu0 %v535
        %4968 = vmatprep.subr.mxu0 0.0
        %4969 = vmatpush1.msra.mxu0 %v536
        %4970 = vmatprep.subr.mxu0 0.0
        %4971 = vmatpush1.msra.mxu0 %v537
        %4972 = vmatprep.mubr.f32.mxu0 %v4693
        %4973 = vmatmul.mubr.f32.gmra.mrb[0].mxu0 %v4691
        %v4974 = vpop.f32.mrb[0].mxu0
        %v4975 = vadd.f32 0.0, %v4974
        %v4976 = vpop.f32.mrb[0].mxu0
        %4977 = vdwg.mxu0
        %4978 = vmatprep.subr.mxu0 0.0
        %4979 = vmatpush1.msra.mxu0 %v538
        %4980 = vmatprep.subr.mxu0 0.0
        %4981 = vmatpush1.msra.mxu0 %v539
        %4982 = vmatprep.subr.mxu0 0.0
        %4983 = vmatpush1.msra.mxu0 %v540
        %4984 = vmatprep.subr.mxu0 0.0
        %4985 = vmatpush1.msra.mxu0 %v541
        %4986 = vmatprep.subr.mxu0 0.0
        %4987 = vmatpush1.msra.mxu0 %v542
        %4988 = vmatprep.subr.mxu0 0.0
        %4989 = vmatpush1.msra.mxu0 %v543
        %4990 = vmatprep.subr.mxu0 0.0
        %4991 = vmatpush1.msra.mxu0 %v544
        %4992 = vmatprep.subr.mxu0 0.0
        %4993 = vmatpush1.msra.mxu0 %v545
        %4994 = vmatprep.subr.mxu0 0.0
        %4995 = vmatpush1.msra.mxu0 %v546
        %4996 = vmatprep.subr.mxu0 0.0
        %4997 = vmatpush1.msra.mxu0 %v547
        %4998 = vmatprep.subr.mxu0 0.0
        %4999 = vmatpush1.msra.mxu0 %v548
        %5000 = vmatprep.subr.mxu0 0.0
        %5001 = vmatpush1.msra.mxu0 %v549
        %5002 = vmatprep.subr.mxu0 0.0
        %5003 = vmatpush1.msra.mxu0 %v550
        %5004 = vmatprep.subr.mxu0 0.0
        %5005 = vmatpush1.msra.mxu0 %v551
        %5006 = vmatprep.subr.mxu0 0.0
        %5007 = vmatpush1.msra.mxu0 %v552
        %5008 = vmatprep.subr.mxu0 0.0
        %5009 = vmatpush1.msra.mxu0 %v553
        %5010 = vmatprep.subr.mxu0 0.0
        %5011 = vmatpush1.msra.mxu0 %v554
        %5012 = vmatprep.subr.mxu0 0.0
        %5013 = vmatpush1.msra.mxu0 %v555
        %5014 = vmatprep.subr.mxu0 0.0
        %5015 = vmatpush1.msra.mxu0 %v556
        %5016 = vmatprep.subr.mxu0 0.0
        %5017 = vmatpush1.msra.mxu0 %v557
        %5018 = vmatprep.subr.mxu0 0.0
        %5019 = vmatpush1.msra.mxu0 %v558
        %5020 = vmatprep.subr.mxu0 0.0
        %5021 = vmatpush1.msra.mxu0 %v559
        %5022 = vmatprep.subr.mxu0 0.0
        %5023 = vmatpush1.msra.mxu0 %v560
        %5024 = vmatprep.subr.mxu0 0.0
        %5025 = vmatpush1.msra.mxu0 %v561
        %5026 = vmatprep.subr.mxu0 0.0
        %5027 = vmatpush1.msra.mxu0 %v562
        %5028 = vmatprep.subr.mxu0 0.0
        %5029 = vmatpush1.msra.mxu0 %v563
        %5030 = vmatprep.subr.mxu0 0.0
        %5031 = vmatpush1.msra.mxu0 %v564
        %5032 = vmatprep.subr.mxu0 0.0
        %5033 = vmatpush1.msra.mxu0 %v565
        %5034 = vmatprep.subr.mxu0 0.0
        %5035 = vmatpush1.msra.mxu0 %v566
        %5036 = vmatprep.subr.mxu0 0.0
        %5037 = vmatpush1.msra.mxu0 %v567
        %5038 = vmatprep.subr.mxu0 0.0
        %5039 = vmatpush1.msra.mxu0 %v568
        %5040 = vmatprep.subr.mxu0 0.0
        %5041 = vmatpush1.msra.mxu0 %v569
        %5042 = vmatprep.mubr.f32.mxu0 %v4764
        %5043 = vmatmul.mubr.f32.gmra.mrb[0].mxu0 %v4762
        %v5044 = vpop.f32.mrb[0].mxu0
        %v5045 = vadd.f32 %v4975, %v5044
        %v5046 = vpop.f32.mrb[0].mxu0
        %5047 = vdwg.mxu0
        %5048 = vmatprep.subr.mxu0 0.0
        %5049 = vmatpush1.msra.mxu0 %v570
        %5050 = vmatprep.subr.mxu0 0.0
        %5051 = vmatpush1.msra.mxu0 %v571
        %5052 = vmatprep.subr.mxu0 0.0
        %5053 = vmatpush1.msra.mxu0 %v572
        %5054 = vmatprep.subr.mxu0 0.0
        %5055 = vmatpush1.msra.mxu0 %v573
        %5056 = vmatprep.subr.mxu0 0.0
        %5057 = vmatpush1.msra.mxu0 %v574
        %5058 = vmatprep.subr.mxu0 0.0
        %5059 = vmatpush1.msra.mxu0 %v575
        %5060 = vmatprep.subr.mxu0 0.0
        %5061 = vmatpush1.msra.mxu0 %v576
        %5062 = vmatprep.subr.mxu0 0.0
        %5063 = vmatpush1.msra.mxu0 %v577
        %5064 = vmatprep.subr.mxu0 0.0
        %5065 = vmatpush1.msra.mxu0 %v578
        %5066 = vmatprep.subr.mxu0 0.0
        %5067 = vmatpush1.msra.mxu0 %v579
        %5068 = vmatprep.subr.mxu0 0.0
        %5069 = vmatpush1.msra.mxu0 %v580
        %5070 = vmatprep.subr.mxu0 0.0
        %5071 = vmatpush1.msra.mxu0 %v581
        %5072 = vmatprep.subr.mxu0 0.0
        %5073 = vmatpush1.msra.mxu0 %v582
        %5074 = vmatprep.subr.mxu0 0.0
        %5075 = vmatpush1.msra.mxu0 %v583
        %5076 = vmatprep.subr.mxu0 0.0
        %5077 = vmatpush1.msra.mxu0 %v584
        %5078 = vmatprep.subr.mxu0 0.0
        %5079 = vmatpush1.msra.mxu0 %v585
        %5080 = vmatprep.subr.mxu0 0.0
        %5081 = vmatpush1.msra.mxu0 %v586
        %5082 = vmatprep.subr.mxu0 0.0
        %5083 = vmatpush1.msra.mxu0 %v587
        %5084 = vmatprep.subr.mxu0 0.0
        %5085 = vmatpush1.msra.mxu0 %v588
        %5086 = vmatprep.subr.mxu0 0.0
        %5087 = vmatpush1.msra.mxu0 %v589
        %5088 = vmatprep.subr.mxu0 0.0
        %5089 = vmatpush1.msra.mxu0 %v590
        %5090 = vmatprep.subr.mxu0 0.0
        %5091 = vmatpush1.msra.mxu0 %v591
        %5092 = vmatprep.subr.mxu0 0.0
        %5093 = vmatpush1.msra.mxu0 %v592
        %5094 = vmatprep.subr.mxu0 0.0
        %5095 = vmatpush1.msra.mxu0 %v593
        %5096 = vmatprep.subr.mxu0 0.0
        %5097 = vmatpush1.msra.mxu0 %v594
        %5098 = vmatprep.subr.mxu0 0.0
        %5099 = vmatpush1.msra.mxu0 %v595
        %5100 = vmatprep.subr.mxu0 0.0
        %5101 = vmatpush1.msra.mxu0 %v596
        %5102 = vmatprep.subr.mxu0 0.0
        %5103 = vmatpush1.msra.mxu0 %v597
        %5104 = vmatprep.subr.mxu0 0.0
        %5105 = vmatpush1.msra.mxu0 %v598
        %5106 = vmatprep.subr.mxu0 0.0
        %5107 = vmatpush1.msra.mxu0 %v599
        %5108 = vmatprep.subr.mxu0 0.0
        %5109 = vmatpush1.msra.mxu0 %v600
        %5110 = vmatprep.subr.mxu0 0.0
        %5111 = vmatpush1.msra.mxu0 %v601
        %5112 = vmatprep.mubr.f32.mxu0 %v4835
        %5113 = vmatmul.mubr.f32.gmra.mrb[0].mxu0 %v4833
        %v5114 = vpop.f32.mrb[0].mxu0
        %v5115 = vadd.f32 %v5045, %v5114
        %v5116 = vpop.f32.mrb[0].mxu0
        %5117 = vdwg.mxu0
        %5118 = vmatprep.subr.mxu0 0.0
        %5119 = vmatpush1.msra.mxu0 %v602
        %5120 = vmatprep.subr.mxu0 0.0
        %5121 = vmatpush1.msra.mxu0 %v603
        %5122 = vmatprep.subr.mxu0 0.0
        %5123 = vmatpush1.msra.mxu0 %v604
        %5124 = vmatprep.subr.mxu0 0.0
        %5125 = vmatpush1.msra.mxu0 %v605
        %5126 = vmatprep.subr.mxu0 0.0
        %5127 = vmatpush1.msra.mxu0 %v606
        %5128 = vmatprep.subr.mxu0 0.0
        %5129 = vmatpush1.msra.mxu0 %v607
        %5130 = vmatprep.subr.mxu0 0.0
        %5131 = vmatpush1.msra.mxu0 %v608
        %5132 = vmatprep.subr.mxu0 0.0
        %5133 = vmatpush1.msra.mxu0 %v609
        %5134 = vmatprep.subr.mxu0 0.0
        %5135 = vmatpush1.msra.mxu0 %v610
        %5136 = vmatprep.subr.mxu0 0.0
        %5137 = vmatpush1.msra.mxu0 %v611
        %5138 = vmatprep.subr.mxu0 0.0
        %5139 = vmatpush1.msra.mxu0 %v612
        %5140 = vmatprep.subr.mxu0 0.0
        %5141 = vmatpush1.msra.mxu0 %v613
        %5142 = vmatprep.subr.mxu0 0.0
        %5143 = vmatpush1.msra.mxu0 %v614
        %5144 = vmatprep.subr.mxu0 0.0
        %5145 = vmatpush1.msra.mxu0 %v615
        %5146 = vmatprep.subr.mxu0 0.0
        %5147 = vmatpush1.msra.mxu0 %v616
        %5148 = vmatprep.subr.mxu0 0.0
        %5149 = vmatpush1.msra.mxu0 %v617
        %5150 = vmatprep.subr.mxu0 0.0
        %5151 = vmatpush1.msra.mxu0 %v618
        %5152 = vmatprep.subr.mxu0 0.0
        %5153 = vmatpush1.msra.mxu0 %v619
        %5154 = vmatprep.subr.mxu0 0.0
        %5155 = vmatpush1.msra.mxu0 %v620
        %5156 = vmatprep.subr.mxu0 0.0
        %5157 = vmatpush1.msra.mxu0 %v621
        %5158 = vmatprep.subr.mxu0 0.0
        %5159 = vmatpush1.msra.mxu0 %v622
        %5160 = vmatprep.subr.mxu0 0.0
        %5161 = vmatpush1.msra.mxu0 %v623
        %5162 = vmatprep.subr.mxu0 0.0
        %5163 = vmatpush1.msra.mxu0 %v624
        %5164 = vmatprep.subr.mxu0 0.0
        %5165 = vmatpush1.msra.mxu0 %v625
        %5166 = vmatprep.subr.mxu0 0.0
        %5167 = vmatpush1.msra.mxu0 %v626
        %5168 = vmatprep.subr.mxu0 0.0
        %5169 = vmatpush1.msra.mxu0 %v627
        %5170 = vmatprep.subr.mxu0 0.0
        %5171 = vmatpush1.msra.mxu0 %v628
        %5172 = vmatprep.subr.mxu0 0.0
        %5173 = vmatpush1.msra.mxu0 %v629
        %5174 = vmatprep.subr.mxu0 0.0
        %5175 = vmatpush1.msra.mxu0 %v630
        %5176 = vmatprep.subr.mxu0 0.0
        %5177 = vmatpush1.msra.mxu0 %v631
        %5178 = vmatprep.subr.mxu0 0.0
        %5179 = vmatpush1.msra.mxu0 %v632
        %5180 = vmatprep.subr.mxu0 0.0
        %5181 = vmatpush1.msra.mxu0 %v633
        %5182 = vmatprep.mubr.f32.mxu0 %v4906
        %5183 = vmatmul.mubr.f32.gmra.mrb[0].mxu0 %v4904
        %v5184 = vpop.f32.mrb[0].mxu0
        %v5185 = vadd.f32 %v5115, %v5184
        %v5186 = vpop.f32.mrb[0].mxu0
        %5187 = vdwg.mxu0
        %5188 = vmatprep.subr.mxu0 0.0
        %5189 = vmatpush1.msra.mxu0 %v638
        %5190 = vmatprep.subr.mxu0 0.0
        %5191 = vmatpush1.msra.mxu0 %v639
        %5192 = vmatprep.subr.mxu0 0.0
        %5193 = vmatpush1.msra.mxu0 %v640
        %5194 = vmatprep.subr.mxu0 0.0
        %5195 = vmatpush1.msra.mxu0 %v641
        %5196 = vmatprep.subr.mxu0 0.0
        %5197 = vmatpush1.msra.mxu0 0.0
        %5198 = vmatprep.subr.mxu0 0.0
        %5199 = vmatpush1.msra.mxu0 0.0
        %5200 = vmatprep.subr.mxu0 0.0
        %5201 = vmatpush1.msra.mxu0 0.0
        %5202 = vmatprep.subr.mxu0 0.0
        %5203 = vmatpush1.msra.mxu0 0.0
        %5204 = vmatprep.subr.mxu0 0.0
        %5205 = vmatpush1.msra.mxu0 0.0
        %5206 = vmatprep.subr.mxu0 0.0
        %5207 = vmatpush1.msra.mxu0 0.0
        %5208 = vmatprep.subr.mxu0 0.0
        %5209 = vmatpush1.msra.mxu0 0.0
        %5210 = vmatprep.subr.mxu0 0.0
        %5211 = vmatpush1.msra.mxu0 0.0
        %5212 = vmatprep.subr.mxu0 0.0
        %5213 = vmatpush1.msra.mxu0 0.0
        %5214 = vmatprep.subr.mxu0 0.0
        %5215 = vmatpush1.msra.mxu0 0.0
        %5216 = vmatprep.subr.mxu0 0.0
        %5217 = vmatpush1.msra.mxu0 0.0
        %5218 = vmatprep.subr.mxu0 0.0
        %5219 = vmatpush1.msra.mxu0 0.0
        %5220 = vmatprep.subr.mxu0 0.0
        %5221 = vmatpush1.msra.mxu0 0.0
        %5222 = vmatprep.subr.mxu0 0.0
        %5223 = vmatpush1.msra.mxu0 0.0
        %5224 = vmatprep.subr.mxu0 0.0
        %5225 = vmatpush1.msra.mxu0 0.0
        %5226 = vmatprep.subr.mxu0 0.0
        %5227 = vmatpush1.msra.mxu0 0.0
        %5228 = vmatprep.subr.mxu0 0.0
        %5229 = vmatpush1.msra.mxu0 0.0
        %5230 = vmatprep.subr.mxu0 0.0
        %5231 = vmatpush1.msra.mxu0 0.0
        %5232 = vmatprep.subr.mxu0 0.0
        %5233 = vmatpush1.msra.mxu0 0.0
        %5234 = vmatprep.subr.mxu0 0.0
        %5235 = vmatpush1.msra.mxu0 0.0
        %5236 = vmatprep.subr.mxu0 0.0
        %5237 = vmatpush1.msra.mxu0 0.0
        %5238 = vmatprep.subr.mxu0 0.0
        %5239 = vmatpush1.msra.mxu0 0.0
        %5240 = vmatprep.subr.mxu0 0.0
        %5241 = vmatpush1.msra.mxu0 0.0
        %5242 = vmatprep.subr.mxu0 0.0
        %5243 = vmatpush1.msra.mxu0 0.0
        %5244 = vmatprep.subr.mxu0 0.0
        %5245 = vmatpush1.msra.mxu0 0.0
        %5246 = vmatprep.subr.mxu0 0.0
        %5247 = vmatpush1.msra.mxu0 0.0
        %5248 = vmatprep.subr.mxu0 0.0
        %5249 = vmatpush1.msra.mxu0 0.0
        %5250 = vmatprep.subr.mxu0 0.0
        %5251 = vmatpush1.msra.mxu0 0.0
        %5252 = vmatprep.mubr.f32.mxu0 0.0
        %5253 = vmatmul.mubr.f32.gmra.mrb[0].mxu0 %v4014
        %v5254 = vpop.f32.mrb[0].mxu0
        %v5255 = vadd.f32 0.0, %v5254
        %v5256 = vpop.f32.mrb[0].mxu0
        %5257 = vdwg.mxu0
        %v5259 = vsel %vm1300, %v5185, 0
        %5261 = vmatprep.subr.mxu0 0.0
        %5262 = vmatpush1.msra.mxu0 %v634
        %5263 = vmatprep.subr.mxu0 0.0
        %5264 = vmatpush1.msra.mxu0 %v635
        %5265 = vmatprep.subr.mxu0 0.0
        %5266 = vmatpush1.msra.mxu0 %v636
        %5267 = vmatprep.subr.mxu0 0.0
        %5268 = vmatpush1.msra.mxu0 %v637
        %5269 = vmatprep.subr.mxu0 0.0
        %5270 = vmatpush1.msra.mxu0 0.0
        %5271 = vmatprep.subr.mxu0 0.0
        %5272 = vmatpush1.msra.mxu0 0.0
        %5273 = vmatprep.subr.mxu0 0.0
        %5274 = vmatpush1.msra.mxu0 0.0
        %5275 = vmatprep.subr.mxu0 0.0
        %5276 = vmatpush1.msra.mxu0 0.0
        %5277 = vmatprep.subr.mxu0 0.0
        %5278 = vmatpush1.msra.mxu0 0.0
        %5279 = vmatprep.subr.mxu0 0.0
        %5280 = vmatpush1.msra.mxu0 0.0
        %5281 = vmatprep.subr.mxu0 0.0
        %5282 = vmatpush1.msra.mxu0 0.0
        %5283 = vmatprep.subr.mxu0 0.0
        %5284 = vmatpush1.msra.mxu0 0.0
        %5285 = vmatprep.subr.mxu0 0.0
        %5286 = vmatpush1.msra.mxu0 0.0
        %5287 = vmatprep.subr.mxu0 0.0
        %5288 = vmatpush1.msra.mxu0 0.0
        %5289 = vmatprep.subr.mxu0 0.0
        %5290 = vmatpush1.msra.mxu0 0.0
        %5291 = vmatprep.subr.mxu0 0.0
        %5292 = vmatpush1.msra.mxu0 0.0
        %5293 = vmatprep.subr.mxu0 0.0
        %5294 = vmatpush1.msra.mxu0 0.0
        %5295 = vmatprep.subr.mxu0 0.0
        %5296 = vmatpush1.msra.mxu0 0.0
        %5297 = vmatprep.subr.mxu0 0.0
        %5298 = vmatpush1.msra.mxu0 0.0
        %5299 = vmatprep.subr.mxu0 0.0
        %5300 = vmatpush1.msra.mxu0 0.0
        %5301 = vmatprep.subr.mxu0 0.0
        %5302 = vmatpush1.msra.mxu0 0.0
        %5303 = vmatprep.subr.mxu0 0.0
        %5304 = vmatpush1.msra.mxu0 0.0
        %5305 = vmatprep.subr.mxu0 0.0
        %5306 = vmatpush1.msra.mxu0 0.0
        %5307 = vmatprep.subr.mxu0 0.0
        %5308 = vmatpush1.msra.mxu0 0.0
        %5309 = vmatprep.subr.mxu0 0.0
        %5310 = vmatpush1.msra.mxu0 0.0
        %5311 = vmatprep.subr.mxu0 0.0
        %5312 = vmatpush1.msra.mxu0 0.0
        %5313 = vmatprep.subr.mxu0 0.0
        %5314 = vmatpush1.msra.mxu0 0.0
        %5315 = vmatprep.subr.mxu0 0.0
        %5316 = vmatpush1.msra.mxu0 0.0
        %5317 = vmatprep.subr.mxu0 0.0
        %5318 = vmatpush1.msra.mxu0 0.0
        %5319 = vmatprep.subr.mxu0 0.0
        %5320 = vmatpush1.msra.mxu0 0.0
        %5321 = vmatprep.subr.mxu0 0.0
        %5322 = vmatpush1.msra.mxu0 0.0
        %5323 = vmatprep.subr.mxu0 0.0
        %5324 = vmatpush1.msra.mxu0 0.0
        %5325 = vmatprep.mubr.f32.mxu0 0.0
        %5326 = vmatmul.mubr.f32.gmra.mrb[0].mxu0 %v5259
        %v5327 = vpop.f32.mrb[0].mxu0
        %v5328 = vadd.f32 %v5255, %v5327
        %v5329 = vpop.f32.mrb[0].mxu0
        %5330 = vdwg.mxu0
        %v5331 = vadd.f32 %v5328, %v2634
        %v5332 = vxor.u32 %v5331, 2147483648
        %v5333 = vmul.f32 %v5332, 1.442695
        %v5334 = vpow.pop %v5333
        %v5335 = vadd.f32 %v5334, 1.0
        %v5336 = vrcp.pop %v5335
        %v5337 = vmul.f32 1.0, %v5336
        %5339 = vrot.lane.b32.xlu0 %v5331, 32
        %v5340 = vpop.permute.xlu0 %5339
        %v5342 = vmul.f32 %v5337, %v5340
        %5344 = vrot.lane.b32.xlu0 %v5342, 64
        %v5345 = vpop.permute.xlu0 %5344
        %v5347 = vadd.f32 %v5331, %v5345
        %v5348 = vtanh.pop %v5347
        %v5349 = vsub.f32 1.0, %v5337
        %5351 = vrot.lane.b32.xlu0 %v5348, 96
        %v5352 = vpop.permute.xlu0 %5351
        %v5354 = vmul.f32 %v5349, %v5352
        %v5355 = vmul.f32 %v5337, %v4010
        %v5356 = vadd.f32 %v5354, %v5355
        %5358 = vrot.lane.b32.xlu0 %v5356, 96
        %v5359 = vpop.permute.xlu0 %5358
        %5361 = vst.msk [vmem:[%s447] sm:$0xff] %vm1300, %v5359
        %s5362 = sand.u32 %s306, 1
        %s5363 = scalar_lea.sflag [#allocation3], %s5362
        %s5364 = sand.u32 %s306, 1
        %s5365 = smul.addr %s5364, 8
        %s5366 = scalar_lea.vmem [#allocation2], %s5365
        // Predicated region
        $region69: #{tpu_custom_call.1} parent=67 // pred_check
          %p5367 = pneg %p316
        $region70: #{tpu_custom_call.1} parent=67 // pred_check_branch
          %5369 = sbr.rel (%p5367) target = $region72
        $region71: #{tpu_custom_call.1} parent=67 // pred_region
          %s5371 = ssub.s32 128, 128
          %5372 = vsyncadd %s5363, %s5371
          %s5373 = smul.addr %s26, 128
          %s5374 = scalar_lea.hbm %s12, %s5373
          %s5376 = sshll.u32 %s5366, 4
          %s5377 = int_to_ptr.vmem [resolvable:$true] %s5376
          %5379 = dma.vmem_to_hbm [thread:$0]  %s5377, 128, %s5374, %s5363
        $region72: #{tpu_custom_call.1} parent=67 // pred_fallthru
          _
      $region68: #{tpu_custom_call.1} parent=5 // pred_fallthru
        _
      %p5380 = scmp.le.s32.totalorder 2, %s21
      // Predicated region
      $region73: #{tpu_custom_call.1} parent=5 // pred_check
        %p5381 = pneg %p5380
      $region74: #{tpu_custom_call.1} parent=5 // pred_check_branch
        %5383 = sbr.rel (%p5381) target = $region76
      $region75: #{tpu_custom_call.1} parent=5 // pred_region
        %s5384 = ssub.s32 %s21, 2
        // Predicated region
        $region77: #{tpu_custom_call.1} parent=75 // pred_check
          %p5385 = pneg %p322
        $region78: #{tpu_custom_call.1} parent=75 // pred_check_branch
          %5387 = sbr.rel (%p5385) target = $region80
        $region79: #{tpu_custom_call.1} parent=75 // pred_region
          %s5388 = sand.u32 %s307, 1
          %s5389 = scalar_lea.sflag [#allocation3], %s5388
          %s5390 = sand.u32 %s307, 1
          %s5391 = smul.addr %s5390, 8
          %s5392 = scalar_lea.vmem [#allocation2], %s5391
          %5393 = dma.done %s5389, 128
        $region80: #{tpu_custom_call.1} parent=75 // pred_fallthru
          _
      $region76: #{tpu_custom_call.1} parent=5 // pred_fallthru
        _
    $region6: #{tpu_custom_call.1} parent=1 // loop_footer
      %s25 = sadd.s32 1, %s21
    $region7: #{tpu_custom_call.1} parent=1 // loop_footer_branch
      %20 = sbr.rel target = $region3
    $region8: #{tpu_custom_call.1} parent=1 // loop_exit
      _
    %5394 = vsyncpa [#allocation3], 1
    %s5395 = scalar_lea.sflag [#allocation3], 1
    %5396 = vsyncpa %s5395, 1

</llo_original>
